<compile_context>
chip_gen: v7x
topology: tpu7x:2x2x1
jax: 0.10.0
libtpu: 0.0.40
codegen_flags: <defaults>
</compile_context>

<pallas_src>
import functools

import numpy as np

import jax
import jax.numpy as jnp
from jax.experimental import pallas as pl
from jax.experimental.pallas import tpu as pltpu

_K = 7                    # conv kernel size
_PAD = (_K - 1) // 2      # = 3


# --------------------------------------------------------------------------
# Kernel
# --------------------------------------------------------------------------
def _spatial_gate_kernel(w_cols, x_ref, cmask_ref, w_ref, b_ref, o_ref):
    """x_ref / o_ref: (Bt, C, H*W) in the model dtype (VMEM).
    cmask_ref: (7, H*W) f32 {0,1} column-validity masks (VMEM).
    w_ref: (2, 49) f32 folded conv*BN weights (SMEM); b_ref: (1,) f32 (SMEM).
    w_cols: W (static python int)."""
    bt, c, hw = x_ref.shape

    # Read once in native dtype, do all math in f32.
    xf = x_ref[...].astype(jnp.float32)                 # (Bt, C, HW)

    # Channel pooling: reduction over the sublane axis of the lane-dense block.
    pooled = (jnp.max(xf, axis=1),                      # channel max   (Bt, HW)
              jnp.sum(xf, axis=1) * (1.0 / c))          # channel mean  (Bt, HW)

    # Column masks, one (1, HW) row per dw tap.
    cms = [cmask_ref[dw:dw + 1, :] for dw in range(_K)]

    def shift(arr, amount):
        # out[:, p] = arr[:, p + amount], zero-filled at the array ends.
        if amount == 0:
            return arr
        if abs(amount) >= hw:
            return jnp.zeros_like(arr)
        pad = jnp.zeros((bt, abs(amount)), jnp.float32)
        if amount > 0:
            return jnp.concatenate([arr[:, amount:], pad], axis=1)
        return jnp.concatenate([pad, arr[:, :hw + amount]], axis=1)

    # 7x7 conv (2 in-channels -> 1 out) with folded BN; the folded bias seeds
    # the accumulator.  Row shift hoisted out of the dw loop (14 big shifts,
    # 98 small ones); out-of-row column taps are zeroed by the static masks,
    # out-of-image row taps are zeroed by the zero-filled shifts themselves.
    acc = jnp.full((bt, hw), b_ref[0], dtype=jnp.float32)
    for ch in range(2):
        pm = pooled[ch]
        for dh in range(_K):
            base = shift(pm, (dh - _PAD) * w_cols)
            for dw in range(_K):
                w_vec = w_ref[ch, dh * _K + dw] * cms[dw]      # (1, HW)
                acc = acc + w_vec * shift(base, dw - _PAD)

    scale = jax.nn.sigmoid(acc)                          # (Bt, HW), EUP
    # Broadcast over the channel (sublane) axis; lane-dense full store.
    o_ref[...] = (xf * scale[:, None, :]).astype(o_ref.dtype)


# --------------------------------------------------------------------------
# Tiling / VMEM budgeting helpers
# --------------------------------------------------------------------------
def _round_up(v, m):
    return ((v + m - 1) // m) * m


def _vmem_capacity_bytes():
    default_cap = 64 << 20        # v7x per-TensorCore VMEM (most conservative)
    try:
        info = pltpu.get_tpu_info()
    except Exception:
        return default_cap
    for name in ("vmem_capacity_bytes", "vmem_size_bytes", "vmem_bytes"):
        val = getattr(info, name, None)
        if val is None:
            continue
        try:
            iv = int(val)
        except (TypeError, ValueError):
            continue
        if iv > 0:
            return iv
    return default_cap


def _per_batch_elem_bytes(C, HW, itemsize):
    c_r = _round_up(max(C, 1), 8)
    hw_r = _round_up(HW, 128)
    io_block = c_r * hw_r * itemsize          # one (C, HW) slab of x / out
    blocks = 4 * io_block                     # 2x double-buffered in + out
    temps = (c_r + 8) * hw_r * 4              # f32 upcast + pooled/acc/shift temps
    return blocks + temps


def _pick_batch_tile(B, C, HW, itemsize, budget_bytes):
    per_elem = _per_batch_elem_bytes(C, HW, itemsize)
    fits = [bt for bt in range(1, B + 1)
            if B % bt == 0 and bt * per_elem <= budget_bytes]
    if not fits:
        return 1      # single element exceeds the soft budget; rely on headroom
    # Prefer grids that keep both v7x TensorCores busy (>= 2 steps, even).
    even = [bt for bt in fits if (B // bt) >= 2 and (B // bt) % 2 == 0]
    if even:
        return max(even)
    multi = [bt for bt in fits if (B // bt) >= 2]
    if multi:
        return max(multi)
    return max(fits)


# --------------------------------------------------------------------------
# Wrapper
# --------------------------------------------------------------------------
def spatial_gate(x, conv_w, bn_gamma, bn_beta, bn_mean, bn_var,
                 eps=1e-5, batch_tile=None):
    """x: (B, C, H, W); conv_w: (1, 2, 7, 7); bn_*: (1,).  Returns x.dtype."""
    B, C, H, W = x.shape
    HW = H * W
    out_dtype = x.dtype
    itemsize = x.dtype.itemsize

    # Lane-dense layout for the big array: minor dim = H*W.
    x_flat = x.reshape(B, C, HW)

    # Fold eval-mode BatchNorm (single output channel) into conv weight/bias.
    f32 = jnp.float32
    inv_std = bn_gamma.astype(f32) / jnp.sqrt(bn_var.astype(f32) + eps)   # (1,)
    w_eff = (conv_w.astype(f32) * inv_std.reshape(1, 1, 1, 1)).reshape(2, _K * _K)
    b_eff = (bn_beta.astype(f32) - bn_mean.astype(f32) * inv_std).reshape(1)

    # Static column-validity masks for the conv's zero padding, on flattened
    # positions p = row*W + col (host-side numpy -> tiny constant input).
    col = np.arange(HW, dtype=np.int64) % W
    col_mask = np.stack(
        [((col + (dw - _PAD)) >= 0) & ((col + (dw - _PAD)) < W)
         for dw in range(_K)]).astype(np.float32)                        # (7, HW)
    col_mask = jnp.asarray(col_mask)

    # Generation-aware VMEM budget and batch tile.
    vmem_cap = _vmem_capacity_bytes()
    budget = min(48 << 20, vmem_cap // 2)           # ~48 MiB v5e/v6e, ~32 MiB v7x
    vmem_limit = int(min(budget + (16 << 20), (vmem_cap * 3) // 4))
    Bt = batch_tile if batch_tile is not None else _pick_batch_tile(
        B, C, HW, itemsize, budget)
    assert B % Bt == 0, "batch tile must divide batch"

    out_flat = pl.pallas_call(
        functools.partial(_spatial_gate_kernel, W),
        out_shape=jax.ShapeDtypeStruct((B, C, HW), out_dtype),
        grid_spec=pltpu.PrefetchScalarGridSpec(
            num_scalar_prefetch=0,
            grid=(B // Bt,),
            in_specs=[
                pl.BlockSpec((Bt, C, HW), lambda b: (b, 0, 0)),        # x
                pl.BlockSpec((_K, HW), lambda b: (0, 0)),              # col masks
                pl.BlockSpec(memory_space=pltpu.MemorySpace.SMEM),     # w_eff
                pl.BlockSpec(memory_space=pltpu.MemorySpace.SMEM),     # b_eff
            ],
            out_specs=pl.BlockSpec((Bt, C, HW), lambda b: (b, 0, 0)),
        ),
        compiler_params=pltpu.CompilerParams(
            dimension_semantics=("parallel",),     # batch tiles are independent
            vmem_limit_bytes=vmem_limit,
        ),
        cost_estimate=pl.CostEstimate(
            flops=int(B) * HW * (2 * C + 4 * _K * _K + 4),
            transcendentals=int(B) * HW,
            bytes_accessed=2 * int(B) * C * HW * itemsize + _K * HW * 4,
        ),
    )(x_flat, col_mask, w_eff, b_eff)
    return out_flat.reshape(B, C, H, W)


# --------------------------------------------------------------------------
# Plain-JAX reference (mirrors the PyTorch forward, eval-mode BN)
# --------------------------------------------------------------------------
def spatial_gate_reference(x, conv_w, bn_gamma, bn_beta, bn_mean, bn_var,
                           eps=1e-5):
    mx = jnp.max(x, axis=1, keepdims=True)               # (B, 1, H, W)
    mn = jnp.mean(x, axis=1, keepdims=True)              # (B, 1, H, W)
    xc = jnp.concatenate([mx, mn], axis=1)               # (B, 2, H, W)
    y = jax.lax.conv_general_dilated(
        xc, conv_w.astype(jnp.float32),
        window_strides=(1, 1), padding=((_PAD, _PAD), (_PAD, _PAD)),
        dimension_numbers=("NCHW", "OIHW", "NCHW"))      # (B, 1, H, W)
    g = bn_gamma.reshape(1, -1, 1, 1)
    b = bn_beta.reshape(1, -1, 1, 1)
    m = bn_mean.reshape(1, -1, 1, 1)
    v = bn_var.reshape(1, -1, 1, 1)
    y = (y - m) / jnp.sqrt(v + eps) * g + b
    return x * jax.nn.sigmoid(y)


if __name__ == "__main__":
    B, C, H, W = 2, 4, 16, 16

    key = jax.random.PRNGKey(0)
    kx, kw, kg, kb, km, kv = jax.random.split(key, 6)

    x = jax.random.normal(kx, (B, C, H, W), dtype=jnp.float32)
    conv_w = jax.random.normal(kw, (1, 2, _K, _K), dtype=jnp.float32) * 0.1
    bn_gamma = 1.0 + 0.1 * jax.random.normal(kg, (1,), dtype=jnp.float32)
    bn_beta = 0.1 * jax.random.normal(kb, (1,), dtype=jnp.float32)
    bn_mean = 0.1 * jax.random.normal(km, (1,), dtype=jnp.float32)
    bn_var = jax.random.uniform(kv, (1,), dtype=jnp.float32,
                                minval=0.5, maxval=1.5)

    # f32 path: tight check against the plain-JAX reference.
    y = jax.block_until_ready(
        spatial_gate(x, conv_w, bn_gamma, bn_beta, bn_mean, bn_var))
    y_ref = jax.block_until_ready(
        spatial_gate_reference(x, conv_w, bn_gamma, bn_beta, bn_mean, bn_var))
    assert y.shape == x.shape and y.dtype == x.dtype
    assert jnp.allclose(y, y_ref, atol=1e-4, rtol=1e-4), "f32 mismatch vs reference"

    # bf16 I/O path: native-dtype read/write (f32 math inside), loose check
    # (only difference vs the f32 reference is the final bf16 rounding).
    xb = x.astype(jnp.bfloat16)
    yb = jax.block_until_ready(
        spatial_gate(xb, conv_w, bn_gamma, bn_beta, bn_mean, bn_var))
    yb_ref = spatial_gate_reference(xb.astype(jnp.float32), conv_w, bn_gamma,
                                    bn_beta, bn_mean, bn_var)
    assert yb.dtype == jnp.bfloat16
    assert jnp.allclose(yb.astype(jnp.float32), yb_ref, atol=3e-2, rtol=3e-2), \
        "bf16 mismatch vs reference"

    print("KERNEL_OK")
</pallas_src>

<mosaic_0001>
module attributes {stable_mosaic.version = 11 : i64} {
  func.func @_spatial_gate_kernel(%arg0: i32, %arg1: memref<1x4x256xf32, #tpu.memory_space<vmem>>, %arg2: memref<7x256xf32, #tpu.memory_space<vmem>>, %arg3: memref<2x49xf32, #tpu.memory_space<smem>>, %arg4: memref<1xf32, #tpu.memory_space<smem>>, %arg5: memref<1x4x256xf32, #tpu.memory_space<vmem>>) attributes {dimension_semantics = [#tpu.dimension_semantics<parallel>], iteration_bounds = array<i64: 2>, scalar_prefetch = 0 : i64, scratch_operands = 0 : i64, tpu.core_type = #tpu.core_type<tc>, window_params = [{transform_indices = @transform_0, window_bounds = array<i64: 1, 4, 256>}, {pipeline_mode = #tpu.pipeline_mode<synchronous>, transform_indices = @transform_1, window_bounds = array<i64: 7, 256>}, {transform_indices = @transform_2, window_bounds = array<i64: 2, 49>}, {transform_indices = @transform_3, window_bounds = array<i64: 1>}, {transform_indices = @transform_4, window_bounds = array<i64: 1, 4, 256>}]} {
    %c0 = arith.constant 0 : index
    %c0_0 = arith.constant 0 : index
    %c0_1 = arith.constant 0 : index
    %0 = vector.load %arg1[%c0, %c0_0, %c0_1] : memref<1x4x256xf32, #tpu.memory_space<vmem>>, vector<1x4x256xf32>
    %cst = arith.constant dense<0xFF800000> : vector<1x256xf32>
    %1 = vector.multi_reduction <maximumf>, %0, %cst [1] : vector<1x4x256xf32> to vector<1x256xf32>
    %cst_2 = arith.constant dense<0.000000e+00> : vector<1x256xf32>
    %2 = vector.multi_reduction <add>, %0, %cst_2 [1] : vector<1x4x256xf32> to vector<1x256xf32>
    %cst_3 = arith.constant 2.500000e-01 : f32
    %3 = vector.broadcast %cst_3 : f32 to vector<1x256xf32>
    %4 = arith.mulf %2, %3 : vector<1x256xf32>
    %c0_4 = arith.constant 0 : index
    %c0_5 = arith.constant 0 : index
    %5 = vector.load %arg2[%c0_4, %c0_5] : memref<7x256xf32, #tpu.memory_space<vmem>>, vector<1x256xf32>
    %c1 = arith.constant 1 : index
    %c0_6 = arith.constant 0 : index
    %6 = vector.load %arg2[%c1, %c0_6] : memref<7x256xf32, #tpu.memory_space<vmem>>, vector<1x256xf32>
    %c2 = arith.constant 2 : index
    %c0_7 = arith.constant 0 : index
    %7 = vector.load %arg2[%c2, %c0_7] : memref<7x256xf32, #tpu.memory_space<vmem>>, vector<1x256xf32>
    %c3 = arith.constant 3 : index
    %c0_8 = arith.constant 0 : index
    %8 = vector.load %arg2[%c3, %c0_8] : memref<7x256xf32, #tpu.memory_space<vmem>>, vector<1x256xf32>
    %c4 = arith.constant 4 : index
    %c0_9 = arith.constant 0 : index
    %9 = vector.load %arg2[%c4, %c0_9] : memref<7x256xf32, #tpu.memory_space<vmem>>, vector<1x256xf32>
    %c5 = arith.constant 5 : index
    %c0_10 = arith.constant 0 : index
    %10 = vector.load %arg2[%c5, %c0_10] : memref<7x256xf32, #tpu.memory_space<vmem>>, vector<1x256xf32>
    %c6 = arith.constant 6 : index
    %c0_11 = arith.constant 0 : index
    %11 = vector.load %arg2[%c6, %c0_11] : memref<7x256xf32, #tpu.memory_space<vmem>>, vector<1x256xf32>
    %c0_12 = arith.constant 0 : index
    %12 = memref.load %arg4[%c0_12] : memref<1xf32, #tpu.memory_space<smem>>
    %13 = vector.broadcast %12 : f32 to vector<1x256xf32>
    %cst_13 = arith.constant 0.000000e+00 : f32
    %14 = vector.broadcast %cst_13 : f32 to vector<1x48xf32>
    %15 = vector.extract_strided_slice %1 {offsets = [0, 0], sizes = [1, 208], strides = [1, 1]} : vector<1x256xf32> to vector<1x208xf32>
    %16 = tpu.concatenate %14, %15 in 1 : vector<1x48xf32>, vector<1x208xf32> -> vector<1x256xf32>
    %c0_14 = arith.constant 0 : index
    %c0_15 = arith.constant 0 : index
    %17 = memref.load %arg3[%c0_14, %c0_15] : memref<2x49xf32, #tpu.memory_space<smem>>
    %18 = vector.broadcast %17 : f32 to vector<1x256xf32>
    %19 = arith.mulf %18, %5 : vector<1x256xf32>
    %cst_16 = arith.constant 0.000000e+00 : f32
    %20 = vector.broadcast %cst_16 : f32 to vector<1x3xf32>
    %21 = vector.extract_strided_slice %16 {offsets = [0, 0], sizes = [1, 253], strides = [1, 1]} : vector<1x256xf32> to vector<1x253xf32>
    %22 = tpu.concatenate %20, %21 in 1 : vector<1x3xf32>, vector<1x253xf32> -> vector<1x256xf32>
    %23 = arith.mulf %19, %22 : vector<1x256xf32>
    %24 = arith.addf %13, %23 : vector<1x256xf32>
    %c0_17 = arith.constant 0 : index
    %c1_18 = arith.constant 1 : index
    %25 = memref.load %arg3[%c0_17, %c1_18] : memref<2x49xf32, #tpu.memory_space<smem>>
    %26 = vector.broadcast %25 : f32 to vector<1x256xf32>
    %27 = arith.mulf %26, %6 : vector<1x256xf32>
    %cst_19 = arith.constant 0.000000e+00 : f32
    %28 = vector.broadcast %cst_19 : f32 to vector<1x2xf32>
    %29 = vector.extract_strided_slice %16 {offsets = [0, 0], sizes = [1, 254], strides = [1, 1]} : vector<1x256xf32> to vector<1x254xf32>
    %30 = tpu.concatenate %28, %29 in 1 : vector<1x2xf32>, vector<1x254xf32> -> vector<1x256xf32>
    %31 = arith.mulf %27, %30 : vector<1x256xf32>
    %32 = arith.addf %24, %31 : vector<1x256xf32>
    %c0_20 = arith.constant 0 : index
    %c2_21 = arith.constant 2 : index
    %33 = memref.load %arg3[%c0_20, %c2_21] : memref<2x49xf32, #tpu.memory_space<smem>>
    %34 = vector.broadcast %33 : f32 to vector<1x256xf32>
    %35 = arith.mulf %34, %7 : vector<1x256xf32>
    %cst_22 = arith.constant 0.000000e+00 : f32
    %36 = vector.broadcast %cst_22 : f32 to vector<1x1xf32>
    %37 = vector.extract_strided_slice %16 {offsets = [0, 0], sizes = [1, 255], strides = [1, 1]} : vector<1x256xf32> to vector<1x255xf32>
    %38 = tpu.concatenate %36, %37 in 1 : vector<1x1xf32>, vector<1x255xf32> -> vector<1x256xf32>
    %39 = arith.mulf %35, %38 : vector<1x256xf32>
    %40 = arith.addf %32, %39 : vector<1x256xf32>
    %c0_23 = arith.constant 0 : index
    %c3_24 = arith.constant 3 : index
    %41 = memref.load %arg3[%c0_23, %c3_24] : memref<2x49xf32, #tpu.memory_space<smem>>
    %42 = vector.broadcast %41 : f32 to vector<1x256xf32>
    %43 = arith.mulf %42, %8 : vector<1x256xf32>
    %44 = arith.mulf %43, %16 : vector<1x256xf32>
    %45 = arith.addf %40, %44 : vector<1x256xf32>
    %c0_25 = arith.constant 0 : index
    %c4_26 = arith.constant 4 : index
    %46 = memref.load %arg3[%c0_25, %c4_26] : memref<2x49xf32, #tpu.memory_space<smem>>
    %47 = vector.broadcast %46 : f32 to vector<1x256xf32>
    %48 = arith.mulf %47, %9 : vector<1x256xf32>
    %cst_27 = arith.constant 0.000000e+00 : f32
    %49 = vector.broadcast %cst_27 : f32 to vector<1x1xf32>
    %50 = vector.extract_strided_slice %16 {offsets = [0, 1], sizes = [1, 255], strides = [1, 1]} : vector<1x256xf32> to vector<1x255xf32>
    %51 = tpu.concatenate %50, %49 in 1 : vector<1x255xf32>, vector<1x1xf32> -> vector<1x256xf32>
    %52 = arith.mulf %48, %51 : vector<1x256xf32>
    %53 = arith.addf %45, %52 : vector<1x256xf32>
    %c0_28 = arith.constant 0 : index
    %c5_29 = arith.constant 5 : index
    %54 = memref.load %arg3[%c0_28, %c5_29] : memref<2x49xf32, #tpu.memory_space<smem>>
    %55 = vector.broadcast %54 : f32 to vector<1x256xf32>
    %56 = arith.mulf %55, %10 : vector<1x256xf32>
    %cst_30 = arith.constant 0.000000e+00 : f32
    %57 = vector.broadcast %cst_30 : f32 to vector<1x2xf32>
    %58 = vector.extract_strided_slice %16 {offsets = [0, 2], sizes = [1, 254], strides = [1, 1]} : vector<1x256xf32> to vector<1x254xf32>
    %59 = tpu.concatenate %58, %57 in 1 : vector<1x254xf32>, vector<1x2xf32> -> vector<1x256xf32>
    %60 = arith.mulf %56, %59 : vector<1x256xf32>
    %61 = arith.addf %53, %60 : vector<1x256xf32>
    %c0_31 = arith.constant 0 : index
    %c6_32 = arith.constant 6 : index
    %62 = memref.load %arg3[%c0_31, %c6_32] : memref<2x49xf32, #tpu.memory_space<smem>>
    %63 = vector.broadcast %62 : f32 to vector<1x256xf32>
    %64 = arith.mulf %63, %11 : vector<1x256xf32>
    %cst_33 = arith.constant 0.000000e+00 : f32
    %65 = vector.broadcast %cst_33 : f32 to vector<1x3xf32>
    %66 = vector.extract_strided_slice %16 {offsets = [0, 3], sizes = [1, 253], strides = [1, 1]} : vector<1x256xf32> to vector<1x253xf32>
    %67 = tpu.concatenate %66, %65 in 1 : vector<1x253xf32>, vector<1x3xf32> -> vector<1x256xf32>
    %68 = arith.mulf %64, %67 : vector<1x256xf32>
    %69 = arith.addf %61, %68 : vector<1x256xf32>
    %cst_34 = arith.constant 0.000000e+00 : f32
    %70 = vector.broadcast %cst_34 : f32 to vector<1x32xf32>
    %71 = vector.extract_strided_slice %1 {offsets = [0, 0], sizes = [1, 224], strides = [1, 1]} : vector<1x256xf32> to vector<1x224xf32>
    %72 = tpu.concatenate %70, %71 in 1 : vector<1x32xf32>, vector<1x224xf32> -> vector<1x256xf32>
    %c0_35 = arith.constant 0 : index
    %c7 = arith.constant 7 : index
    %73 = memref.load %arg3[%c0_35, %c7] : memref<2x49xf32, #tpu.memory_space<smem>>
    %74 = vector.broadcast %73 : f32 to vector<1x256xf32>
    %75 = arith.mulf %74, %5 : vector<1x256xf32>
    %cst_36 = arith.constant 0.000000e+00 : f32
    %76 = vector.broadcast %cst_36 : f32 to vector<1x3xf32>
    %77 = vector.extract_strided_slice %72 {offsets = [0, 0], sizes = [1, 253], strides = [1, 1]} : vector<1x256xf32> to vector<1x253xf32>
    %78 = tpu.concatenate %76, %77 in 1 : vector<1x3xf32>, vector<1x253xf32> -> vector<1x256xf32>
    %79 = arith.mulf %75, %78 : vector<1x256xf32>
    %80 = arith.addf %69, %79 : vector<1x256xf32>
    %c0_37 = arith.constant 0 : index
    %c8 = arith.constant 8 : index
    %81 = memref.load %arg3[%c0_37, %c8] : memref<2x49xf32, #tpu.memory_space<smem>>
    %82 = vector.broadcast %81 : f32 to vector<1x256xf32>
    %83 = arith.mulf %82, %6 : vector<1x256xf32>
    %cst_38 = arith.constant 0.000000e+00 : f32
    %84 = vector.broadcast %cst_38 : f32 to vector<1x2xf32>
    %85 = vector.extract_strided_slice %72 {offsets = [0, 0], sizes = [1, 254], strides = [1, 1]} : vector<1x256xf32> to vector<1x254xf32>
    %86 = tpu.concatenate %84, %85 in 1 : vector<1x2xf32>, vector<1x254xf32> -> vector<1x256xf32>
    %87 = arith.mulf %83, %86 : vector<1x256xf32>
    %88 = arith.addf %80, %87 : vector<1x256xf32>
    %c0_39 = arith.constant 0 : index
    %c9 = arith.constant 9 : index
    %89 = memref.load %arg3[%c0_39, %c9] : memref<2x49xf32, #tpu.memory_space<smem>>
    %90 = vector.broadcast %89 : f32 to vector<1x256xf32>
    %91 = arith.mulf %90, %7 : vector<1x256xf32>
    %cst_40 = arith.constant 0.000000e+00 : f32
    %92 = vector.broadcast %cst_40 : f32 to vector<1x1xf32>
    %93 = vector.extract_strided_slice %72 {offsets = [0, 0], sizes = [1, 255], strides = [1, 1]} : vector<1x256xf32> to vector<1x255xf32>
    %94 = tpu.concatenate %92, %93 in 1 : vector<1x1xf32>, vector<1x255xf32> -> vector<1x256xf32>
    %95 = arith.mulf %91, %94 : vector<1x256xf32>
    %96 = arith.addf %88, %95 : vector<1x256xf32>
    %c0_41 = arith.constant 0 : index
    %c10 = arith.constant 10 : index
    %97 = memref.load %arg3[%c0_41, %c10] : memref<2x49xf32, #tpu.memory_space<smem>>
    %98 = vector.broadcast %97 : f32 to vector<1x256xf32>
    %99 = arith.mulf %98, %8 : vector<1x256xf32>
    %100 = arith.mulf %99, %72 : vector<1x256xf32>
    %101 = arith.addf %96, %100 : vector<1x256xf32>
    %c0_42 = arith.constant 0 : index
    %c11 = arith.constant 11 : index
    %102 = memref.load %arg3[%c0_42, %c11] : memref<2x49xf32, #tpu.memory_space<smem>>
    %103 = vector.broadcast %102 : f32 to vector<1x256xf32>
    %104 = arith.mulf %103, %9 : vector<1x256xf32>
    %cst_43 = arith.constant 0.000000e+00 : f32
    %105 = vector.broadcast %cst_43 : f32 to vector<1x1xf32>
    %106 = vector.extract_strided_slice %72 {offsets = [0, 1], sizes = [1, 255], strides = [1, 1]} : vector<1x256xf32> to vector<1x255xf32>
    %107 = tpu.concatenate %106, %105 in 1 : vector<1x255xf32>, vector<1x1xf32> -> vector<1x256xf32>
    %108 = arith.mulf %104, %107 : vector<1x256xf32>
    %109 = arith.addf %101, %108 : vector<1x256xf32>
    %c0_44 = arith.constant 0 : index
    %c12 = arith.constant 12 : index
    %110 = memref.load %arg3[%c0_44, %c12] : memref<2x49xf32, #tpu.memory_space<smem>>
    %111 = vector.broadcast %110 : f32 to vector<1x256xf32>
    %112 = arith.mulf %111, %10 : vector<1x256xf32>
    %cst_45 = arith.constant 0.000000e+00 : f32
    %113 = vector.broadcast %cst_45 : f32 to vector<1x2xf32>
    %114 = vector.extract_strided_slice %72 {offsets = [0, 2], sizes = [1, 254], strides = [1, 1]} : vector<1x256xf32> to vector<1x254xf32>
    %115 = tpu.concatenate %114, %113 in 1 : vector<1x254xf32>, vector<1x2xf32> -> vector<1x256xf32>
    %116 = arith.mulf %112, %115 : vector<1x256xf32>
    %117 = arith.addf %109, %116 : vector<1x256xf32>
    %c0_46 = arith.constant 0 : index
    %c13 = arith.constant 13 : index
    %118 = memref.load %arg3[%c0_46, %c13] : memref<2x49xf32, #tpu.memory_space<smem>>
    %119 = vector.broadcast %118 : f32 to vector<1x256xf32>
    %120 = arith.mulf %119, %11 : vector<1x256xf32>
    %cst_47 = arith.constant 0.000000e+00 : f32
    %121 = vector.broadcast %cst_47 : f32 to vector<1x3xf32>
    %122 = vector.extract_strided_slice %72 {offsets = [0, 3], sizes = [1, 253], strides = [1, 1]} : vector<1x256xf32> to vector<1x253xf32>
    %123 = tpu.concatenate %122, %121 in 1 : vector<1x253xf32>, vector<1x3xf32> -> vector<1x256xf32>
    %124 = arith.mulf %120, %123 : vector<1x256xf32>
    %125 = arith.addf %117, %124 : vector<1x256xf32>
    %cst_48 = arith.constant 0.000000e+00 : f32
    %126 = vector.broadcast %cst_48 : f32 to vector<1x16xf32>
    %127 = vector.extract_strided_slice %1 {offsets = [0, 0], sizes = [1, 240], strides = [1, 1]} : vector<1x256xf32> to vector<1x240xf32>
    %128 = tpu.concatenate %126, %127 in 1 : vector<1x16xf32>, vector<1x240xf32> -> vector<1x256xf32>
    %c0_49 = arith.constant 0 : index
    %c14 = arith.constant 14 : index
    %129 = memref.load %arg3[%c0_49, %c14] : memref<2x49xf32, #tpu.memory_space<smem>>
    %130 = vector.broadcast %129 : f32 to vector<1x256xf32>
    %131 = arith.mulf %130, %5 : vector<1x256xf32>
    %cst_50 = arith.constant 0.000000e+00 : f32
    %132 = vector.broadcast %cst_50 : f32 to vector<1x3xf32>
    %133 = vector.extract_strided_slice %128 {offsets = [0, 0], sizes = [1, 253], strides = [1, 1]} : vector<1x256xf32> to vector<1x253xf32>
    %134 = tpu.concatenate %132, %133 in 1 : vector<1x3xf32>, vector<1x253xf32> -> vector<1x256xf32>
    %135 = arith.mulf %131, %134 : vector<1x256xf32>
    %136 = arith.addf %125, %135 : vector<1x256xf32>
    %c0_51 = arith.constant 0 : index
    %c15 = arith.constant 15 : index
    %137 = memref.load %arg3[%c0_51, %c15] : memref<2x49xf32, #tpu.memory_space<smem>>
    %138 = vector.broadcast %137 : f32 to vector<1x256xf32>
    %139 = arith.mulf %138, %6 : vector<1x256xf32>
    %cst_52 = arith.constant 0.000000e+00 : f32
    %140 = vector.broadcast %cst_52 : f32 to vector<1x2xf32>
    %141 = vector.extract_strided_slice %128 {offsets = [0, 0], sizes = [1, 254], strides = [1, 1]} : vector<1x256xf32> to vector<1x254xf32>
    %142 = tpu.concatenate %140, %141 in 1 : vector<1x2xf32>, vector<1x254xf32> -> vector<1x256xf32>
    %143 = arith.mulf %139, %142 : vector<1x256xf32>
    %144 = arith.addf %136, %143 : vector<1x256xf32>
    %c0_53 = arith.constant 0 : index
    %c16 = arith.constant 16 : index
    %145 = memref.load %arg3[%c0_53, %c16] : memref<2x49xf32, #tpu.memory_space<smem>>
    %146 = vector.broadcast %145 : f32 to vector<1x256xf32>
    %147 = arith.mulf %146, %7 : vector<1x256xf32>
    %cst_54 = arith.constant 0.000000e+00 : f32
    %148 = vector.broadcast %cst_54 : f32 to vector<1x1xf32>
    %149 = vector.extract_strided_slice %128 {offsets = [0, 0], sizes = [1, 255], strides = [1, 1]} : vector<1x256xf32> to vector<1x255xf32>
    %150 = tpu.concatenate %148, %149 in 1 : vector<1x1xf32>, vector<1x255xf32> -> vector<1x256xf32>
    %151 = arith.mulf %147, %150 : vector<1x256xf32>
    %152 = arith.addf %144, %151 : vector<1x256xf32>
    %c0_55 = arith.constant 0 : index
    %c17 = arith.constant 17 : index
    %153 = memref.load %arg3[%c0_55, %c17] : memref<2x49xf32, #tpu.memory_space<smem>>
    %154 = vector.broadcast %153 : f32 to vector<1x256xf32>
    %155 = arith.mulf %154, %8 : vector<1x256xf32>
    %156 = arith.mulf %155, %128 : vector<1x256xf32>
    %157 = arith.addf %152, %156 : vector<1x256xf32>
    %c0_56 = arith.constant 0 : index
    %c18 = arith.constant 18 : index
    %158 = memref.load %arg3[%c0_56, %c18] : memref<2x49xf32, #tpu.memory_space<smem>>
    %159 = vector.broadcast %158 : f32 to vector<1x256xf32>
    %160 = arith.mulf %159, %9 : vector<1x256xf32>
    %cst_57 = arith.constant 0.000000e+00 : f32
    %161 = vector.broadcast %cst_57 : f32 to vector<1x1xf32>
    %162 = vector.extract_strided_slice %128 {offsets = [0, 1], sizes = [1, 255], strides = [1, 1]} : vector<1x256xf32> to vector<1x255xf32>
    %163 = tpu.concatenate %162, %161 in 1 : vector<1x255xf32>, vector<1x1xf32> -> vector<1x256xf32>
    %164 = arith.mulf %160, %163 : vector<1x256xf32>
    %165 = arith.addf %157, %164 : vector<1x256xf32>
    %c0_58 = arith.constant 0 : index
    %c19 = arith.constant 19 : index
    %166 = memref.load %arg3[%c0_58, %c19] : memref<2x49xf32, #tpu.memory_space<smem>>
    %167 = vector.broadcast %166 : f32 to vector<1x256xf32>
    %168 = arith.mulf %167, %10 : vector<1x256xf32>
    %cst_59 = arith.constant 0.000000e+00 : f32
    %169 = vector.broadcast %cst_59 : f32 to vector<1x2xf32>
    %170 = vector.extract_strided_slice %128 {offsets = [0, 2], sizes = [1, 254], strides = [1, 1]} : vector<1x256xf32> to vector<1x254xf32>
    %171 = tpu.concatenate %170, %169 in 1 : vector<1x254xf32>, vector<1x2xf32> -> vector<1x256xf32>
    %172 = arith.mulf %168, %171 : vector<1x256xf32>
    %173 = arith.addf %165, %172 : vector<1x256xf32>
    %c0_60 = arith.constant 0 : index
    %c20 = arith.constant 20 : index
    %174 = memref.load %arg3[%c0_60, %c20] : memref<2x49xf32, #tpu.memory_space<smem>>
    %175 = vector.broadcast %174 : f32 to vector<1x256xf32>
    %176 = arith.mulf %175, %11 : vector<1x256xf32>
    %cst_61 = arith.constant 0.000000e+00 : f32
    %177 = vector.broadcast %cst_61 : f32 to vector<1x3xf32>
    %178 = vector.extract_strided_slice %128 {offsets = [0, 3], sizes = [1, 253], strides = [1, 1]} : vector<1x256xf32> to vector<1x253xf32>
    %179 = tpu.concatenate %178, %177 in 1 : vector<1x253xf32>, vector<1x3xf32> -> vector<1x256xf32>
    %180 = arith.mulf %176, %179 : vector<1x256xf32>
    %181 = arith.addf %173, %180 : vector<1x256xf32>
    %c0_62 = arith.constant 0 : index
    %c21 = arith.constant 21 : index
    %182 = memref.load %arg3[%c0_62, %c21] : memref<2x49xf32, #tpu.memory_space<smem>>
    %183 = vector.broadcast %182 : f32 to vector<1x256xf32>
    %184 = arith.mulf %183, %5 : vector<1x256xf32>
    %cst_63 = arith.constant 0.000000e+00 : f32
    %185 = vector.broadcast %cst_63 : f32 to vector<1x3xf32>
    %186 = vector.extract_strided_slice %1 {offsets = [0, 0], sizes = [1, 253], strides = [1, 1]} : vector<1x256xf32> to vector<1x253xf32>
    %187 = tpu.concatenate %185, %186 in 1 : vector<1x3xf32>, vector<1x253xf32> -> vector<1x256xf32>
    %188 = arith.mulf %184, %187 : vector<1x256xf32>
    %189 = arith.addf %181, %188 : vector<1x256xf32>
    %c0_64 = arith.constant 0 : index
    %c22 = arith.constant 22 : index
    %190 = memref.load %arg3[%c0_64, %c22] : memref<2x49xf32, #tpu.memory_space<smem>>
    %191 = vector.broadcast %190 : f32 to vector<1x256xf32>
    %192 = arith.mulf %191, %6 : vector<1x256xf32>
    %cst_65 = arith.constant 0.000000e+00 : f32
    %193 = vector.broadcast %cst_65 : f32 to vector<1x2xf32>
    %194 = vector.extract_strided_slice %1 {offsets = [0, 0], sizes = [1, 254], strides = [1, 1]} : vector<1x256xf32> to vector<1x254xf32>
    %195 = tpu.concatenate %193, %194 in 1 : vector<1x2xf32>, vector<1x254xf32> -> vector<1x256xf32>
    %196 = arith.mulf %192, %195 : vector<1x256xf32>
    %197 = arith.addf %189, %196 : vector<1x256xf32>
    %c0_66 = arith.constant 0 : index
    %c23 = arith.constant 23 : index
    %198 = memref.load %arg3[%c0_66, %c23] : memref<2x49xf32, #tpu.memory_space<smem>>
    %199 = vector.broadcast %198 : f32 to vector<1x256xf32>
    %200 = arith.mulf %199, %7 : vector<1x256xf32>
    %cst_67 = arith.constant 0.000000e+00 : f32
    %201 = vector.broadcast %cst_67 : f32 to vector<1x1xf32>
    %202 = vector.extract_strided_slice %1 {offsets = [0, 0], sizes = [1, 255], strides = [1, 1]} : vector<1x256xf32> to vector<1x255xf32>
    %203 = tpu.concatenate %201, %202 in 1 : vector<1x1xf32>, vector<1x255xf32> -> vector<1x256xf32>
    %204 = arith.mulf %200, %203 : vector<1x256xf32>
    %205 = arith.addf %197, %204 : vector<1x256xf32>
    %c0_68 = arith.constant 0 : index
    %c24 = arith.constant 24 : index
    %206 = memref.load %arg3[%c0_68, %c24] : memref<2x49xf32, #tpu.memory_space<smem>>
    %207 = vector.broadcast %206 : f32 to vector<1x256xf32>
    %208 = arith.mulf %207, %8 : vector<1x256xf32>
    %209 = arith.mulf %208, %1 : vector<1x256xf32>
    %210 = arith.addf %205, %209 : vector<1x256xf32>
    %c0_69 = arith.constant 0 : index
    %c25 = arith.constant 25 : index
    %211 = memref.load %arg3[%c0_69, %c25] : memref<2x49xf32, #tpu.memory_space<smem>>
    %212 = vector.broadcast %211 : f32 to vector<1x256xf32>
    %213 = arith.mulf %212, %9 : vector<1x256xf32>
    %cst_70 = arith.constant 0.000000e+00 : f32
    %214 = vector.broadcast %cst_70 : f32 to vector<1x1xf32>
    %215 = vector.extract_strided_slice %1 {offsets = [0, 1], sizes = [1, 255], strides = [1, 1]} : vector<1x256xf32> to vector<1x255xf32>
    %216 = tpu.concatenate %215, %214 in 1 : vector<1x255xf32>, vector<1x1xf32> -> vector<1x256xf32>
    %217 = arith.mulf %213, %216 : vector<1x256xf32>
    %218 = arith.addf %210, %217 : vector<1x256xf32>
    %c0_71 = arith.constant 0 : index
    %c26 = arith.constant 26 : index
    %219 = memref.load %arg3[%c0_71, %c26] : memref<2x49xf32, #tpu.memory_space<smem>>
    %220 = vector.broadcast %219 : f32 to vector<1x256xf32>
    %221 = arith.mulf %220, %10 : vector<1x256xf32>
    %cst_72 = arith.constant 0.000000e+00 : f32
    %222 = vector.broadcast %cst_72 : f32 to vector<1x2xf32>
    %223 = vector.extract_strided_slice %1 {offsets = [0, 2], sizes = [1, 254], strides = [1, 1]} : vector<1x256xf32> to vector<1x254xf32>
    %224 = tpu.concatenate %223, %222 in 1 : vector<1x254xf32>, vector<1x2xf32> -> vector<1x256xf32>
    %225 = arith.mulf %221, %224 : vector<1x256xf32>
    %226 = arith.addf %218, %225 : vector<1x256xf32>
    %c0_73 = arith.constant 0 : index
    %c27 = arith.constant 27 : index
    %227 = memref.load %arg3[%c0_73, %c27] : memref<2x49xf32, #tpu.memory_space<smem>>
    %228 = vector.broadcast %227 : f32 to vector<1x256xf32>
    %229 = arith.mulf %228, %11 : vector<1x256xf32>
    %cst_74 = arith.constant 0.000000e+00 : f32
    %230 = vector.broadcast %cst_74 : f32 to vector<1x3xf32>
    %231 = vector.extract_strided_slice %1 {offsets = [0, 3], sizes = [1, 253], strides = [1, 1]} : vector<1x256xf32> to vector<1x253xf32>
    %232 = tpu.concatenate %231, %230 in 1 : vector<1x253xf32>, vector<1x3xf32> -> vector<1x256xf32>
    %233 = arith.mulf %229, %232 : vector<1x256xf32>
    %234 = arith.addf %226, %233 : vector<1x256xf32>
    %cst_75 = arith.constant 0.000000e+00 : f32
    %235 = vector.broadcast %cst_75 : f32 to vector<1x16xf32>
    %236 = vector.extract_strided_slice %1 {offsets = [0, 16], sizes = [1, 240], strides = [1, 1]} : vector<1x256xf32> to vector<1x240xf32>
    %237 = tpu.concatenate %236, %235 in 1 : vector<1x240xf32>, vector<1x16xf32> -> vector<1x256xf32>
    %c0_76 = arith.constant 0 : index
    %c28 = arith.constant 28 : index
    %238 = memref.load %arg3[%c0_76, %c28] : memref<2x49xf32, #tpu.memory_space<smem>>
    %239 = vector.broadcast %238 : f32 to vector<1x256xf32>
    %240 = arith.mulf %239, %5 : vector<1x256xf32>
    %cst_77 = arith.constant 0.000000e+00 : f32
    %241 = vector.broadcast %cst_77 : f32 to vector<1x3xf32>
    %242 = vector.extract_strided_slice %237 {offsets = [0, 0], sizes = [1, 253], strides = [1, 1]} : vector<1x256xf32> to vector<1x253xf32>
    %243 = tpu.concatenate %241, %242 in 1 : vector<1x3xf32>, vector<1x253xf32> -> vector<1x256xf32>
    %244 = arith.mulf %240, %243 : vector<1x256xf32>
    %245 = arith.addf %234, %244 : vector<1x256xf32>
    %c0_78 = arith.constant 0 : index
    %c29 = arith.constant 29 : index
    %246 = memref.load %arg3[%c0_78, %c29] : memref<2x49xf32, #tpu.memory_space<smem>>
    %247 = vector.broadcast %246 : f32 to vector<1x256xf32>
    %248 = arith.mulf %247, %6 : vector<1x256xf32>
    %cst_79 = arith.constant 0.000000e+00 : f32
    %249 = vector.broadcast %cst_79 : f32 to vector<1x2xf32>
    %250 = vector.extract_strided_slice %237 {offsets = [0, 0], sizes = [1, 254], strides = [1, 1]} : vector<1x256xf32> to vector<1x254xf32>
    %251 = tpu.concatenate %249, %250 in 1 : vector<1x2xf32>, vector<1x254xf32> -> vector<1x256xf32>
    %252 = arith.mulf %248, %251 : vector<1x256xf32>
    %253 = arith.addf %245, %252 : vector<1x256xf32>
    %c0_80 = arith.constant 0 : index
    %c30 = arith.constant 30 : index
    %254 = memref.load %arg3[%c0_80, %c30] : memref<2x49xf32, #tpu.memory_space<smem>>
    %255 = vector.broadcast %254 : f32 to vector<1x256xf32>
    %256 = arith.mulf %255, %7 : vector<1x256xf32>
    %cst_81 = arith.constant 0.000000e+00 : f32
    %257 = vector.broadcast %cst_81 : f32 to vector<1x1xf32>
    %258 = vector.extract_strided_slice %237 {offsets = [0, 0], sizes = [1, 255], strides = [1, 1]} : vector<1x256xf32> to vector<1x255xf32>
    %259 = tpu.concatenate %257, %258 in 1 : vector<1x1xf32>, vector<1x255xf32> -> vector<1x256xf32>
    %260 = arith.mulf %256, %259 : vector<1x256xf32>
    %261 = arith.addf %253, %260 : vector<1x256xf32>
    %c0_82 = arith.constant 0 : index
    %c31 = arith.constant 31 : index
    %262 = memref.load %arg3[%c0_82, %c31] : memref<2x49xf32, #tpu.memory_space<smem>>
    %263 = vector.broadcast %262 : f32 to vector<1x256xf32>
    %264 = arith.mulf %263, %8 : vector<1x256xf32>
    %265 = arith.mulf %264, %237 : vector<1x256xf32>
    %266 = arith.addf %261, %265 : vector<1x256xf32>
    %c0_83 = arith.constant 0 : index
    %c32 = arith.constant 32 : index
    %267 = memref.load %arg3[%c0_83, %c32] : memref<2x49xf32, #tpu.memory_space<smem>>
    %268 = vector.broadcast %267 : f32 to vector<1x256xf32>
    %269 = arith.mulf %268, %9 : vector<1x256xf32>
    %cst_84 = arith.constant 0.000000e+00 : f32
    %270 = vector.broadcast %cst_84 : f32 to vector<1x1xf32>
    %271 = vector.extract_strided_slice %237 {offsets = [0, 1], sizes = [1, 255], strides = [1, 1]} : vector<1x256xf32> to vector<1x255xf32>
    %272 = tpu.concatenate %271, %270 in 1 : vector<1x255xf32>, vector<1x1xf32> -> vector<1x256xf32>
    %273 = arith.mulf %269, %272 : vector<1x256xf32>
    %274 = arith.addf %266, %273 : vector<1x256xf32>
    %c0_85 = arith.constant 0 : index
    %c33 = arith.constant 33 : index
    %275 = memref.load %arg3[%c0_85, %c33] : memref<2x49xf32, #tpu.memory_space<smem>>
    %276 = vector.broadcast %275 : f32 to vector<1x256xf32>
    %277 = arith.mulf %276, %10 : vector<1x256xf32>
    %cst_86 = arith.constant 0.000000e+00 : f32
    %278 = vector.broadcast %cst_86 : f32 to vector<1x2xf32>
    %279 = vector.extract_strided_slice %237 {offsets = [0, 2], sizes = [1, 254], strides = [1, 1]} : vector<1x256xf32> to vector<1x254xf32>
    %280 = tpu.concatenate %279, %278 in 1 : vector<1x254xf32>, vector<1x2xf32> -> vector<1x256xf32>
    %281 = arith.mulf %277, %280 : vector<1x256xf32>
    %282 = arith.addf %274, %281 : vector<1x256xf32>
    %c0_87 = arith.constant 0 : index
    %c34 = arith.constant 34 : index
    %283 = memref.load %arg3[%c0_87, %c34] : memref<2x49xf32, #tpu.memory_space<smem>>
    %284 = vector.broadcast %283 : f32 to vector<1x256xf32>
    %285 = arith.mulf %284, %11 : vector<1x256xf32>
    %cst_88 = arith.constant 0.000000e+00 : f32
    %286 = vector.broadcast %cst_88 : f32 to vector<1x3xf32>
    %287 = vector.extract_strided_slice %237 {offsets = [0, 3], sizes = [1, 253], strides = [1, 1]} : vector<1x256xf32> to vector<1x253xf32>
    %288 = tpu.concatenate %287, %286 in 1 : vector<1x253xf32>, vector<1x3xf32> -> vector<1x256xf32>
    %289 = arith.mulf %285, %288 : vector<1x256xf32>
    %290 = arith.addf %282, %289 : vector<1x256xf32>
    %cst_89 = arith.constant 0.000000e+00 : f32
    %291 = vector.broadcast %cst_89 : f32 to vector<1x32xf32>
    %292 = vector.extract_strided_slice %1 {offsets = [0, 32], sizes = [1, 224], strides = [1, 1]} : vector<1x256xf32> to vector<1x224xf32>
    %293 = tpu.concatenate %292, %291 in 1 : vector<1x224xf32>, vector<1x32xf32> -> vector<1x256xf32>
    %c0_90 = arith.constant 0 : index
    %c35 = arith.constant 35 : index
    %294 = memref.load %arg3[%c0_90, %c35] : memref<2x49xf32, #tpu.memory_space<smem>>
    %295 = vector.broadcast %294 : f32 to vector<1x256xf32>
    %296 = arith.mulf %295, %5 : vector<1x256xf32>
    %cst_91 = arith.constant 0.000000e+00 : f32
    %297 = vector.broadcast %cst_91 : f32 to vector<1x3xf32>
    %298 = vector.extract_strided_slice %293 {offsets = [0, 0], sizes = [1, 253], strides = [1, 1]} : vector<1x256xf32> to vector<1x253xf32>
    %299 = tpu.concatenate %297, %298 in 1 : vector<1x3xf32>, vector<1x253xf32> -> vector<1x256xf32>
    %300 = arith.mulf %296, %299 : vector<1x256xf32>
    %301 = arith.addf %290, %300 : vector<1x256xf32>
    %c0_92 = arith.constant 0 : index
    %c36 = arith.constant 36 : index
    %302 = memref.load %arg3[%c0_92, %c36] : memref<2x49xf32, #tpu.memory_space<smem>>
    %303 = vector.broadcast %302 : f32 to vector<1x256xf32>
    %304 = arith.mulf %303, %6 : vector<1x256xf32>
    %cst_93 = arith.constant 0.000000e+00 : f32
    %305 = vector.broadcast %cst_93 : f32 to vector<1x2xf32>
    %306 = vector.extract_strided_slice %293 {offsets = [0, 0], sizes = [1, 254], strides = [1, 1]} : vector<1x256xf32> to vector<1x254xf32>
    %307 = tpu.concatenate %305, %306 in 1 : vector<1x2xf32>, vector<1x254xf32> -> vector<1x256xf32>
    %308 = arith.mulf %304, %307 : vector<1x256xf32>
    %309 = arith.addf %301, %308 : vector<1x256xf32>
    %c0_94 = arith.constant 0 : index
    %c37 = arith.constant 37 : index
    %310 = memref.load %arg3[%c0_94, %c37] : memref<2x49xf32, #tpu.memory_space<smem>>
    %311 = vector.broadcast %310 : f32 to vector<1x256xf32>
    %312 = arith.mulf %311, %7 : vector<1x256xf32>
    %cst_95 = arith.constant 0.000000e+00 : f32
    %313 = vector.broadcast %cst_95 : f32 to vector<1x1xf32>
    %314 = vector.extract_strided_slice %293 {offsets = [0, 0], sizes = [1, 255], strides = [1, 1]} : vector<1x256xf32> to vector<1x255xf32>
    %315 = tpu.concatenate %313, %314 in 1 : vector<1x1xf32>, vector<1x255xf32> -> vector<1x256xf32>
    %316 = arith.mulf %312, %315 : vector<1x256xf32>
    %317 = arith.addf %309, %316 : vector<1x256xf32>
    %c0_96 = arith.constant 0 : index
    %c38 = arith.constant 38 : index
    %318 = memref.load %arg3[%c0_96, %c38] : memref<2x49xf32, #tpu.memory_space<smem>>
    %319 = vector.broadcast %318 : f32 to vector<1x256xf32>
    %320 = arith.mulf %319, %8 : vector<1x256xf32>
    %321 = arith.mulf %320, %293 : vector<1x256xf32>
    %322 = arith.addf %317, %321 : vector<1x256xf32>
    %c0_97 = arith.constant 0 : index
    %c39 = arith.constant 39 : index
    %323 = memref.load %arg3[%c0_97, %c39] : memref<2x49xf32, #tpu.memory_space<smem>>
    %324 = vector.broadcast %323 : f32 to vector<1x256xf32>
    %325 = arith.mulf %324, %9 : vector<1x256xf32>
    %cst_98 = arith.constant 0.000000e+00 : f32
    %326 = vector.broadcast %cst_98 : f32 to vector<1x1xf32>
    %327 = vector.extract_strided_slice %293 {offsets = [0, 1], sizes = [1, 255], strides = [1, 1]} : vector<1x256xf32> to vector<1x255xf32>
    %328 = tpu.concatenate %327, %326 in 1 : vector<1x255xf32>, vector<1x1xf32> -> vector<1x256xf32>
    %329 = arith.mulf %325, %328 : vector<1x256xf32>
    %330 = arith.addf %322, %329 : vector<1x256xf32>
    %c0_99 = arith.constant 0 : index
    %c40 = arith.constant 40 : index
    %331 = memref.load %arg3[%c0_99, %c40] : memref<2x49xf32, #tpu.memory_space<smem>>
    %332 = vector.broadcast %331 : f32 to vector<1x256xf32>
    %333 = arith.mulf %332, %10 : vector<1x256xf32>
    %cst_100 = arith.constant 0.000000e+00 : f32
    %334 = vector.broadcast %cst_100 : f32 to vector<1x2xf32>
    %335 = vector.extract_strided_slice %293 {offsets = [0, 2], sizes = [1, 254], strides = [1, 1]} : vector<1x256xf32> to vector<1x254xf32>
    %336 = tpu.concatenate %335, %334 in 1 : vector<1x254xf32>, vector<1x2xf32> -> vector<1x256xf32>
    %337 = arith.mulf %333, %336 : vector<1x256xf32>
    %338 = arith.addf %330, %337 : vector<1x256xf32>
    %c0_101 = arith.constant 0 : index
    %c41 = arith.constant 41 : index
    %339 = memref.load %arg3[%c0_101, %c41] : memref<2x49xf32, #tpu.memory_space<smem>>
    %340 = vector.broadcast %339 : f32 to vector<1x256xf32>
    %341 = arith.mulf %340, %11 : vector<1x256xf32>
    %cst_102 = arith.constant 0.000000e+00 : f32
    %342 = vector.broadcast %cst_102 : f32 to vector<1x3xf32>
    %343 = vector.extract_strided_slice %293 {offsets = [0, 3], sizes = [1, 253], strides = [1, 1]} : vector<1x256xf32> to vector<1x253xf32>
    %344 = tpu.concatenate %343, %342 in 1 : vector<1x253xf32>, vector<1x3xf32> -> vector<1x256xf32>
    %345 = arith.mulf %341, %344 : vector<1x256xf32>
    %346 = arith.addf %338, %345 : vector<1x256xf32>
    %cst_103 = arith.constant 0.000000e+00 : f32
    %347 = vector.broadcast %cst_103 : f32 to vector<1x48xf32>
    %348 = vector.extract_strided_slice %1 {offsets = [0, 48], sizes = [1, 208], strides = [1, 1]} : vector<1x256xf32> to vector<1x208xf32>
    %349 = tpu.concatenate %348, %347 in 1 : vector<1x208xf32>, vector<1x48xf32> -> vector<1x256xf32>
    %c0_104 = arith.constant 0 : index
    %c42 = arith.constant 42 : index
    %350 = memref.load %arg3[%c0_104, %c42] : memref<2x49xf32, #tpu.memory_space<smem>>
    %351 = vector.broadcast %350 : f32 to vector<1x256xf32>
    %352 = arith.mulf %351, %5 : vector<1x256xf32>
    %cst_105 = arith.constant 0.000000e+00 : f32
    %353 = vector.broadcast %cst_105 : f32 to vector<1x3xf32>
    %354 = vector.extract_strided_slice %349 {offsets = [0, 0], sizes = [1, 253], strides = [1, 1]} : vector<1x256xf32> to vector<1x253xf32>
    %355 = tpu.concatenate %353, %354 in 1 : vector<1x3xf32>, vector<1x253xf32> -> vector<1x256xf32>
    %356 = arith.mulf %352, %355 : vector<1x256xf32>
    %357 = arith.addf %346, %356 : vector<1x256xf32>
    %c0_106 = arith.constant 0 : index
    %c43 = arith.constant 43 : index
    %358 = memref.load %arg3[%c0_106, %c43] : memref<2x49xf32, #tpu.memory_space<smem>>
    %359 = vector.broadcast %358 : f32 to vector<1x256xf32>
    %360 = arith.mulf %359, %6 : vector<1x256xf32>
    %cst_107 = arith.constant 0.000000e+00 : f32
    %361 = vector.broadcast %cst_107 : f32 to vector<1x2xf32>
    %362 = vector.extract_strided_slice %349 {offsets = [0, 0], sizes = [1, 254], strides = [1, 1]} : vector<1x256xf32> to vector<1x254xf32>
    %363 = tpu.concatenate %361, %362 in 1 : vector<1x2xf32>, vector<1x254xf32> -> vector<1x256xf32>
    %364 = arith.mulf %360, %363 : vector<1x256xf32>
    %365 = arith.addf %357, %364 : vector<1x256xf32>
    %c0_108 = arith.constant 0 : index
    %c44 = arith.constant 44 : index
    %366 = memref.load %arg3[%c0_108, %c44] : memref<2x49xf32, #tpu.memory_space<smem>>
    %367 = vector.broadcast %366 : f32 to vector<1x256xf32>
    %368 = arith.mulf %367, %7 : vector<1x256xf32>
    %cst_109 = arith.constant 0.000000e+00 : f32
    %369 = vector.broadcast %cst_109 : f32 to vector<1x1xf32>
    %370 = vector.extract_strided_slice %349 {offsets = [0, 0], sizes = [1, 255], strides = [1, 1]} : vector<1x256xf32> to vector<1x255xf32>
    %371 = tpu.concatenate %369, %370 in 1 : vector<1x1xf32>, vector<1x255xf32> -> vector<1x256xf32>
    %372 = arith.mulf %368, %371 : vector<1x256xf32>
    %373 = arith.addf %365, %372 : vector<1x256xf32>
    %c0_110 = arith.constant 0 : index
    %c45 = arith.constant 45 : index
    %374 = memref.load %arg3[%c0_110, %c45] : memref<2x49xf32, #tpu.memory_space<smem>>
    %375 = vector.broadcast %374 : f32 to vector<1x256xf32>
    %376 = arith.mulf %375, %8 : vector<1x256xf32>
    %377 = arith.mulf %376, %349 : vector<1x256xf32>
    %378 = arith.addf %373, %377 : vector<1x256xf32>
    %c0_111 = arith.constant 0 : index
    %c46 = arith.constant 46 : index
    %379 = memref.load %arg3[%c0_111, %c46] : memref<2x49xf32, #tpu.memory_space<smem>>
    %380 = vector.broadcast %379 : f32 to vector<1x256xf32>
    %381 = arith.mulf %380, %9 : vector<1x256xf32>
    %cst_112 = arith.constant 0.000000e+00 : f32
    %382 = vector.broadcast %cst_112 : f32 to vector<1x1xf32>
    %383 = vector.extract_strided_slice %349 {offsets = [0, 1], sizes = [1, 255], strides = [1, 1]} : vector<1x256xf32> to vector<1x255xf32>
    %384 = tpu.concatenate %383, %382 in 1 : vector<1x255xf32>, vector<1x1xf32> -> vector<1x256xf32>
    %385 = arith.mulf %381, %384 : vector<1x256xf32>
    %386 = arith.addf %378, %385 : vector<1x256xf32>
    %c0_113 = arith.constant 0 : index
    %c47 = arith.constant 47 : index
    %387 = memref.load %arg3[%c0_113, %c47] : memref<2x49xf32, #tpu.memory_space<smem>>
    %388 = vector.broadcast %387 : f32 to vector<1x256xf32>
    %389 = arith.mulf %388, %10 : vector<1x256xf32>
    %cst_114 = arith.constant 0.000000e+00 : f32
    %390 = vector.broadcast %cst_114 : f32 to vector<1x2xf32>
    %391 = vector.extract_strided_slice %349 {offsets = [0, 2], sizes = [1, 254], strides = [1, 1]} : vector<1x256xf32> to vector<1x254xf32>
    %392 = tpu.concatenate %391, %390 in 1 : vector<1x254xf32>, vector<1x2xf32> -> vector<1x256xf32>
    %393 = arith.mulf %389, %392 : vector<1x256xf32>
    %394 = arith.addf %386, %393 : vector<1x256xf32>
    %c0_115 = arith.constant 0 : index
    %c48 = arith.constant 48 : index
    %395 = memref.load %arg3[%c0_115, %c48] : memref<2x49xf32, #tpu.memory_space<smem>>
    %396 = vector.broadcast %395 : f32 to vector<1x256xf32>
    %397 = arith.mulf %396, %11 : vector<1x256xf32>
    %cst_116 = arith.constant 0.000000e+00 : f32
    %398 = vector.broadcast %cst_116 : f32 to vector<1x3xf32>
    %399 = vector.extract_strided_slice %349 {offsets = [0, 3], sizes = [1, 253], strides = [1, 1]} : vector<1x256xf32> to vector<1x253xf32>
    %400 = tpu.concatenate %399, %398 in 1 : vector<1x253xf32>, vector<1x3xf32> -> vector<1x256xf32>
    %401 = arith.mulf %397, %400 : vector<1x256xf32>
    %402 = arith.addf %394, %401 : vector<1x256xf32>
    %cst_117 = arith.constant 0.000000e+00 : f32
    %403 = vector.broadcast %cst_117 : f32 to vector<1x48xf32>
    %404 = vector.extract_strided_slice %4 {offsets = [0, 0], sizes = [1, 208], strides = [1, 1]} : vector<1x256xf32> to vector<1x208xf32>
    %405 = tpu.concatenate %403, %404 in 1 : vector<1x48xf32>, vector<1x208xf32> -> vector<1x256xf32>
    %c1_118 = arith.constant 1 : index
    %c0_119 = arith.constant 0 : index
    %406 = memref.load %arg3[%c1_118, %c0_119] : memref<2x49xf32, #tpu.memory_space<smem>>
    %407 = vector.broadcast %406 : f32 to vector<1x256xf32>
    %408 = arith.mulf %407, %5 : vector<1x256xf32>
    %cst_120 = arith.constant 0.000000e+00 : f32
    %409 = vector.broadcast %cst_120 : f32 to vector<1x3xf32>
    %410 = vector.extract_strided_slice %405 {offsets = [0, 0], sizes = [1, 253], strides = [1, 1]} : vector<1x256xf32> to vector<1x253xf32>
    %411 = tpu.concatenate %409, %410 in 1 : vector<1x3xf32>, vector<1x253xf32> -> vector<1x256xf32>
    %412 = arith.mulf %408, %411 : vector<1x256xf32>
    %413 = arith.addf %402, %412 : vector<1x256xf32>
    %c1_121 = arith.constant 1 : index
    %c1_122 = arith.constant 1 : index
    %414 = memref.load %arg3[%c1_121, %c1_122] : memref<2x49xf32, #tpu.memory_space<smem>>
    %415 = vector.broadcast %414 : f32 to vector<1x256xf32>
    %416 = arith.mulf %415, %6 : vector<1x256xf32>
    %cst_123 = arith.constant 0.000000e+00 : f32
    %417 = vector.broadcast %cst_123 : f32 to vector<1x2xf32>
    %418 = vector.extract_strided_slice %405 {offsets = [0, 0], sizes = [1, 254], strides = [1, 1]} : vector<1x256xf32> to vector<1x254xf32>
    %419 = tpu.concatenate %417, %418 in 1 : vector<1x2xf32>, vector<1x254xf32> -> vector<1x256xf32>
    %420 = arith.mulf %416, %419 : vector<1x256xf32>
    %421 = arith.addf %413, %420 : vector<1x256xf32>
    %c1_124 = arith.constant 1 : index
    %c2_125 = arith.constant 2 : index
    %422 = memref.load %arg3[%c1_124, %c2_125] : memref<2x49xf32, #tpu.memory_space<smem>>
    %423 = vector.broadcast %422 : f32 to vector<1x256xf32>
    %424 = arith.mulf %423, %7 : vector<1x256xf32>
    %cst_126 = arith.constant 0.000000e+00 : f32
    %425 = vector.broadcast %cst_126 : f32 to vector<1x1xf32>
    %426 = vector.extract_strided_slice %405 {offsets = [0, 0], sizes = [1, 255], strides = [1, 1]} : vector<1x256xf32> to vector<1x255xf32>
    %427 = tpu.concatenate %425, %426 in 1 : vector<1x1xf32>, vector<1x255xf32> -> vector<1x256xf32>
    %428 = arith.mulf %424, %427 : vector<1x256xf32>
    %429 = arith.addf %421, %428 : vector<1x256xf32>
    %c1_127 = arith.constant 1 : index
    %c3_128 = arith.constant 3 : index
    %430 = memref.load %arg3[%c1_127, %c3_128] : memref<2x49xf32, #tpu.memory_space<smem>>
    %431 = vector.broadcast %430 : f32 to vector<1x256xf32>
    %432 = arith.mulf %431, %8 : vector<1x256xf32>
    %433 = arith.mulf %432, %405 : vector<1x256xf32>
    %434 = arith.addf %429, %433 : vector<1x256xf32>
    %c1_129 = arith.constant 1 : index
    %c4_130 = arith.constant 4 : index
    %435 = memref.load %arg3[%c1_129, %c4_130] : memref<2x49xf32, #tpu.memory_space<smem>>
    %436 = vector.broadcast %435 : f32 to vector<1x256xf32>
    %437 = arith.mulf %436, %9 : vector<1x256xf32>
    %cst_131 = arith.constant 0.000000e+00 : f32
    %438 = vector.broadcast %cst_131 : f32 to vector<1x1xf32>
    %439 = vector.extract_strided_slice %405 {offsets = [0, 1], sizes = [1, 255], strides = [1, 1]} : vector<1x256xf32> to vector<1x255xf32>
    %440 = tpu.concatenate %439, %438 in 1 : vector<1x255xf32>, vector<1x1xf32> -> vector<1x256xf32>
    %441 = arith.mulf %437, %440 : vector<1x256xf32>
    %442 = arith.addf %434, %441 : vector<1x256xf32>
    %c1_132 = arith.constant 1 : index
    %c5_133 = arith.constant 5 : index
    %443 = memref.load %arg3[%c1_132, %c5_133] : memref<2x49xf32, #tpu.memory_space<smem>>
    %444 = vector.broadcast %443 : f32 to vector<1x256xf32>
    %445 = arith.mulf %444, %10 : vector<1x256xf32>
    %cst_134 = arith.constant 0.000000e+00 : f32
    %446 = vector.broadcast %cst_134 : f32 to vector<1x2xf32>
    %447 = vector.extract_strided_slice %405 {offsets = [0, 2], sizes = [1, 254], strides = [1, 1]} : vector<1x256xf32> to vector<1x254xf32>
    %448 = tpu.concatenate %447, %446 in 1 : vector<1x254xf32>, vector<1x2xf32> -> vector<1x256xf32>
    %449 = arith.mulf %445, %448 : vector<1x256xf32>
    %450 = arith.addf %442, %449 : vector<1x256xf32>
    %c1_135 = arith.constant 1 : index
    %c6_136 = arith.constant 6 : index
    %451 = memref.load %arg3[%c1_135, %c6_136] : memref<2x49xf32, #tpu.memory_space<smem>>
    %452 = vector.broadcast %451 : f32 to vector<1x256xf32>
    %453 = arith.mulf %452, %11 : vector<1x256xf32>
    %cst_137 = arith.constant 0.000000e+00 : f32
    %454 = vector.broadcast %cst_137 : f32 to vector<1x3xf32>
    %455 = vector.extract_strided_slice %405 {offsets = [0, 3], sizes = [1, 253], strides = [1, 1]} : vector<1x256xf32> to vector<1x253xf32>
    %456 = tpu.concatenate %455, %454 in 1 : vector<1x253xf32>, vector<1x3xf32> -> vector<1x256xf32>
    %457 = arith.mulf %453, %456 : vector<1x256xf32>
    %458 = arith.addf %450, %457 : vector<1x256xf32>
    %cst_138 = arith.constant 0.000000e+00 : f32
    %459 = vector.broadcast %cst_138 : f32 to vector<1x32xf32>
    %460 = vector.extract_strided_slice %4 {offsets = [0, 0], sizes = [1, 224], strides = [1, 1]} : vector<1x256xf32> to vector<1x224xf32>
    %461 = tpu.concatenate %459, %460 in 1 : vector<1x32xf32>, vector<1x224xf32> -> vector<1x256xf32>
    %c1_139 = arith.constant 1 : index
    %c7_140 = arith.constant 7 : index
    %462 = memref.load %arg3[%c1_139, %c7_140] : memref<2x49xf32, #tpu.memory_space<smem>>
    %463 = vector.broadcast %462 : f32 to vector<1x256xf32>
    %464 = arith.mulf %463, %5 : vector<1x256xf32>
    %cst_141 = arith.constant 0.000000e+00 : f32
    %465 = vector.broadcast %cst_141 : f32 to vector<1x3xf32>
    %466 = vector.extract_strided_slice %461 {offsets = [0, 0], sizes = [1, 253], strides = [1, 1]} : vector<1x256xf32> to vector<1x253xf32>
    %467 = tpu.concatenate %465, %466 in 1 : vector<1x3xf32>, vector<1x253xf32> -> vector<1x256xf32>
    %468 = arith.mulf %464, %467 : vector<1x256xf32>
    %469 = arith.addf %458, %468 : vector<1x256xf32>
    %c1_142 = arith.constant 1 : index
    %c8_143 = arith.constant 8 : index
    %470 = memref.load %arg3[%c1_142, %c8_143] : memref<2x49xf32, #tpu.memory_space<smem>>
    %471 = vector.broadcast %470 : f32 to vector<1x256xf32>
    %472 = arith.mulf %471, %6 : vector<1x256xf32>
    %cst_144 = arith.constant 0.000000e+00 : f32
    %473 = vector.broadcast %cst_144 : f32 to vector<1x2xf32>
    %474 = vector.extract_strided_slice %461 {offsets = [0, 0], sizes = [1, 254], strides = [1, 1]} : vector<1x256xf32> to vector<1x254xf32>
    %475 = tpu.concatenate %473, %474 in 1 : vector<1x2xf32>, vector<1x254xf32> -> vector<1x256xf32>
    %476 = arith.mulf %472, %475 : vector<1x256xf32>
    %477 = arith.addf %469, %476 : vector<1x256xf32>
    %c1_145 = arith.constant 1 : index
    %c9_146 = arith.constant 9 : index
    %478 = memref.load %arg3[%c1_145, %c9_146] : memref<2x49xf32, #tpu.memory_space<smem>>
    %479 = vector.broadcast %478 : f32 to vector<1x256xf32>
    %480 = arith.mulf %479, %7 : vector<1x256xf32>
    %cst_147 = arith.constant 0.000000e+00 : f32
    %481 = vector.broadcast %cst_147 : f32 to vector<1x1xf32>
    %482 = vector.extract_strided_slice %461 {offsets = [0, 0], sizes = [1, 255], strides = [1, 1]} : vector<1x256xf32> to vector<1x255xf32>
    %483 = tpu.concatenate %481, %482 in 1 : vector<1x1xf32>, vector<1x255xf32> -> vector<1x256xf32>
    %484 = arith.mulf %480, %483 : vector<1x256xf32>
    %485 = arith.addf %477, %484 : vector<1x256xf32>
    %c1_148 = arith.constant 1 : index
    %c10_149 = arith.constant 10 : index
    %486 = memref.load %arg3[%c1_148, %c10_149] : memref<2x49xf32, #tpu.memory_space<smem>>
    %487 = vector.broadcast %486 : f32 to vector<1x256xf32>
    %488 = arith.mulf %487, %8 : vector<1x256xf32>
    %489 = arith.mulf %488, %461 : vector<1x256xf32>
    %490 = arith.addf %485, %489 : vector<1x256xf32>
    %c1_150 = arith.constant 1 : index
    %c11_151 = arith.constant 11 : index
    %491 = memref.load %arg3[%c1_150, %c11_151] : memref<2x49xf32, #tpu.memory_space<smem>>
    %492 = vector.broadcast %491 : f32 to vector<1x256xf32>
    %493 = arith.mulf %492, %9 : vector<1x256xf32>
    %cst_152 = arith.constant 0.000000e+00 : f32
    %494 = vector.broadcast %cst_152 : f32 to vector<1x1xf32>
    %495 = vector.extract_strided_slice %461 {offsets = [0, 1], sizes = [1, 255], strides = [1, 1]} : vector<1x256xf32> to vector<1x255xf32>
    %496 = tpu.concatenate %495, %494 in 1 : vector<1x255xf32>, vector<1x1xf32> -> vector<1x256xf32>
    %497 = arith.mulf %493, %496 : vector<1x256xf32>
    %498 = arith.addf %490, %497 : vector<1x256xf32>
    %c1_153 = arith.constant 1 : index
    %c12_154 = arith.constant 12 : index
    %499 = memref.load %arg3[%c1_153, %c12_154] : memref<2x49xf32, #tpu.memory_space<smem>>
    %500 = vector.broadcast %499 : f32 to vector<1x256xf32>
    %501 = arith.mulf %500, %10 : vector<1x256xf32>
    %cst_155 = arith.constant 0.000000e+00 : f32
    %502 = vector.broadcast %cst_155 : f32 to vector<1x2xf32>
    %503 = vector.extract_strided_slice %461 {offsets = [0, 2], sizes = [1, 254], strides = [1, 1]} : vector<1x256xf32> to vector<1x254xf32>
    %504 = tpu.concatenate %503, %502 in 1 : vector<1x254xf32>, vector<1x2xf32> -> vector<1x256xf32>
    %505 = arith.mulf %501, %504 : vector<1x256xf32>
    %506 = arith.addf %498, %505 : vector<1x256xf32>
    %c1_156 = arith.constant 1 : index
    %c13_157 = arith.constant 13 : index
    %507 = memref.load %arg3[%c1_156, %c13_157] : memref<2x49xf32, #tpu.memory_space<smem>>
    %508 = vector.broadcast %507 : f32 to vector<1x256xf32>
    %509 = arith.mulf %508, %11 : vector<1x256xf32>
    %cst_158 = arith.constant 0.000000e+00 : f32
    %510 = vector.broadcast %cst_158 : f32 to vector<1x3xf32>
    %511 = vector.extract_strided_slice %461 {offsets = [0, 3], sizes = [1, 253], strides = [1, 1]} : vector<1x256xf32> to vector<1x253xf32>
    %512 = tpu.concatenate %511, %510 in 1 : vector<1x253xf32>, vector<1x3xf32> -> vector<1x256xf32>
    %513 = arith.mulf %509, %512 : vector<1x256xf32>
    %514 = arith.addf %506, %513 : vector<1x256xf32>
    %cst_159 = arith.constant 0.000000e+00 : f32
    %515 = vector.broadcast %cst_159 : f32 to vector<1x16xf32>
    %516 = vector.extract_strided_slice %4 {offsets = [0, 0], sizes = [1, 240], strides = [1, 1]} : vector<1x256xf32> to vector<1x240xf32>
    %517 = tpu.concatenate %515, %516 in 1 : vector<1x16xf32>, vector<1x240xf32> -> vector<1x256xf32>
    %c1_160 = arith.constant 1 : index
    %c14_161 = arith.constant 14 : index
    %518 = memref.load %arg3[%c1_160, %c14_161] : memref<2x49xf32, #tpu.memory_space<smem>>
    %519 = vector.broadcast %518 : f32 to vector<1x256xf32>
    %520 = arith.mulf %519, %5 : vector<1x256xf32>
    %cst_162 = arith.constant 0.000000e+00 : f32
    %521 = vector.broadcast %cst_162 : f32 to vector<1x3xf32>
    %522 = vector.extract_strided_slice %517 {offsets = [0, 0], sizes = [1, 253], strides = [1, 1]} : vector<1x256xf32> to vector<1x253xf32>
    %523 = tpu.concatenate %521, %522 in 1 : vector<1x3xf32>, vector<1x253xf32> -> vector<1x256xf32>
    %524 = arith.mulf %520, %523 : vector<1x256xf32>
    %525 = arith.addf %514, %524 : vector<1x256xf32>
    %c1_163 = arith.constant 1 : index
    %c15_164 = arith.constant 15 : index
    %526 = memref.load %arg3[%c1_163, %c15_164] : memref<2x49xf32, #tpu.memory_space<smem>>
    %527 = vector.broadcast %526 : f32 to vector<1x256xf32>
    %528 = arith.mulf %527, %6 : vector<1x256xf32>
    %cst_165 = arith.constant 0.000000e+00 : f32
    %529 = vector.broadcast %cst_165 : f32 to vector<1x2xf32>
    %530 = vector.extract_strided_slice %517 {offsets = [0, 0], sizes = [1, 254], strides = [1, 1]} : vector<1x256xf32> to vector<1x254xf32>
    %531 = tpu.concatenate %529, %530 in 1 : vector<1x2xf32>, vector<1x254xf32> -> vector<1x256xf32>
    %532 = arith.mulf %528, %531 : vector<1x256xf32>
    %533 = arith.addf %525, %532 : vector<1x256xf32>
    %c1_166 = arith.constant 1 : index
    %c16_167 = arith.constant 16 : index
    %534 = memref.load %arg3[%c1_166, %c16_167] : memref<2x49xf32, #tpu.memory_space<smem>>
    %535 = vector.broadcast %534 : f32 to vector<1x256xf32>
    %536 = arith.mulf %535, %7 : vector<1x256xf32>
    %cst_168 = arith.constant 0.000000e+00 : f32
    %537 = vector.broadcast %cst_168 : f32 to vector<1x1xf32>
    %538 = vector.extract_strided_slice %517 {offsets = [0, 0], sizes = [1, 255], strides = [1, 1]} : vector<1x256xf32> to vector<1x255xf32>
    %539 = tpu.concatenate %537, %538 in 1 : vector<1x1xf32>, vector<1x255xf32> -> vector<1x256xf32>
    %540 = arith.mulf %536, %539 : vector<1x256xf32>
    %541 = arith.addf %533, %540 : vector<1x256xf32>
    %c1_169 = arith.constant 1 : index
    %c17_170 = arith.constant 17 : index
    %542 = memref.load %arg3[%c1_169, %c17_170] : memref<2x49xf32, #tpu.memory_space<smem>>
    %543 = vector.broadcast %542 : f32 to vector<1x256xf32>
    %544 = arith.mulf %543, %8 : vector<1x256xf32>
    %545 = arith.mulf %544, %517 : vector<1x256xf32>
    %546 = arith.addf %541, %545 : vector<1x256xf32>
    %c1_171 = arith.constant 1 : index
    %c18_172 = arith.constant 18 : index
    %547 = memref.load %arg3[%c1_171, %c18_172] : memref<2x49xf32, #tpu.memory_space<smem>>
    %548 = vector.broadcast %547 : f32 to vector<1x256xf32>
    %549 = arith.mulf %548, %9 : vector<1x256xf32>
    %cst_173 = arith.constant 0.000000e+00 : f32
    %550 = vector.broadcast %cst_173 : f32 to vector<1x1xf32>
    %551 = vector.extract_strided_slice %517 {offsets = [0, 1], sizes = [1, 255], strides = [1, 1]} : vector<1x256xf32> to vector<1x255xf32>
    %552 = tpu.concatenate %551, %550 in 1 : vector<1x255xf32>, vector<1x1xf32> -> vector<1x256xf32>
    %553 = arith.mulf %549, %552 : vector<1x256xf32>
    %554 = arith.addf %546, %553 : vector<1x256xf32>
    %c1_174 = arith.constant 1 : index
    %c19_175 = arith.constant 19 : index
    %555 = memref.load %arg3[%c1_174, %c19_175] : memref<2x49xf32, #tpu.memory_space<smem>>
    %556 = vector.broadcast %555 : f32 to vector<1x256xf32>
    %557 = arith.mulf %556, %10 : vector<1x256xf32>
    %cst_176 = arith.constant 0.000000e+00 : f32
    %558 = vector.broadcast %cst_176 : f32 to vector<1x2xf32>
    %559 = vector.extract_strided_slice %517 {offsets = [0, 2], sizes = [1, 254], strides = [1, 1]} : vector<1x256xf32> to vector<1x254xf32>
    %560 = tpu.concatenate %559, %558 in 1 : vector<1x254xf32>, vector<1x2xf32> -> vector<1x256xf32>
    %561 = arith.mulf %557, %560 : vector<1x256xf32>
    %562 = arith.addf %554, %561 : vector<1x256xf32>
    %c1_177 = arith.constant 1 : index
    %c20_178 = arith.constant 20 : index
    %563 = memref.load %arg3[%c1_177, %c20_178] : memref<2x49xf32, #tpu.memory_space<smem>>
    %564 = vector.broadcast %563 : f32 to vector<1x256xf32>
    %565 = arith.mulf %564, %11 : vector<1x256xf32>
    %cst_179 = arith.constant 0.000000e+00 : f32
    %566 = vector.broadcast %cst_179 : f32 to vector<1x3xf32>
    %567 = vector.extract_strided_slice %517 {offsets = [0, 3], sizes = [1, 253], strides = [1, 1]} : vector<1x256xf32> to vector<1x253xf32>
    %568 = tpu.concatenate %567, %566 in 1 : vector<1x253xf32>, vector<1x3xf32> -> vector<1x256xf32>
    %569 = arith.mulf %565, %568 : vector<1x256xf32>
    %570 = arith.addf %562, %569 : vector<1x256xf32>
    %c1_180 = arith.constant 1 : index
    %c21_181 = arith.constant 21 : index
    %571 = memref.load %arg3[%c1_180, %c21_181] : memref<2x49xf32, #tpu.memory_space<smem>>
    %572 = vector.broadcast %571 : f32 to vector<1x256xf32>
    %573 = arith.mulf %572, %5 : vector<1x256xf32>
    %cst_182 = arith.constant 0.000000e+00 : f32
    %574 = vector.broadcast %cst_182 : f32 to vector<1x3xf32>
    %575 = vector.extract_strided_slice %4 {offsets = [0, 0], sizes = [1, 253], strides = [1, 1]} : vector<1x256xf32> to vector<1x253xf32>
    %576 = tpu.concatenate %574, %575 in 1 : vector<1x3xf32>, vector<1x253xf32> -> vector<1x256xf32>
    %577 = arith.mulf %573, %576 : vector<1x256xf32>
    %578 = arith.addf %570, %577 : vector<1x256xf32>
    %c1_183 = arith.constant 1 : index
    %c22_184 = arith.constant 22 : index
    %579 = memref.load %arg3[%c1_183, %c22_184] : memref<2x49xf32, #tpu.memory_space<smem>>
    %580 = vector.broadcast %579 : f32 to vector<1x256xf32>
    %581 = arith.mulf %580, %6 : vector<1x256xf32>
    %cst_185 = arith.constant 0.000000e+00 : f32
    %582 = vector.broadcast %cst_185 : f32 to vector<1x2xf32>
    %583 = vector.extract_strided_slice %4 {offsets = [0, 0], sizes = [1, 254], strides = [1, 1]} : vector<1x256xf32> to vector<1x254xf32>
    %584 = tpu.concatenate %582, %583 in 1 : vector<1x2xf32>, vector<1x254xf32> -> vector<1x256xf32>
    %585 = arith.mulf %581, %584 : vector<1x256xf32>
    %586 = arith.addf %578, %585 : vector<1x256xf32>
    %c1_186 = arith.constant 1 : index
    %c23_187 = arith.constant 23 : index
    %587 = memref.load %arg3[%c1_186, %c23_187] : memref<2x49xf32, #tpu.memory_space<smem>>
    %588 = vector.broadcast %587 : f32 to vector<1x256xf32>
    %589 = arith.mulf %588, %7 : vector<1x256xf32>
    %cst_188 = arith.constant 0.000000e+00 : f32
    %590 = vector.broadcast %cst_188 : f32 to vector<1x1xf32>
    %591 = vector.extract_strided_slice %4 {offsets = [0, 0], sizes = [1, 255], strides = [1, 1]} : vector<1x256xf32> to vector<1x255xf32>
    %592 = tpu.concatenate %590, %591 in 1 : vector<1x1xf32>, vector<1x255xf32> -> vector<1x256xf32>
    %593 = arith.mulf %589, %592 : vector<1x256xf32>
    %594 = arith.addf %586, %593 : vector<1x256xf32>
    %c1_189 = arith.constant 1 : index
    %c24_190 = arith.constant 24 : index
    %595 = memref.load %arg3[%c1_189, %c24_190] : memref<2x49xf32, #tpu.memory_space<smem>>
    %596 = vector.broadcast %595 : f32 to vector<1x256xf32>
    %597 = arith.mulf %596, %8 : vector<1x256xf32>
    %598 = arith.mulf %597, %4 : vector<1x256xf32>
    %599 = arith.addf %594, %598 : vector<1x256xf32>
    %c1_191 = arith.constant 1 : index
    %c25_192 = arith.constant 25 : index
    %600 = memref.load %arg3[%c1_191, %c25_192] : memref<2x49xf32, #tpu.memory_space<smem>>
    %601 = vector.broadcast %600 : f32 to vector<1x256xf32>
    %602 = arith.mulf %601, %9 : vector<1x256xf32>
    %cst_193 = arith.constant 0.000000e+00 : f32
    %603 = vector.broadcast %cst_193 : f32 to vector<1x1xf32>
    %604 = vector.extract_strided_slice %4 {offsets = [0, 1], sizes = [1, 255], strides = [1, 1]} : vector<1x256xf32> to vector<1x255xf32>
    %605 = tpu.concatenate %604, %603 in 1 : vector<1x255xf32>, vector<1x1xf32> -> vector<1x256xf32>
    %606 = arith.mulf %602, %605 : vector<1x256xf32>
    %607 = arith.addf %599, %606 : vector<1x256xf32>
    %c1_194 = arith.constant 1 : index
    %c26_195 = arith.constant 26 : index
    %608 = memref.load %arg3[%c1_194, %c26_195] : memref<2x49xf32, #tpu.memory_space<smem>>
    %609 = vector.broadcast %608 : f32 to vector<1x256xf32>
    %610 = arith.mulf %609, %10 : vector<1x256xf32>
    %cst_196 = arith.constant 0.000000e+00 : f32
    %611 = vector.broadcast %cst_196 : f32 to vector<1x2xf32>
    %612 = vector.extract_strided_slice %4 {offsets = [0, 2], sizes = [1, 254], strides = [1, 1]} : vector<1x256xf32> to vector<1x254xf32>
    %613 = tpu.concatenate %612, %611 in 1 : vector<1x254xf32>, vector<1x2xf32> -> vector<1x256xf32>
    %614 = arith.mulf %610, %613 : vector<1x256xf32>
    %615 = arith.addf %607, %614 : vector<1x256xf32>
    %c1_197 = arith.constant 1 : index
    %c27_198 = arith.constant 27 : index
    %616 = memref.load %arg3[%c1_197, %c27_198] : memref<2x49xf32, #tpu.memory_space<smem>>
    %617 = vector.broadcast %616 : f32 to vector<1x256xf32>
    %618 = arith.mulf %617, %11 : vector<1x256xf32>
    %cst_199 = arith.constant 0.000000e+00 : f32
    %619 = vector.broadcast %cst_199 : f32 to vector<1x3xf32>
    %620 = vector.extract_strided_slice %4 {offsets = [0, 3], sizes = [1, 253], strides = [1, 1]} : vector<1x256xf32> to vector<1x253xf32>
    %621 = tpu.concatenate %620, %619 in 1 : vector<1x253xf32>, vector<1x3xf32> -> vector<1x256xf32>
    %622 = arith.mulf %618, %621 : vector<1x256xf32>
    %623 = arith.addf %615, %622 : vector<1x256xf32>
    %cst_200 = arith.constant 0.000000e+00 : f32
    %624 = vector.broadcast %cst_200 : f32 to vector<1x16xf32>
    %625 = vector.extract_strided_slice %4 {offsets = [0, 16], sizes = [1, 240], strides = [1, 1]} : vector<1x256xf32> to vector<1x240xf32>
    %626 = tpu.concatenate %625, %624 in 1 : vector<1x240xf32>, vector<1x16xf32> -> vector<1x256xf32>
    %c1_201 = arith.constant 1 : index
    %c28_202 = arith.constant 28 : index
    %627 = memref.load %arg3[%c1_201, %c28_202] : memref<2x49xf32, #tpu.memory_space<smem>>
    %628 = vector.broadcast %627 : f32 to vector<1x256xf32>
    %629 = arith.mulf %628, %5 : vector<1x256xf32>
    %cst_203 = arith.constant 0.000000e+00 : f32
    %630 = vector.broadcast %cst_203 : f32 to vector<1x3xf32>
    %631 = vector.extract_strided_slice %626 {offsets = [0, 0], sizes = [1, 253], strides = [1, 1]} : vector<1x256xf32> to vector<1x253xf32>
    %632 = tpu.concatenate %630, %631 in 1 : vector<1x3xf32>, vector<1x253xf32> -> vector<1x256xf32>
    %633 = arith.mulf %629, %632 : vector<1x256xf32>
    %634 = arith.addf %623, %633 : vector<1x256xf32>
    %c1_204 = arith.constant 1 : index
    %c29_205 = arith.constant 29 : index
    %635 = memref.load %arg3[%c1_204, %c29_205] : memref<2x49xf32, #tpu.memory_space<smem>>
    %636 = vector.broadcast %635 : f32 to vector<1x256xf32>
    %637 = arith.mulf %636, %6 : vector<1x256xf32>
    %cst_206 = arith.constant 0.000000e+00 : f32
    %638 = vector.broadcast %cst_206 : f32 to vector<1x2xf32>
    %639 = vector.extract_strided_slice %626 {offsets = [0, 0], sizes = [1, 254], strides = [1, 1]} : vector<1x256xf32> to vector<1x254xf32>
    %640 = tpu.concatenate %638, %639 in 1 : vector<1x2xf32>, vector<1x254xf32> -> vector<1x256xf32>
    %641 = arith.mulf %637, %640 : vector<1x256xf32>
    %642 = arith.addf %634, %641 : vector<1x256xf32>
    %c1_207 = arith.constant 1 : index
    %c30_208 = arith.constant 30 : index
    %643 = memref.load %arg3[%c1_207, %c30_208] : memref<2x49xf32, #tpu.memory_space<smem>>
    %644 = vector.broadcast %643 : f32 to vector<1x256xf32>
    %645 = arith.mulf %644, %7 : vector<1x256xf32>
    %cst_209 = arith.constant 0.000000e+00 : f32
    %646 = vector.broadcast %cst_209 : f32 to vector<1x1xf32>
    %647 = vector.extract_strided_slice %626 {offsets = [0, 0], sizes = [1, 255], strides = [1, 1]} : vector<1x256xf32> to vector<1x255xf32>
    %648 = tpu.concatenate %646, %647 in 1 : vector<1x1xf32>, vector<1x255xf32> -> vector<1x256xf32>
    %649 = arith.mulf %645, %648 : vector<1x256xf32>
    %650 = arith.addf %642, %649 : vector<1x256xf32>
    %c1_210 = arith.constant 1 : index
    %c31_211 = arith.constant 31 : index
    %651 = memref.load %arg3[%c1_210, %c31_211] : memref<2x49xf32, #tpu.memory_space<smem>>
    %652 = vector.broadcast %651 : f32 to vector<1x256xf32>
    %653 = arith.mulf %652, %8 : vector<1x256xf32>
    %654 = arith.mulf %653, %626 : vector<1x256xf32>
    %655 = arith.addf %650, %654 : vector<1x256xf32>
    %c1_212 = arith.constant 1 : index
    %c32_213 = arith.constant 32 : index
    %656 = memref.load %arg3[%c1_212, %c32_213] : memref<2x49xf32, #tpu.memory_space<smem>>
    %657 = vector.broadcast %656 : f32 to vector<1x256xf32>
    %658 = arith.mulf %657, %9 : vector<1x256xf32>
    %cst_214 = arith.constant 0.000000e+00 : f32
    %659 = vector.broadcast %cst_214 : f32 to vector<1x1xf32>
    %660 = vector.extract_strided_slice %626 {offsets = [0, 1], sizes = [1, 255], strides = [1, 1]} : vector<1x256xf32> to vector<1x255xf32>
    %661 = tpu.concatenate %660, %659 in 1 : vector<1x255xf32>, vector<1x1xf32> -> vector<1x256xf32>
    %662 = arith.mulf %658, %661 : vector<1x256xf32>
    %663 = arith.addf %655, %662 : vector<1x256xf32>
    %c1_215 = arith.constant 1 : index
    %c33_216 = arith.constant 33 : index
    %664 = memref.load %arg3[%c1_215, %c33_216] : memref<2x49xf32, #tpu.memory_space<smem>>
    %665 = vector.broadcast %664 : f32 to vector<1x256xf32>
    %666 = arith.mulf %665, %10 : vector<1x256xf32>
    %cst_217 = arith.constant 0.000000e+00 : f32
    %667 = vector.broadcast %cst_217 : f32 to vector<1x2xf32>
    %668 = vector.extract_strided_slice %626 {offsets = [0, 2], sizes = [1, 254], strides = [1, 1]} : vector<1x256xf32> to vector<1x254xf32>
    %669 = tpu.concatenate %668, %667 in 1 : vector<1x254xf32>, vector<1x2xf32> -> vector<1x256xf32>
    %670 = arith.mulf %666, %669 : vector<1x256xf32>
    %671 = arith.addf %663, %670 : vector<1x256xf32>
    %c1_218 = arith.constant 1 : index
    %c34_219 = arith.constant 34 : index
    %672 = memref.load %arg3[%c1_218, %c34_219] : memref<2x49xf32, #tpu.memory_space<smem>>
    %673 = vector.broadcast %672 : f32 to vector<1x256xf32>
    %674 = arith.mulf %673, %11 : vector<1x256xf32>
    %cst_220 = arith.constant 0.000000e+00 : f32
    %675 = vector.broadcast %cst_220 : f32 to vector<1x3xf32>
    %676 = vector.extract_strided_slice %626 {offsets = [0, 3], sizes = [1, 253], strides = [1, 1]} : vector<1x256xf32> to vector<1x253xf32>
    %677 = tpu.concatenate %676, %675 in 1 : vector<1x253xf32>, vector<1x3xf32> -> vector<1x256xf32>
    %678 = arith.mulf %674, %677 : vector<1x256xf32>
    %679 = arith.addf %671, %678 : vector<1x256xf32>
    %cst_221 = arith.constant 0.000000e+00 : f32
    %680 = vector.broadcast %cst_221 : f32 to vector<1x32xf32>
    %681 = vector.extract_strided_slice %4 {offsets = [0, 32], sizes = [1, 224], strides = [1, 1]} : vector<1x256xf32> to vector<1x224xf32>
    %682 = tpu.concatenate %681, %680 in 1 : vector<1x224xf32>, vector<1x32xf32> -> vector<1x256xf32>
    %c1_222 = arith.constant 1 : index
    %c35_223 = arith.constant 35 : index
    %683 = memref.load %arg3[%c1_222, %c35_223] : memref<2x49xf32, #tpu.memory_space<smem>>
    %684 = vector.broadcast %683 : f32 to vector<1x256xf32>
    %685 = arith.mulf %684, %5 : vector<1x256xf32>
    %cst_224 = arith.constant 0.000000e+00 : f32
    %686 = vector.broadcast %cst_224 : f32 to vector<1x3xf32>
    %687 = vector.extract_strided_slice %682 {offsets = [0, 0], sizes = [1, 253], strides = [1, 1]} : vector<1x256xf32> to vector<1x253xf32>
    %688 = tpu.concatenate %686, %687 in 1 : vector<1x3xf32>, vector<1x253xf32> -> vector<1x256xf32>
    %689 = arith.mulf %685, %688 : vector<1x256xf32>
    %690 = arith.addf %679, %689 : vector<1x256xf32>
    %c1_225 = arith.constant 1 : index
    %c36_226 = arith.constant 36 : index
    %691 = memref.load %arg3[%c1_225, %c36_226] : memref<2x49xf32, #tpu.memory_space<smem>>
    %692 = vector.broadcast %691 : f32 to vector<1x256xf32>
    %693 = arith.mulf %692, %6 : vector<1x256xf32>
    %cst_227 = arith.constant 0.000000e+00 : f32
    %694 = vector.broadcast %cst_227 : f32 to vector<1x2xf32>
    %695 = vector.extract_strided_slice %682 {offsets = [0, 0], sizes = [1, 254], strides = [1, 1]} : vector<1x256xf32> to vector<1x254xf32>
    %696 = tpu.concatenate %694, %695 in 1 : vector<1x2xf32>, vector<1x254xf32> -> vector<1x256xf32>
    %697 = arith.mulf %693, %696 : vector<1x256xf32>
    %698 = arith.addf %690, %697 : vector<1x256xf32>
    %c1_228 = arith.constant 1 : index
    %c37_229 = arith.constant 37 : index
    %699 = memref.load %arg3[%c1_228, %c37_229] : memref<2x49xf32, #tpu.memory_space<smem>>
    %700 = vector.broadcast %699 : f32 to vector<1x256xf32>
    %701 = arith.mulf %700, %7 : vector<1x256xf32>
    %cst_230 = arith.constant 0.000000e+00 : f32
    %702 = vector.broadcast %cst_230 : f32 to vector<1x1xf32>
    %703 = vector.extract_strided_slice %682 {offsets = [0, 0], sizes = [1, 255], strides = [1, 1]} : vector<1x256xf32> to vector<1x255xf32>
    %704 = tpu.concatenate %702, %703 in 1 : vector<1x1xf32>, vector<1x255xf32> -> vector<1x256xf32>
    %705 = arith.mulf %701, %704 : vector<1x256xf32>
    %706 = arith.addf %698, %705 : vector<1x256xf32>
    %c1_231 = arith.constant 1 : index
    %c38_232 = arith.constant 38 : index
    %707 = memref.load %arg3[%c1_231, %c38_232] : memref<2x49xf32, #tpu.memory_space<smem>>
    %708 = vector.broadcast %707 : f32 to vector<1x256xf32>
    %709 = arith.mulf %708, %8 : vector<1x256xf32>
    %710 = arith.mulf %709, %682 : vector<1x256xf32>
    %711 = arith.addf %706, %710 : vector<1x256xf32>
    %c1_233 = arith.constant 1 : index
    %c39_234 = arith.constant 39 : index
    %712 = memref.load %arg3[%c1_233, %c39_234] : memref<2x49xf32, #tpu.memory_space<smem>>
    %713 = vector.broadcast %712 : f32 to vector<1x256xf32>
    %714 = arith.mulf %713, %9 : vector<1x256xf32>
    %cst_235 = arith.constant 0.000000e+00 : f32
    %715 = vector.broadcast %cst_235 : f32 to vector<1x1xf32>
    %716 = vector.extract_strided_slice %682 {offsets = [0, 1], sizes = [1, 255], strides = [1, 1]} : vector<1x256xf32> to vector<1x255xf32>
    %717 = tpu.concatenate %716, %715 in 1 : vector<1x255xf32>, vector<1x1xf32> -> vector<1x256xf32>
    %718 = arith.mulf %714, %717 : vector<1x256xf32>
    %719 = arith.addf %711, %718 : vector<1x256xf32>
    %c1_236 = arith.constant 1 : index
    %c40_237 = arith.constant 40 : index
    %720 = memref.load %arg3[%c1_236, %c40_237] : memref<2x49xf32, #tpu.memory_space<smem>>
    %721 = vector.broadcast %720 : f32 to vector<1x256xf32>
    %722 = arith.mulf %721, %10 : vector<1x256xf32>
    %cst_238 = arith.constant 0.000000e+00 : f32
    %723 = vector.broadcast %cst_238 : f32 to vector<1x2xf32>
    %724 = vector.extract_strided_slice %682 {offsets = [0, 2], sizes = [1, 254], strides = [1, 1]} : vector<1x256xf32> to vector<1x254xf32>
    %725 = tpu.concatenate %724, %723 in 1 : vector<1x254xf32>, vector<1x2xf32> -> vector<1x256xf32>
    %726 = arith.mulf %722, %725 : vector<1x256xf32>
    %727 = arith.addf %719, %726 : vector<1x256xf32>
    %c1_239 = arith.constant 1 : index
    %c41_240 = arith.constant 41 : index
    %728 = memref.load %arg3[%c1_239, %c41_240] : memref<2x49xf32, #tpu.memory_space<smem>>
    %729 = vector.broadcast %728 : f32 to vector<1x256xf32>
    %730 = arith.mulf %729, %11 : vector<1x256xf32>
    %cst_241 = arith.constant 0.000000e+00 : f32
    %731 = vector.broadcast %cst_241 : f32 to vector<1x3xf32>
    %732 = vector.extract_strided_slice %682 {offsets = [0, 3], sizes = [1, 253], strides = [1, 1]} : vector<1x256xf32> to vector<1x253xf32>
    %733 = tpu.concatenate %732, %731 in 1 : vector<1x253xf32>, vector<1x3xf32> -> vector<1x256xf32>
    %734 = arith.mulf %730, %733 : vector<1x256xf32>
    %735 = arith.addf %727, %734 : vector<1x256xf32>
    %cst_242 = arith.constant 0.000000e+00 : f32
    %736 = vector.broadcast %cst_242 : f32 to vector<1x48xf32>
    %737 = vector.extract_strided_slice %4 {offsets = [0, 48], sizes = [1, 208], strides = [1, 1]} : vector<1x256xf32> to vector<1x208xf32>
    %738 = tpu.concatenate %737, %736 in 1 : vector<1x208xf32>, vector<1x48xf32> -> vector<1x256xf32>
    %c1_243 = arith.constant 1 : index
    %c42_244 = arith.constant 42 : index
    %739 = memref.load %arg3[%c1_243, %c42_244] : memref<2x49xf32, #tpu.memory_space<smem>>
    %740 = vector.broadcast %739 : f32 to vector<1x256xf32>
    %741 = arith.mulf %740, %5 : vector<1x256xf32>
    %cst_245 = arith.constant 0.000000e+00 : f32
    %742 = vector.broadcast %cst_245 : f32 to vector<1x3xf32>
    %743 = vector.extract_strided_slice %738 {offsets = [0, 0], sizes = [1, 253], strides = [1, 1]} : vector<1x256xf32> to vector<1x253xf32>
    %744 = tpu.concatenate %742, %743 in 1 : vector<1x3xf32>, vector<1x253xf32> -> vector<1x256xf32>
    %745 = arith.mulf %741, %744 : vector<1x256xf32>
    %746 = arith.addf %735, %745 : vector<1x256xf32>
    %c1_246 = arith.constant 1 : index
    %c43_247 = arith.constant 43 : index
    %747 = memref.load %arg3[%c1_246, %c43_247] : memref<2x49xf32, #tpu.memory_space<smem>>
    %748 = vector.broadcast %747 : f32 to vector<1x256xf32>
    %749 = arith.mulf %748, %6 : vector<1x256xf32>
    %cst_248 = arith.constant 0.000000e+00 : f32
    %750 = vector.broadcast %cst_248 : f32 to vector<1x2xf32>
    %751 = vector.extract_strided_slice %738 {offsets = [0, 0], sizes = [1, 254], strides = [1, 1]} : vector<1x256xf32> to vector<1x254xf32>
    %752 = tpu.concatenate %750, %751 in 1 : vector<1x2xf32>, vector<1x254xf32> -> vector<1x256xf32>
    %753 = arith.mulf %749, %752 : vector<1x256xf32>
    %754 = arith.addf %746, %753 : vector<1x256xf32>
    %c1_249 = arith.constant 1 : index
    %c44_250 = arith.constant 44 : index
    %755 = memref.load %arg3[%c1_249, %c44_250] : memref<2x49xf32, #tpu.memory_space<smem>>
    %756 = vector.broadcast %755 : f32 to vector<1x256xf32>
    %757 = arith.mulf %756, %7 : vector<1x256xf32>
    %cst_251 = arith.constant 0.000000e+00 : f32
    %758 = vector.broadcast %cst_251 : f32 to vector<1x1xf32>
    %759 = vector.extract_strided_slice %738 {offsets = [0, 0], sizes = [1, 255], strides = [1, 1]} : vector<1x256xf32> to vector<1x255xf32>
    %760 = tpu.concatenate %758, %759 in 1 : vector<1x1xf32>, vector<1x255xf32> -> vector<1x256xf32>
    %761 = arith.mulf %757, %760 : vector<1x256xf32>
    %762 = arith.addf %754, %761 : vector<1x256xf32>
    %c1_252 = arith.constant 1 : index
    %c45_253 = arith.constant 45 : index
    %763 = memref.load %arg3[%c1_252, %c45_253] : memref<2x49xf32, #tpu.memory_space<smem>>
    %764 = vector.broadcast %763 : f32 to vector<1x256xf32>
    %765 = arith.mulf %764, %8 : vector<1x256xf32>
    %766 = arith.mulf %765, %738 : vector<1x256xf32>
    %767 = arith.addf %762, %766 : vector<1x256xf32>
    %c1_254 = arith.constant 1 : index
    %c46_255 = arith.constant 46 : index
    %768 = memref.load %arg3[%c1_254, %c46_255] : memref<2x49xf32, #tpu.memory_space<smem>>
    %769 = vector.broadcast %768 : f32 to vector<1x256xf32>
    %770 = arith.mulf %769, %9 : vector<1x256xf32>
    %cst_256 = arith.constant 0.000000e+00 : f32
    %771 = vector.broadcast %cst_256 : f32 to vector<1x1xf32>
    %772 = vector.extract_strided_slice %738 {offsets = [0, 1], sizes = [1, 255], strides = [1, 1]} : vector<1x256xf32> to vector<1x255xf32>
    %773 = tpu.concatenate %772, %771 in 1 : vector<1x255xf32>, vector<1x1xf32> -> vector<1x256xf32>
    %774 = arith.mulf %770, %773 : vector<1x256xf32>
    %775 = arith.addf %767, %774 : vector<1x256xf32>
    %c1_257 = arith.constant 1 : index
    %c47_258 = arith.constant 47 : index
    %776 = memref.load %arg3[%c1_257, %c47_258] : memref<2x49xf32, #tpu.memory_space<smem>>
    %777 = vector.broadcast %776 : f32 to vector<1x256xf32>
    %778 = arith.mulf %777, %10 : vector<1x256xf32>
    %cst_259 = arith.constant 0.000000e+00 : f32
    %779 = vector.broadcast %cst_259 : f32 to vector<1x2xf32>
    %780 = vector.extract_strided_slice %738 {offsets = [0, 2], sizes = [1, 254], strides = [1, 1]} : vector<1x256xf32> to vector<1x254xf32>
    %781 = tpu.concatenate %780, %779 in 1 : vector<1x254xf32>, vector<1x2xf32> -> vector<1x256xf32>
    %782 = arith.mulf %778, %781 : vector<1x256xf32>
    %783 = arith.addf %775, %782 : vector<1x256xf32>
    %c1_260 = arith.constant 1 : index
    %c48_261 = arith.constant 48 : index
    %784 = memref.load %arg3[%c1_260, %c48_261] : memref<2x49xf32, #tpu.memory_space<smem>>
    %785 = vector.broadcast %784 : f32 to vector<1x256xf32>
    %786 = arith.mulf %785, %11 : vector<1x256xf32>
    %cst_262 = arith.constant 0.000000e+00 : f32
    %787 = vector.broadcast %cst_262 : f32 to vector<1x3xf32>
    %788 = vector.extract_strided_slice %738 {offsets = [0, 3], sizes = [1, 253], strides = [1, 1]} : vector<1x256xf32> to vector<1x253xf32>
    %789 = tpu.concatenate %788, %787 in 1 : vector<1x253xf32>, vector<1x3xf32> -> vector<1x256xf32>
    %790 = arith.mulf %786, %789 : vector<1x256xf32>
    %791 = arith.addf %783, %790 : vector<1x256xf32>
    %792 = arith.negf %791 : vector<1x256xf32>
    %793 = math.exp %792 : vector<1x256xf32>
    %cst_263 = arith.constant 1.000000e+00 : f32
    %794 = vector.broadcast %cst_263 : f32 to vector<1x256xf32>
    %795 = arith.addf %794, %793 : vector<1x256xf32>
    %796 = arith.divf %794, %795 : vector<1x256xf32>
    %797 = vector.shape_cast %796 : vector<1x256xf32> to vector<1x1x256xf32>
    %798 = vector.broadcast %797 : vector<1x1x256xf32> to vector<1x4x256xf32>
    %799 = arith.mulf %0, %798 : vector<1x4x256xf32>
    %c0_264 = arith.constant 0 : index
    %c0_265 = arith.constant 0 : index
    %c0_266 = arith.constant 0 : index
    %800 = vector.load %arg5[%c0_264, %c0_265, %c0_266] : memref<1x4x256xf32, #tpu.memory_space<vmem>>, vector<1x4x256xf32>
    tpu.vector_store %arg5[%c0_264, %c0_265, %c0_266], %799 {strides = array<i32>} : memref<1x4x256xf32, #tpu.memory_space<vmem>>, vector<1x4x256xf32>,
    return
  }
  func.func @transform_0(%arg0: i32) -> (i32, i32, i32) {
    %c0_i32 = arith.constant 0 : i32
    %c0_i32_0 = arith.constant 0 : i32
    %c0_i32_1 = arith.constant 0 : i32
    return %arg0, %c0_i32, %c0_i32_0 : i32, i32, i32
  }
  func.func @transform_1(%arg0: i32) -> (i32, i32) {
    %c0_i32 = arith.constant 0 : i32
    %c0_i32_0 = arith.constant 0 : i32
    %c0_i32_1 = arith.constant 0 : i32
    return %c0_i32, %c0_i32_0 : i32, i32
  }
  func.func @transform_2(%arg0: i32) -> (i32, i32) {
    %c0_i32 = arith.constant 0 : i32
    %c0_i32_0 = arith.constant 0 : i32
    %c0_i32_1 = arith.constant 0 : i32
    return %c0_i32, %c0_i32_0 : i32, i32
  }
  func.func @transform_3(%arg0: i32) -> i32 {
    %c0_i32 = arith.constant 0 : i32
    %c0_i32_0 = arith.constant 0 : i32
    return %c0_i32 : i32
  }
  func.func @transform_4(%arg0: i32) -> (i32, i32, i32) {
    %c0_i32 = arith.constant 0 : i32
    %c0_i32_0 = arith.constant 0 : i32
    %c0_i32_1 = arith.constant 0 : i32
    return %arg0, %c0_i32, %c0_i32_0 : i32, i32, i32
  }
}

</mosaic_0001>

<llo_original>
// kernel: tpu_custom_call.1
$region0: #{tpu_custom_call.1}
  #allocation0 [shape = 'u32[]', space=smem, size = 0x4, offset = 0x4, fixed_abs, tag = 'smem constant byte address 0x4 - core index']
  #allocation1 [shape = 'u32[144,128]{1,0:T(1,128)}', space=vmem, size = 0x12000, scoped, tag = 'internal scratch']
  #allocation2 [shape = 'f32[1]{0:T(128)S(6)}', space=smem, size = 0x200, scoped, tag = 'scoped memory for tpu_custom_call.1']
  %s0 = inlined_call_operand.hbm [shape: f32[2,4,256], index: 0, kind: input, shape index: {}]
  %s1 = inlined_call_operand.hbm [shape: f32[7,256], index: 1, kind: input, shape index: {}]
  %s2 = inlined_call_operand.vmem [shape: f32[2,49], index: 2, kind: input, shape index: {}]
  %s3 = inlined_call_operand.<no memory space> [shape: f32[1], index: 3, kind: input, shape index: {}]
  %s4 = inlined_call_operand.hbm [shape: f32[2,4,256], index: 4, kind: output, shape index: {}]
  %s5 = sld [smem:[#allocation0]]
  $region61: #{tpu_custom_call.1} parent=0
    _
  %s7 = ssub.s32 1, %s5
  %s8 = scalar_select 0, %s7, %s5
  %9 = sst [smem:[#allocation2]] %s3
  $region1: #{tpu_custom_call.1} parent=0
    #allocation3 [shape = 'u8[8192]{0}', space=vmem, size = 0x2000, scoped, tag = 'input window, operand 0']
    #allocation4 [shape = 's32[2]{0}', space=sflag, size = 0x8, scoped, tag = 'scoped memory for tpu_custom_call.1']
    #allocation5 [shape = 's32[2]{0}', space=sflag, size = 0x8, scoped, tag = 'scoped memory for tpu_custom_call.1']
    #allocation6 [shape = 's32[2]{0}', space=sflag, size = 0x8, scoped, tag = 'scoped memory for tpu_custom_call.1']
    #allocation7 [shape = 'u8[8192]{0}', space=vmem, size = 0x2000, scoped, tag = 'input window, operand 1, single buffered']
    #allocation8 [shape = 's32[1]{0}', space=sflag, size = 0x4, scoped, tag = 'scoped memory for tpu_custom_call.1']
    #allocation9 [shape = 'u8[1024]{0}', space=smem, size = 0x400, scoped, tag = 'input window, operand 2, single buffered']
    #allocation10 [shape = 'u8[8192]{0}', space=vmem, size = 0x2000, scoped, tag = 'output window, operand 0']
    %10 = vsyncpa [#allocation4], 0
    %s11 = scalar_lea.sflag [#allocation4], 1
    %12 = vsyncpa %s11, 0
    %13 = vsyncpa [#allocation8], 0
    %14 = vsyncpa [#allocation6], 0
    %15 = vsyncpa [#allocation5], 0
    %s16 = scalar_lea.sflag [#allocation5], 1
    %17 = vsyncpa %s16, 0
    loop: start=0, step=1, limit=4
    $region2: #{tpu_custom_call.1} parent=1 // loop_pre_header
      _
    $region3: #{tpu_custom_call.1} parent=1 // loop_header
      %s19 = sphi 0, %s23
      %p20 = scmp.ge.s32.totalorder %s19, 4
      %s29 = sphi 0, %s31
      %s32 = sphi 0, %s29
      %s33 = sphi 0, %s32
      %s49 = sphi 0, %s33
      %s53 = sphi 0, %s53
      %s55 = sphi 0, %s53
      %s56 = sphi 0, %s55
      %s70 = sphi 0, %s56
      %s74 = sphi 0, %s74
      %s76 = sphi 0, %s74
      %s77 = sphi 0, %s76
      %s91 = sphi 0, %s77
      %s95 = sphi 0, %s95
      %s97 = sphi 0, %s95
      %s98 = sphi 0, %s97
      %s112 = sphi 0, %s98
      %s118 = sphi 0, %s120
      %s121 = sphi 0, %s118
      %s122 = sphi 0, %s121
      %s138 = sphi 0, %s122
    $region4: #{tpu_custom_call.1} parent=1 // loop_header_branch
      %22 = sbr.rel (%p20) target = $region8
    $region5: #{tpu_custom_call.1} parent=1 // loop_body
      %s24 = ssub.s32 %s19, 1
      %s25 = ssub.s32 %s19, 2
      %s26 = sadd.s32 %s19, 1
      %s27 = ssub.s32 %s19, %s26
      %p28 = scmp.eq.s32.totalorder %s27, 0
      %s30 = sadd.s32 %s29, 1
      %s31 = scalar_select %p28, %s29, %s30
      %p34 = pneg %p28
      %p35 = scmp.eq.s32.totalorder %s19, 1
      %p36 = por %p34, %p35
      %p37 = scmp.ne.s32.totalorder %s29, %s32
      %p38 = scmp.eq.s32.totalorder %s19, 0
      %p39 = por %p37, %p38
      %p40 = scmp.ne.s32.totalorder %s29, %s32
      %p41 = scmp.eq.s32.totalorder %s24, 1
      %p42 = por %p40, %p41
      %p43 = scmp.ne.s32.totalorder %s32, %s33
      %p44 = scmp.eq.s32.totalorder %s24, 0
      %p45 = por %p43, %p44
      %p46 = scmp.ne.s32.totalorder %s32, %s33
      %p47 = scmp.eq.s32.totalorder %s25, 1
      %p48 = por %p46, %p47
      %p50 = scmp.ne.s32.totalorder %s33, %s49
      %p51 = scmp.eq.s32.totalorder %s25, 0
      %p52 = por %p50, %p51
      %s54 = sadd.s32 %s53, 1
      %p57 = scmp.eq.s32.totalorder %s19, 1
      %p58 = scmp.ne.s32.totalorder %s53, %s55
      %p59 = scmp.eq.s32.totalorder %s19, 0
      %p60 = por %p58, %p59
      %p61 = scmp.ne.s32.totalorder %s53, %s55
      %p62 = scmp.eq.s32.totalorder %s24, 1
      %p63 = por %p61, %p62
      %p64 = scmp.ne.s32.totalorder %s55, %s56
      %p65 = scmp.eq.s32.totalorder %s24, 0
      %p66 = por %p64, %p65
      %p67 = scmp.ne.s32.totalorder %s55, %s56
      %p68 = scmp.eq.s32.totalorder %s25, 1
      %p69 = por %p67, %p68
      %p71 = scmp.ne.s32.totalorder %s56, %s70
      %p72 = scmp.eq.s32.totalorder %s25, 0
      %p73 = por %p71, %p72
      %s75 = sadd.s32 %s74, 1
      %p78 = scmp.eq.s32.totalorder %s19, 1
      %p79 = scmp.ne.s32.totalorder %s74, %s76
      %p80 = scmp.eq.s32.totalorder %s19, 0
      %p81 = por %p79, %p80
      %p82 = scmp.ne.s32.totalorder %s74, %s76
      %p83 = scmp.eq.s32.totalorder %s24, 1
      %p84 = por %p82, %p83
      %p85 = scmp.ne.s32.totalorder %s76, %s77
      %p86 = scmp.eq.s32.totalorder %s24, 0
      %p87 = por %p85, %p86
      %p88 = scmp.ne.s32.totalorder %s76, %s77
      %p89 = scmp.eq.s32.totalorder %s25, 1
      %p90 = por %p88, %p89
      %p92 = scmp.ne.s32.totalorder %s77, %s91
      %p93 = scmp.eq.s32.totalorder %s25, 0
      %p94 = por %p92, %p93
      %s96 = sadd.s32 %s95, 1
      %p99 = scmp.eq.s32.totalorder %s19, 1
      %p100 = scmp.ne.s32.totalorder %s95, %s97
      %p101 = scmp.eq.s32.totalorder %s19, 0
      %p102 = por %p100, %p101
      %p103 = scmp.ne.s32.totalorder %s95, %s97
      %p104 = scmp.eq.s32.totalorder %s24, 1
      %p105 = por %p103, %p104
      %p106 = scmp.ne.s32.totalorder %s97, %s98
      %p107 = scmp.eq.s32.totalorder %s24, 0
      %p108 = por %p106, %p107
      %p109 = scmp.ne.s32.totalorder %s97, %s98
      %p110 = scmp.eq.s32.totalorder %s25, 1
      %p111 = por %p109, %p110
      %p113 = scmp.ne.s32.totalorder %s98, %s112
      %p114 = scmp.eq.s32.totalorder %s25, 0
      %p115 = por %p113, %p114
      %s116 = ssub.s32 %s19, %s26
      %p117 = scmp.eq.s32.totalorder %s116, 0
      %s119 = sadd.s32 %s118, 1
      %s120 = scalar_select %p117, %s118, %s119
      %p123 = pneg %p117
      %p124 = scmp.eq.s32.totalorder %s19, 1
      %p125 = por %p123, %p124
      %p126 = scmp.ne.s32.totalorder %s118, %s121
      %p127 = scmp.eq.s32.totalorder %s19, 0
      %p128 = por %p126, %p127
      %p129 = scmp.ne.s32.totalorder %s118, %s121
      %p130 = scmp.eq.s32.totalorder %s24, 1
      %p131 = por %p129, %p130
      %p132 = scmp.ne.s32.totalorder %s121, %s122
      %p133 = scmp.eq.s32.totalorder %s24, 0
      %p134 = por %p132, %p133
      %p135 = scmp.ne.s32.totalorder %s121, %s122
      %p136 = scmp.eq.s32.totalorder %s25, 1
      %p137 = por %p135, %p136
      %p139 = scmp.ne.s32.totalorder %s122, %s138
      %p140 = scmp.eq.s32.totalorder %s25, 0
      %p141 = por %p139, %p140
      %p142 = scmp.le.s32.totalorder 1, %s19
      %p143 = scmp.lt.s32.totalorder %s19, 3
      %p144 = pnand %p142, %p143
      %p145 = pneg %p144
      // Predicated region
      $region9: #{tpu_custom_call.1} parent=5 // pred_check
        _
      $region10: #{tpu_custom_call.1} parent=5 // pred_check_branch
        %147 = sbr.rel (%p144) target = $region12
      $region11: #{tpu_custom_call.1} parent=5 // pred_region
        %s148 = ssub.s32 %s19, 1
        // Predicated region
        $region13: #{tpu_custom_call.1} parent=11 // pred_check
          %p149 = pneg %p66
        $region14: #{tpu_custom_call.1} parent=11 // pred_check_branch
          %151 = sbr.rel (%p149) target = $region16
        $region15: #{tpu_custom_call.1} parent=11 // pred_region
          %s153 = ssub.s32 256, 256
          %154 = vsyncadd [#allocation8], %s153
          %s156 = sshll.u32 [#allocation7], 4
          %s157 = int_to_ptr.vmem [resolvable:$true] %s156
          %159 = dma.hbm_to_vmem [thread:$0]  %s1, 256, %s157, [#allocation8]
        $region16: #{tpu_custom_call.1} parent=11 // pred_fallthru
          _
        // Predicated region
        $region17: #{tpu_custom_call.1} parent=11 // pred_check
          %p160 = pneg %p87
        $region18: #{tpu_custom_call.1} parent=11 // pred_check_branch
          %162 = sbr.rel (%p160) target = $region20
        $region19: #{tpu_custom_call.1} parent=11 // pred_region
          %s164 = ssub.s32 32, 32
          %165 = vsyncadd [#allocation6], %s164
          %s167 = sshll.u32 %s2, 4
          %s168 = int_to_ptr.vmem [resolvable:$true] %s167
          %170 = dma.vmem_to_smem %s168, 32, [#allocation9], [#allocation6]
        $region20: #{tpu_custom_call.1} parent=11 // pred_fallthru
          _
        // Predicated region
        $region21: #{tpu_custom_call.1} parent=11 // pred_check
          %p171 = pneg %p108
        $region22: #{tpu_custom_call.1} parent=11 // pred_check_branch
          %173 = sbr.rel (%p171) target = $region24
        $region23: #{tpu_custom_call.1} parent=11 // pred_region
          _
        $region24: #{tpu_custom_call.1} parent=11 // pred_fallthru
          _
      $region12: #{tpu_custom_call.1} parent=5 // pred_fallthru
        _
      %p174 = scmp.lt.s32.totalorder %s19, 2
      // Predicated region
      $region25: #{tpu_custom_call.1} parent=5 // pred_check
        %p175 = pneg %p174
      $region26: #{tpu_custom_call.1} parent=5 // pred_check_branch
        %177 = sbr.rel (%p175) target = $region28
      $region27: #{tpu_custom_call.1} parent=5 // pred_region
        // Predicated region
        $region29: #{tpu_custom_call.1} parent=27 // pred_check
          %p178 = pneg %p39
        $region30: #{tpu_custom_call.1} parent=27 // pred_check_branch
          %180 = sbr.rel (%p178) target = $region32
        $region31: #{tpu_custom_call.1} parent=27 // pred_region
          %s181 = sand.u32 %s29, 1
          %s182 = scalar_lea.sflag [#allocation4], %s181
          %s183 = sand.u32 %s29, 1
          %s184 = smul.addr %s183, 8
          %s185 = scalar_lea.vmem [#allocation3], %s184
          %s187 = ssub.s32 128, 128
          %188 = vsyncadd %s182, %s187
          %s189 = smul.addr %s19, 2
          %s190 = smul.addr %s189, 64
          %s191 = scalar_lea.hbm %s0, %s190
          %s193 = sshll.u32 %s185, 4
          %s194 = int_to_ptr.vmem [resolvable:$true] %s193
          %196 = dma.hbm_to_vmem [thread:$0]  %s191, 128, %s194, %s182
        $region32: #{tpu_custom_call.1} parent=27 // pred_fallthru
          _
      $region28: #{tpu_custom_call.1} parent=5 // pred_fallthru
        _
      %p197 = scmp.le.s32.totalorder 1, %s19
      %p198 = scmp.lt.s32.totalorder %s19, 3
      %p199 = pnand %p197, %p198
      %p200 = pneg %p199
      // Predicated region
      $region33: #{tpu_custom_call.1} parent=5 // pred_check
        _
      $region34: #{tpu_custom_call.1} parent=5 // pred_check_branch
        %202 = sbr.rel (%p199) target = $region36
      $region35: #{tpu_custom_call.1} parent=5 // pred_region
        %s203 = ssub.s32 %s19, 1
        %s204 = sand.u32 %s32, 1
        %s205 = scalar_lea.sflag [#allocation4], %s204
        %s206 = sand.u32 %s32, 1
        %s207 = smul.addr %s206, 8
        %s208 = scalar_lea.vmem [#allocation3], %s207
        // Predicated region
        $region37: #{tpu_custom_call.1} parent=35 // pred_check
          %p209 = pneg %p45
        $region38: #{tpu_custom_call.1} parent=35 // pred_check_branch
          %211 = sbr.rel (%p209) target = $region40
        $region39: #{tpu_custom_call.1} parent=35 // pred_region
          %212 = dma.done %s205, 128
        $region40: #{tpu_custom_call.1} parent=35 // pred_fallthru
          _
        // Predicated region
        $region41: #{tpu_custom_call.1} parent=35 // pred_check
          %p213 = pneg %p66
        $region42: #{tpu_custom_call.1} parent=35 // pred_check_branch
          %215 = sbr.rel (%p213) target = $region44
        $region43: #{tpu_custom_call.1} parent=35 // pred_region
          %216 = dma.done [#allocation8], 256
        $region44: #{tpu_custom_call.1} parent=35 // pred_fallthru
          _
        // Predicated region
        $region45: #{tpu_custom_call.1} parent=35 // pred_check
          %p217 = pneg %p87
        $region46: #{tpu_custom_call.1} parent=35 // pred_check_branch
          %219 = sbr.rel (%p217) target = $region48
        $region47: #{tpu_custom_call.1} parent=35 // pred_region
          %220 = dma.done [#allocation6], 32
        $region48: #{tpu_custom_call.1} parent=35 // pred_fallthru
          _
        %221 = sfence
        %s222 = sand.u32 %s32, 1
        %s223 = scalar_lea.sflag [#allocation4], %s222
        %s224 = sand.u32 %s32, 1
        %s225 = smul.addr %s224, 8
        %s226 = scalar_lea.vmem [#allocation3], %s225
        %p227 = pneg %p45
        %p228 = pneg %p42
        %p229 = pneg %p66
        %p230 = pneg %p63
        %p231 = pneg %p87
        %p232 = pneg %p84
        %p233 = pneg %p108
        %p234 = pneg %p105
        %p235 = pneg %p134
        %p236 = pneg %p131
        %s237 = sand.u32 %s121, 1
        %s238 = scalar_lea.sflag [#allocation5], %s237
        %s239 = sand.u32 %s121, 1
        %s240 = smul.addr %s239, 8
        %s241 = scalar_lea.vmem [#allocation10], %s240
        %v242 = vld [vmem:[%s208] sm:$0xff]
        %v244 = vcombine.high %v242, %v242
        %vm246 = vcmask 1043456
        %v247 = vsel %vm246, %v242, -inf
        %v248 = vrot.slane %v247, 4
        %v249 = vmax.f32 %v247, %v248
        %v250 = vrot.slane %v249, 2
        %v251 = vmax.f32 %v249, %v250
        %v252 = vrot.slane %v251, 1
        %v253 = vmax.f32 %v251, %v252
        %v254 = vsel %vm246, %v244, -inf
        %v255 = vrot.slane %v254, 4
        %v256 = vmax.f32 %v254, %v255
        %v257 = vrot.slane %v256, 2
        %v258 = vmax.f32 %v256, %v257
        %v259 = vrot.slane %v258, 1
        %v260 = vmax.f32 %v258, %v259
        %v261 = vsel %vm246, %v242, 0.0
        %v262 = vrot.slane %v261, 4
        %v263 = vadd.f32 %v261, %v262
        %v264 = vrot.slane %v263, 2
        %v265 = vadd.f32 %v263, %v264
        %v266 = vrot.slane %v265, 1
        %v267 = vadd.f32 %v265, %v266
        %v268 = vsel %vm246, %v244, 0.0
        %v269 = vrot.slane %v268, 4
        %v270 = vadd.f32 %v268, %v269
        %v271 = vrot.slane %v270, 2
        %v272 = vadd.f32 %v270, %v271
        %v273 = vrot.slane %v272, 1
        %v274 = vadd.f32 %v272, %v273
        %v275 = vmul.f32 %v267, 0.25
        %v276 = vmul.f32 %v274, 0.25
        %v277 = vld [vmem:[#allocation7] ss:$8 sm:$0x3]
        %s278 = scalar_lea.vmem [#allocation7], 1
        %v279 = vld [vmem:[%s278] ss:$8 sm:$0x3]
        %s280 = scalar_lea.vmem [#allocation7], 2
        %v281 = vld [vmem:[%s280] ss:$8 sm:$0x3]
        %s282 = scalar_lea.vmem [#allocation7], 3
        %v283 = vld [vmem:[%s282] ss:$8 sm:$0x3]
        %s284 = scalar_lea.vmem [#allocation7], 4
        %v285 = vld [vmem:[%s284] ss:$8 sm:$0x3]
        %s286 = scalar_lea.vmem [#allocation7], 5
        %v287 = vld [vmem:[%s286] ss:$8 sm:$0x3]
        %s288 = scalar_lea.vmem [#allocation7], 6
        %v289 = vld [vmem:[%s288] ss:$8 sm:$0x3]
        %s290 = sld [smem:[#allocation2]]
        %v291 = vstv %s290
        %294 = vrot.lane.b32.xlu0 %v253, 48
        %v295 = vpop.permute.xlu0 %294
        %296 = vrot.lane.b32.xlu0 %v260, 48
        %v297 = vpop.permute.xlu0 %296
        %vm298 = vcmask 392192
        %v299 = vsel %vm298, %v295, %v297
        %v301 = vsel %vm298, 0.0, %v295
        %s302 = sld [smem:[#allocation9]]
        %v303 = vstv %s302
        %v304 = vmul.f32 %v303, %v277
        %306 = vrot.lane.b32.xlu0 %v301, 3
        %v307 = vpop.permute.xlu0 %306
        %308 = vrot.lane.b32.xlu0 %v299, 3
        %v309 = vpop.permute.xlu0 %308
        %vm310 = vcmask 23552
        %v311 = vsel %vm310, %v307, %v309
        %v313 = vsel %vm310, 0.0, %v307
        %v315 = vcombine.low %v313, %v311
        %v317 = vunpack.c.l.s4 1966171168
        %v318 = vunpack.c.0.s8 %v317
        %v319 = vlaneseq
        %v320 = vshrl.u32 %v319, 7
        %v321 = vsub.s32 %v318, %v320
        %v322 = vrot.slane %v315, %v321
        %v324 = vunpack.c.l.s4 1966171168
        %v325 = vunpack.c.0.s8 %v324
        %v326 = vlaneseq
        %v327 = vshrl.u32 %v326, 7
        %v328 = vsub.s32 %v325, %v327
        %v329 = vrot.slane %v322, %v328
        %v331 = vmul.f32 %v304, %v329
        %v332 = vadd.f32 %v291, %v331
        %s333 = sld [smem:[#allocation9 + $0x1]]
        %v334 = vstv %s333
        %v335 = vmul.f32 %v334, %v279
        %336 = vrot.lane.b32.xlu0 %v301, 2
        %v337 = vpop.permute.xlu0 %336
        %338 = vrot.lane.b32.xlu0 %v299, 2
        %v339 = vpop.permute.xlu0 %338
        %vm340 = vcmask 15360
        %v341 = vsel %vm340, %v337, %v339
        %v343 = vsel %vm340, 0.0, %v337
        %v345 = vcombine.low %v343, %v341
        %v347 = vunpack.c.l.s4 1966171168
        %v348 = vunpack.c.0.s8 %v347
        %v349 = vlaneseq
        %v350 = vshrl.u32 %v349, 7
        %v351 = vsub.s32 %v348, %v350
        %v352 = vrot.slane %v345, %v351
        %v354 = vunpack.c.l.s4 1966171168
        %v355 = vunpack.c.0.s8 %v354
        %v356 = vlaneseq
        %v357 = vshrl.u32 %v356, 7
        %v358 = vsub.s32 %v355, %v357
        %v359 = vrot.slane %v352, %v358
        %v361 = vmul.f32 %v335, %v359
        %v362 = vadd.f32 %v332, %v361
        %s363 = sld [smem:[#allocation9 + $0x2]]
        %v364 = vstv %s363
        %v365 = vmul.f32 %v364, %v281
        %366 = vrot.lane.b32.xlu0 %v301, 1
        %v367 = vpop.permute.xlu0 %366
        %368 = vrot.lane.b32.xlu0 %v299, 1
        %v369 = vpop.permute.xlu0 %368
        %vm370 = vcmask 7168
        %v371 = vsel %vm370, %v367, %v369
        %v373 = vsel %vm370, 0.0, %v367
        %v375 = vcombine.low %v373, %v371
        %v377 = vunpack.c.l.s4 1966171168
        %v378 = vunpack.c.0.s8 %v377
        %v379 = vlaneseq
        %v380 = vshrl.u32 %v379, 7
        %v381 = vsub.s32 %v378, %v380
        %v382 = vrot.slane %v375, %v381
        %v384 = vunpack.c.l.s4 1966171168
        %v385 = vunpack.c.0.s8 %v384
        %v386 = vlaneseq
        %v387 = vshrl.u32 %v386, 7
        %v388 = vsub.s32 %v385, %v387
        %v389 = vrot.slane %v382, %v388
        %v391 = vmul.f32 %v365, %v389
        %v392 = vadd.f32 %v362, %v391
        %s393 = sld [smem:[#allocation9 + $0x3]]
        %v394 = vstv %s393
        %v395 = vmul.f32 %v394, %v283
        %v396 = vcombine.low %v301, %v299
        %v398 = vunpack.c.l.s4 1966171168
        %v399 = vunpack.c.0.s8 %v398
        %v400 = vlaneseq
        %v401 = vshrl.u32 %v400, 7
        %v402 = vsub.s32 %v399, %v401
        %v403 = vrot.slane %v396, %v402
        %v405 = vunpack.c.l.s4 1966171168
        %v406 = vunpack.c.0.s8 %v405
        %v407 = vlaneseq
        %v408 = vshrl.u32 %v407, 7
        %v409 = vsub.s32 %v406, %v408
        %v410 = vrot.slane %v403, %v409
        %v412 = vmul.f32 %v395, %v410
        %v413 = vadd.f32 %v392, %v412
        %s414 = sld [smem:[#allocation9 + $0x4]]
        %v415 = vstv %s414
        %v416 = vmul.f32 %v415, %v285
        %417 = vrot.lane.b32.xlu0 %v301, 127
        %v418 = vpop.permute.xlu0 %417
        %419 = vrot.lane.b32.xlu0 %v299, 127
        %v420 = vpop.permute.xlu0 %419
        %vm421 = vcmask 1039360
        %v422 = vsel %vm421, %v418, %v420
        %v424 = vsel %vm421, %v420, 0.0
        %v426 = vcombine.low %v422, %v424
        %v428 = vunpack.c.l.s4 1966171168
        %v429 = vunpack.c.0.s8 %v428
        %v430 = vlaneseq
        %v431 = vshrl.u32 %v430, 7
        %v432 = vsub.s32 %v429, %v431
        %v433 = vrot.slane %v426, %v432
        %v435 = vunpack.c.l.s4 1966171168
        %v436 = vunpack.c.0.s8 %v435
        %v437 = vlaneseq
        %v438 = vshrl.u32 %v437, 7
        %v439 = vsub.s32 %v436, %v438
        %v440 = vrot.slane %v433, %v439
        %v442 = vmul.f32 %v416, %v440
        %v443 = vadd.f32 %v413, %v442
        %s444 = sld [smem:[#allocation9 + $0x5]]
        %v445 = vstv %s444
        %v446 = vmul.f32 %v445, %v287
        %447 = vrot.lane.b32.xlu0 %v301, 126
        %v448 = vpop.permute.xlu0 %447
        %449 = vrot.lane.b32.xlu0 %v299, 126
        %v450 = vpop.permute.xlu0 %449
        %vm451 = vcmask 1031168
        %v452 = vsel %vm451, %v448, %v450
        %v454 = vsel %vm451, %v450, 0.0
        %v456 = vcombine.low %v452, %v454
        %v458 = vunpack.c.l.s4 1966171168
        %v459 = vunpack.c.0.s8 %v458
        %v460 = vlaneseq
        %v461 = vshrl.u32 %v460, 7
        %v462 = vsub.s32 %v459, %v461
        %v463 = vrot.slane %v456, %v462
        %v465 = vunpack.c.l.s4 1966171168
        %v466 = vunpack.c.0.s8 %v465
        %v467 = vlaneseq
        %v468 = vshrl.u32 %v467, 7
        %v469 = vsub.s32 %v466, %v468
        %v470 = vrot.slane %v463, %v469
        %v472 = vmul.f32 %v446, %v470
        %v473 = vadd.f32 %v443, %v472
        %s474 = sld [smem:[#allocation9 + $0x6]]
        %v475 = vstv %s474
        %v476 = vmul.f32 %v475, %v289
        %477 = vrot.lane.b32.xlu0 %v301, 125
        %v478 = vpop.permute.xlu0 %477
        %479 = vrot.lane.b32.xlu0 %v299, 125
        %v480 = vpop.permute.xlu0 %479
        %vm481 = vcmask 1022976
        %v482 = vsel %vm481, %v478, %v480
        %v484 = vsel %vm481, %v480, 0.0
        %v486 = vcombine.low %v482, %v484
        %v488 = vunpack.c.l.s4 1966171168
        %v489 = vunpack.c.0.s8 %v488
        %v490 = vlaneseq
        %v491 = vshrl.u32 %v490, 7
        %v492 = vsub.s32 %v489, %v491
        %v493 = vrot.slane %v486, %v492
        %v495 = vunpack.c.l.s4 1966171168
        %v496 = vunpack.c.0.s8 %v495
        %v497 = vlaneseq
        %v498 = vshrl.u32 %v497, 7
        %v499 = vsub.s32 %v496, %v498
        %v500 = vrot.slane %v493, %v499
        %v502 = vmul.f32 %v476, %v500
        %v503 = vadd.f32 %v473, %v502
        %504 = vrot.lane.b32.xlu0 %v253, 32
        %v505 = vpop.permute.xlu0 %504
        %506 = vrot.lane.b32.xlu0 %v260, 32
        %v507 = vpop.permute.xlu0 %506
        %vm508 = vcmask 261120
        %v509 = vsel %vm508, %v505, %v507
        %v511 = vsel %vm508, 0.0, %v505
        %s512 = sld [smem:[#allocation9 + $0x7]]
        %v513 = vstv %s512
        %v514 = vmul.f32 %v513, %v277
        %516 = vrot.lane.b32.xlu0 %v511, 3
        %v517 = vpop.permute.xlu0 %516
        %518 = vrot.lane.b32.xlu0 %v509, 3
        %v519 = vpop.permute.xlu0 %518
        %v520 = vsel %vm310, %v517, %v519
        %v522 = vsel %vm310, 0.0, %v517
        %v524 = vcombine.low %v522, %v520
        %v526 = vunpack.c.l.s4 1966171168
        %v527 = vunpack.c.0.s8 %v526
        %v528 = vlaneseq
        %v529 = vshrl.u32 %v528, 7
        %v530 = vsub.s32 %v527, %v529
        %v531 = vrot.slane %v524, %v530
        %v533 = vunpack.c.l.s4 1966171168
        %v534 = vunpack.c.0.s8 %v533
        %v535 = vlaneseq
        %v536 = vshrl.u32 %v535, 7
        %v537 = vsub.s32 %v534, %v536
        %v538 = vrot.slane %v531, %v537
        %v540 = vmul.f32 %v514, %v538
        %v541 = vadd.f32 %v503, %v540
        %s542 = sld [smem:[#allocation9 + $0x8]]
        %v543 = vstv %s542
        %v544 = vmul.f32 %v543, %v279
        %545 = vrot.lane.b32.xlu0 %v511, 2
        %v546 = vpop.permute.xlu0 %545
        %547 = vrot.lane.b32.xlu0 %v509, 2
        %v548 = vpop.permute.xlu0 %547
        %v549 = vsel %vm340, %v546, %v548
        %v551 = vsel %vm340, 0.0, %v546
        %v553 = vcombine.low %v551, %v549
        %v555 = vunpack.c.l.s4 1966171168
        %v556 = vunpack.c.0.s8 %v555
        %v557 = vlaneseq
        %v558 = vshrl.u32 %v557, 7
        %v559 = vsub.s32 %v556, %v558
        %v560 = vrot.slane %v553, %v559
        %v562 = vunpack.c.l.s4 1966171168
        %v563 = vunpack.c.0.s8 %v562
        %v564 = vlaneseq
        %v565 = vshrl.u32 %v564, 7
        %v566 = vsub.s32 %v563, %v565
        %v567 = vrot.slane %v560, %v566
        %v569 = vmul.f32 %v544, %v567
        %v570 = vadd.f32 %v541, %v569
        %s571 = sld [smem:[#allocation9 + $0x9]]
        %v572 = vstv %s571
        %v573 = vmul.f32 %v572, %v281
        %574 = vrot.lane.b32.xlu0 %v511, 1
        %v575 = vpop.permute.xlu0 %574
        %576 = vrot.lane.b32.xlu0 %v509, 1
        %v577 = vpop.permute.xlu0 %576
        %v578 = vsel %vm370, %v575, %v577
        %v580 = vsel %vm370, 0.0, %v575
        %v582 = vcombine.low %v580, %v578
        %v584 = vunpack.c.l.s4 1966171168
        %v585 = vunpack.c.0.s8 %v584
        %v586 = vlaneseq
        %v587 = vshrl.u32 %v586, 7
        %v588 = vsub.s32 %v585, %v587
        %v589 = vrot.slane %v582, %v588
        %v591 = vunpack.c.l.s4 1966171168
        %v592 = vunpack.c.0.s8 %v591
        %v593 = vlaneseq
        %v594 = vshrl.u32 %v593, 7
        %v595 = vsub.s32 %v592, %v594
        %v596 = vrot.slane %v589, %v595
        %v598 = vmul.f32 %v573, %v596
        %v599 = vadd.f32 %v570, %v598
        %s600 = sld [smem:[#allocation9 + $0xa]]
        %v601 = vstv %s600
        %v602 = vmul.f32 %v601, %v283
        %v603 = vcombine.low %v511, %v509
        %v605 = vunpack.c.l.s4 1966171168
        %v606 = vunpack.c.0.s8 %v605
        %v607 = vlaneseq
        %v608 = vshrl.u32 %v607, 7
        %v609 = vsub.s32 %v606, %v608
        %v610 = vrot.slane %v603, %v609
        %v612 = vunpack.c.l.s4 1966171168
        %v613 = vunpack.c.0.s8 %v612
        %v614 = vlaneseq
        %v615 = vshrl.u32 %v614, 7
        %v616 = vsub.s32 %v613, %v615
        %v617 = vrot.slane %v610, %v616
        %v619 = vmul.f32 %v602, %v617
        %v620 = vadd.f32 %v599, %v619
        %s621 = sld [smem:[#allocation9 + $0xb]]
        %v622 = vstv %s621
        %v623 = vmul.f32 %v622, %v285
        %624 = vrot.lane.b32.xlu0 %v511, 127
        %v625 = vpop.permute.xlu0 %624
        %626 = vrot.lane.b32.xlu0 %v509, 127
        %v627 = vpop.permute.xlu0 %626
        %v628 = vsel %vm421, %v625, %v627
        %v630 = vsel %vm421, %v627, 0.0
        %v632 = vcombine.low %v628, %v630
        %v634 = vunpack.c.l.s4 1966171168
        %v635 = vunpack.c.0.s8 %v634
        %v636 = vlaneseq
        %v637 = vshrl.u32 %v636, 7
        %v638 = vsub.s32 %v635, %v637
        %v639 = vrot.slane %v632, %v638
        %v641 = vunpack.c.l.s4 1966171168
        %v642 = vunpack.c.0.s8 %v641
        %v643 = vlaneseq
        %v644 = vshrl.u32 %v643, 7
        %v645 = vsub.s32 %v642, %v644
        %v646 = vrot.slane %v639, %v645
        %v648 = vmul.f32 %v623, %v646
        %v649 = vadd.f32 %v620, %v648
        %s650 = sld [smem:[#allocation9 + $0xc]]
        %v651 = vstv %s650
        %v652 = vmul.f32 %v651, %v287
        %653 = vrot.lane.b32.xlu0 %v511, 126
        %v654 = vpop.permute.xlu0 %653
        %655 = vrot.lane.b32.xlu0 %v509, 126
        %v656 = vpop.permute.xlu0 %655
        %v657 = vsel %vm451, %v654, %v656
        %v659 = vsel %vm451, %v656, 0.0
        %v661 = vcombine.low %v657, %v659
        %v663 = vunpack.c.l.s4 1966171168
        %v664 = vunpack.c.0.s8 %v663
        %v665 = vlaneseq
        %v666 = vshrl.u32 %v665, 7
        %v667 = vsub.s32 %v664, %v666
        %v668 = vrot.slane %v661, %v667
        %v670 = vunpack.c.l.s4 1966171168
        %v671 = vunpack.c.0.s8 %v670
        %v672 = vlaneseq
        %v673 = vshrl.u32 %v672, 7
        %v674 = vsub.s32 %v671, %v673
        %v675 = vrot.slane %v668, %v674
        %v677 = vmul.f32 %v652, %v675
        %v678 = vadd.f32 %v649, %v677
        %s679 = sld [smem:[#allocation9 + $0xd]]
        %v680 = vstv %s679
        %v681 = vmul.f32 %v680, %v289
        %682 = vrot.lane.b32.xlu0 %v511, 125
        %v683 = vpop.permute.xlu0 %682
        %684 = vrot.lane.b32.xlu0 %v509, 125
        %v685 = vpop.permute.xlu0 %684
        %v686 = vsel %vm481, %v683, %v685
        %v688 = vsel %vm481, %v685, 0.0
        %v690 = vcombine.low %v686, %v688
        %v692 = vunpack.c.l.s4 1966171168
        %v693 = vunpack.c.0.s8 %v692
        %v694 = vlaneseq
        %v695 = vshrl.u32 %v694, 7
        %v696 = vsub.s32 %v693, %v695
        %v697 = vrot.slane %v690, %v696
        %v699 = vunpack.c.l.s4 1966171168
        %v700 = vunpack.c.0.s8 %v699
        %v701 = vlaneseq
        %v702 = vshrl.u32 %v701, 7
        %v703 = vsub.s32 %v700, %v702
        %v704 = vrot.slane %v697, %v703
        %v706 = vmul.f32 %v681, %v704
        %v707 = vadd.f32 %v678, %v706
        %708 = vrot.lane.b32.xlu0 %v253, 16
        %v709 = vpop.permute.xlu0 %708
        %710 = vrot.lane.b32.xlu0 %v260, 16
        %v711 = vpop.permute.xlu0 %710
        %vm712 = vcmask 130048
        %v713 = vsel %vm712, %v709, %v711
        %v715 = vsel %vm712, 0.0, %v709
        %s716 = sld [smem:[#allocation9 + $0xe]]
        %v717 = vstv %s716
        %v718 = vmul.f32 %v717, %v277
        %720 = vrot.lane.b32.xlu0 %v715, 3
        %v721 = vpop.permute.xlu0 %720
        %722 = vrot.lane.b32.xlu0 %v713, 3
        %v723 = vpop.permute.xlu0 %722
        %v724 = vsel %vm310, %v721, %v723
        %v726 = vsel %vm310, 0.0, %v721
        %v728 = vcombine.low %v726, %v724
        %v730 = vunpack.c.l.s4 1966171168
        %v731 = vunpack.c.0.s8 %v730
        %v732 = vlaneseq
        %v733 = vshrl.u32 %v732, 7
        %v734 = vsub.s32 %v731, %v733
        %v735 = vrot.slane %v728, %v734
        %v737 = vunpack.c.l.s4 1966171168
        %v738 = vunpack.c.0.s8 %v737
        %v739 = vlaneseq
        %v740 = vshrl.u32 %v739, 7
        %v741 = vsub.s32 %v738, %v740
        %v742 = vrot.slane %v735, %v741
        %v744 = vmul.f32 %v718, %v742
        %v745 = vadd.f32 %v707, %v744
        %s746 = sld [smem:[#allocation9 + $0xf]]
        %v747 = vstv %s746
        %v748 = vmul.f32 %v747, %v279
        %749 = vrot.lane.b32.xlu0 %v715, 2
        %v750 = vpop.permute.xlu0 %749
        %751 = vrot.lane.b32.xlu0 %v713, 2
        %v752 = vpop.permute.xlu0 %751
        %v753 = vsel %vm340, %v750, %v752
        %v755 = vsel %vm340, 0.0, %v750
        %v757 = vcombine.low %v755, %v753
        %v759 = vunpack.c.l.s4 1966171168
        %v760 = vunpack.c.0.s8 %v759
        %v761 = vlaneseq
        %v762 = vshrl.u32 %v761, 7
        %v763 = vsub.s32 %v760, %v762
        %v764 = vrot.slane %v757, %v763
        %v766 = vunpack.c.l.s4 1966171168
        %v767 = vunpack.c.0.s8 %v766
        %v768 = vlaneseq
        %v769 = vshrl.u32 %v768, 7
        %v770 = vsub.s32 %v767, %v769
        %v771 = vrot.slane %v764, %v770
        %v773 = vmul.f32 %v748, %v771
        %v774 = vadd.f32 %v745, %v773
        %s775 = sld [smem:[#allocation9 + $0x10]]
        %v776 = vstv %s775
        %v777 = vmul.f32 %v776, %v281
        %778 = vrot.lane.b32.xlu0 %v715, 1
        %v779 = vpop.permute.xlu0 %778
        %780 = vrot.lane.b32.xlu0 %v713, 1
        %v781 = vpop.permute.xlu0 %780
        %v782 = vsel %vm370, %v779, %v781
        %v784 = vsel %vm370, 0.0, %v779
        %v786 = vcombine.low %v784, %v782
        %v788 = vunpack.c.l.s4 1966171168
        %v789 = vunpack.c.0.s8 %v788
        %v790 = vlaneseq
        %v791 = vshrl.u32 %v790, 7
        %v792 = vsub.s32 %v789, %v791
        %v793 = vrot.slane %v786, %v792
        %v795 = vunpack.c.l.s4 1966171168
        %v796 = vunpack.c.0.s8 %v795
        %v797 = vlaneseq
        %v798 = vshrl.u32 %v797, 7
        %v799 = vsub.s32 %v796, %v798
        %v800 = vrot.slane %v793, %v799
        %v802 = vmul.f32 %v777, %v800
        %v803 = vadd.f32 %v774, %v802
        %s804 = sld [smem:[#allocation9 + $0x11]]
        %v805 = vstv %s804
        %v806 = vmul.f32 %v805, %v283
        %v807 = vcombine.low %v715, %v713
        %v809 = vunpack.c.l.s4 1966171168
        %v810 = vunpack.c.0.s8 %v809
        %v811 = vlaneseq
        %v812 = vshrl.u32 %v811, 7
        %v813 = vsub.s32 %v810, %v812
        %v814 = vrot.slane %v807, %v813
        %v816 = vunpack.c.l.s4 1966171168
        %v817 = vunpack.c.0.s8 %v816
        %v818 = vlaneseq
        %v819 = vshrl.u32 %v818, 7
        %v820 = vsub.s32 %v817, %v819
        %v821 = vrot.slane %v814, %v820
        %v823 = vmul.f32 %v806, %v821
        %v824 = vadd.f32 %v803, %v823
        %s825 = sld [smem:[#allocation9 + $0x12]]
        %v826 = vstv %s825
        %v827 = vmul.f32 %v826, %v285
        %828 = vrot.lane.b32.xlu0 %v715, 127
        %v829 = vpop.permute.xlu0 %828
        %830 = vrot.lane.b32.xlu0 %v713, 127
        %v831 = vpop.permute.xlu0 %830
        %v832 = vsel %vm421, %v829, %v831
        %v834 = vsel %vm421, %v831, 0.0
        %v836 = vcombine.low %v832, %v834
        %v838 = vunpack.c.l.s4 1966171168
        %v839 = vunpack.c.0.s8 %v838
        %v840 = vlaneseq
        %v841 = vshrl.u32 %v840, 7
        %v842 = vsub.s32 %v839, %v841
        %v843 = vrot.slane %v836, %v842
        %v845 = vunpack.c.l.s4 1966171168
        %v846 = vunpack.c.0.s8 %v845
        %v847 = vlaneseq
        %v848 = vshrl.u32 %v847, 7
        %v849 = vsub.s32 %v846, %v848
        %v850 = vrot.slane %v843, %v849
        %v852 = vmul.f32 %v827, %v850
        %v853 = vadd.f32 %v824, %v852
        %s854 = sld [smem:[#allocation9 + $0x13]]
        %v855 = vstv %s854
        %v856 = vmul.f32 %v855, %v287
        %857 = vrot.lane.b32.xlu0 %v715, 126
        %v858 = vpop.permute.xlu0 %857
        %859 = vrot.lane.b32.xlu0 %v713, 126
        %v860 = vpop.permute.xlu0 %859
        %v861 = vsel %vm451, %v858, %v860
        %v863 = vsel %vm451, %v860, 0.0
        %v865 = vcombine.low %v861, %v863
        %v867 = vunpack.c.l.s4 1966171168
        %v868 = vunpack.c.0.s8 %v867
        %v869 = vlaneseq
        %v870 = vshrl.u32 %v869, 7
        %v871 = vsub.s32 %v868, %v870
        %v872 = vrot.slane %v865, %v871
        %v874 = vunpack.c.l.s4 1966171168
        %v875 = vunpack.c.0.s8 %v874
        %v876 = vlaneseq
        %v877 = vshrl.u32 %v876, 7
        %v878 = vsub.s32 %v875, %v877
        %v879 = vrot.slane %v872, %v878
        %v881 = vmul.f32 %v856, %v879
        %v882 = vadd.f32 %v853, %v881
        %s883 = sld [smem:[#allocation9 + $0x14]]
        %v884 = vstv %s883
        %v885 = vmul.f32 %v884, %v289
        %886 = vrot.lane.b32.xlu0 %v715, 125
        %v887 = vpop.permute.xlu0 %886
        %888 = vrot.lane.b32.xlu0 %v713, 125
        %v889 = vpop.permute.xlu0 %888
        %v890 = vsel %vm481, %v887, %v889
        %v892 = vsel %vm481, %v889, 0.0
        %v894 = vcombine.low %v890, %v892
        %v896 = vunpack.c.l.s4 1966171168
        %v897 = vunpack.c.0.s8 %v896
        %v898 = vlaneseq
        %v899 = vshrl.u32 %v898, 7
        %v900 = vsub.s32 %v897, %v899
        %v901 = vrot.slane %v894, %v900
        %v903 = vunpack.c.l.s4 1966171168
        %v904 = vunpack.c.0.s8 %v903
        %v905 = vlaneseq
        %v906 = vshrl.u32 %v905, 7
        %v907 = vsub.s32 %v904, %v906
        %v908 = vrot.slane %v901, %v907
        %v910 = vmul.f32 %v885, %v908
        %v911 = vadd.f32 %v882, %v910
        %s912 = sld [smem:[#allocation9 + $0x15]]
        %v913 = vstv %s912
        %v914 = vmul.f32 %v913, %v277
        %915 = vrot.lane.b32.xlu0 %v253, 3
        %v916 = vpop.permute.xlu0 %915
        %917 = vrot.lane.b32.xlu0 %v260, 3
        %v918 = vpop.permute.xlu0 %917
        %v919 = vsel %vm310, %v916, %v918
        %v921 = vsel %vm310, 0.0, %v916
        %v923 = vcombine.low %v921, %v919
        %v925 = vunpack.c.l.s4 1966171168
        %v926 = vunpack.c.0.s8 %v925
        %v927 = vlaneseq
        %v928 = vshrl.u32 %v927, 7
        %v929 = vsub.s32 %v926, %v928
        %v930 = vrot.slane %v923, %v929
        %v932 = vunpack.c.l.s4 1966171168
        %v933 = vunpack.c.0.s8 %v932
        %v934 = vlaneseq
        %v935 = vshrl.u32 %v934, 7
        %v936 = vsub.s32 %v933, %v935
        %v937 = vrot.slane %v930, %v936
        %v939 = vmul.f32 %v914, %v937
        %v940 = vadd.f32 %v911, %v939
        %s941 = sld [smem:[#allocation9 + $0x16]]
        %v942 = vstv %s941
        %v943 = vmul.f32 %v942, %v279
        %944 = vrot.lane.b32.xlu0 %v253, 2
        %v945 = vpop.permute.xlu0 %944
        %946 = vrot.lane.b32.xlu0 %v260, 2
        %v947 = vpop.permute.xlu0 %946
        %v948 = vsel %vm340, %v945, %v947
        %v950 = vsel %vm340, 0.0, %v945
        %v952 = vcombine.low %v950, %v948
        %v954 = vunpack.c.l.s4 1966171168
        %v955 = vunpack.c.0.s8 %v954
        %v956 = vlaneseq
        %v957 = vshrl.u32 %v956, 7
        %v958 = vsub.s32 %v955, %v957
        %v959 = vrot.slane %v952, %v958
        %v961 = vunpack.c.l.s4 1966171168
        %v962 = vunpack.c.0.s8 %v961
        %v963 = vlaneseq
        %v964 = vshrl.u32 %v963, 7
        %v965 = vsub.s32 %v962, %v964
        %v966 = vrot.slane %v959, %v965
        %v968 = vmul.f32 %v943, %v966
        %v969 = vadd.f32 %v940, %v968
        %s970 = sld [smem:[#allocation9 + $0x17]]
        %v971 = vstv %s970
        %v972 = vmul.f32 %v971, %v281
        %973 = vrot.lane.b32.xlu0 %v253, 1
        %v974 = vpop.permute.xlu0 %973
        %975 = vrot.lane.b32.xlu0 %v260, 1
        %v976 = vpop.permute.xlu0 %975
        %v977 = vsel %vm370, %v974, %v976
        %v979 = vsel %vm370, 0.0, %v974
        %v981 = vcombine.low %v979, %v977
        %v983 = vunpack.c.l.s4 1966171168
        %v984 = vunpack.c.0.s8 %v983
        %v985 = vlaneseq
        %v986 = vshrl.u32 %v985, 7
        %v987 = vsub.s32 %v984, %v986
        %v988 = vrot.slane %v981, %v987
        %v990 = vunpack.c.l.s4 1966171168
        %v991 = vunpack.c.0.s8 %v990
        %v992 = vlaneseq
        %v993 = vshrl.u32 %v992, 7
        %v994 = vsub.s32 %v991, %v993
        %v995 = vrot.slane %v988, %v994
        %v997 = vmul.f32 %v972, %v995
        %v998 = vadd.f32 %v969, %v997
        %s999 = sld [smem:[#allocation9 + $0x18]]
        %v1000 = vstv %s999
        %v1001 = vmul.f32 %v1000, %v283
        %v1002 = vcombine.low %v253, %v260
        %v1004 = vunpack.c.l.s4 1966171168
        %v1005 = vunpack.c.0.s8 %v1004
        %v1006 = vlaneseq
        %v1007 = vshrl.u32 %v1006, 7
        %v1008 = vsub.s32 %v1005, %v1007
        %v1009 = vrot.slane %v1002, %v1008
        %v1011 = vunpack.c.l.s4 1966171168
        %v1012 = vunpack.c.0.s8 %v1011
        %v1013 = vlaneseq
        %v1014 = vshrl.u32 %v1013, 7
        %v1015 = vsub.s32 %v1012, %v1014
        %v1016 = vrot.slane %v1009, %v1015
        %v1018 = vmul.f32 %v1001, %v1016
        %v1019 = vadd.f32 %v998, %v1018
        %s1020 = sld [smem:[#allocation9 + $0x19]]
        %v1021 = vstv %s1020
        %v1022 = vmul.f32 %v1021, %v285
        %1023 = vrot.lane.b32.xlu0 %v253, 127
        %v1024 = vpop.permute.xlu0 %1023
        %1025 = vrot.lane.b32.xlu0 %v260, 127
        %v1026 = vpop.permute.xlu0 %1025
        %v1027 = vsel %vm421, %v1024, %v1026
        %v1029 = vsel %vm421, %v1026, 0.0
        %v1031 = vcombine.low %v1027, %v1029
        %v1033 = vunpack.c.l.s4 1966171168
        %v1034 = vunpack.c.0.s8 %v1033
        %v1035 = vlaneseq
        %v1036 = vshrl.u32 %v1035, 7
        %v1037 = vsub.s32 %v1034, %v1036
        %v1038 = vrot.slane %v1031, %v1037
        %v1040 = vunpack.c.l.s4 1966171168
        %v1041 = vunpack.c.0.s8 %v1040
        %v1042 = vlaneseq
        %v1043 = vshrl.u32 %v1042, 7
        %v1044 = vsub.s32 %v1041, %v1043
        %v1045 = vrot.slane %v1038, %v1044
        %v1047 = vmul.f32 %v1022, %v1045
        %v1048 = vadd.f32 %v1019, %v1047
        %s1049 = sld [smem:[#allocation9 + $0x1a]]
        %v1050 = vstv %s1049
        %v1051 = vmul.f32 %v1050, %v287
        %1052 = vrot.lane.b32.xlu0 %v253, 126
        %v1053 = vpop.permute.xlu0 %1052
        %1054 = vrot.lane.b32.xlu0 %v260, 126
        %v1055 = vpop.permute.xlu0 %1054
        %v1056 = vsel %vm451, %v1053, %v1055
        %v1058 = vsel %vm451, %v1055, 0.0
        %v1060 = vcombine.low %v1056, %v1058
        %v1062 = vunpack.c.l.s4 1966171168
        %v1063 = vunpack.c.0.s8 %v1062
        %v1064 = vlaneseq
        %v1065 = vshrl.u32 %v1064, 7
        %v1066 = vsub.s32 %v1063, %v1065
        %v1067 = vrot.slane %v1060, %v1066
        %v1069 = vunpack.c.l.s4 1966171168
        %v1070 = vunpack.c.0.s8 %v1069
        %v1071 = vlaneseq
        %v1072 = vshrl.u32 %v1071, 7
        %v1073 = vsub.s32 %v1070, %v1072
        %v1074 = vrot.slane %v1067, %v1073
        %v1076 = vmul.f32 %v1051, %v1074
        %v1077 = vadd.f32 %v1048, %v1076
        %s1078 = sld [smem:[#allocation9 + $0x1b]]
        %v1079 = vstv %s1078
        %v1080 = vmul.f32 %v1079, %v289
        %1081 = vrot.lane.b32.xlu0 %v253, 125
        %v1082 = vpop.permute.xlu0 %1081
        %1083 = vrot.lane.b32.xlu0 %v260, 125
        %v1084 = vpop.permute.xlu0 %1083
        %v1085 = vsel %vm481, %v1082, %v1084
        %v1087 = vsel %vm481, %v1084, 0.0
        %v1089 = vcombine.low %v1085, %v1087
        %v1091 = vunpack.c.l.s4 1966171168
        %v1092 = vunpack.c.0.s8 %v1091
        %v1093 = vlaneseq
        %v1094 = vshrl.u32 %v1093, 7
        %v1095 = vsub.s32 %v1092, %v1094
        %v1096 = vrot.slane %v1089, %v1095
        %v1098 = vunpack.c.l.s4 1966171168
        %v1099 = vunpack.c.0.s8 %v1098
        %v1100 = vlaneseq
        %v1101 = vshrl.u32 %v1100, 7
        %v1102 = vsub.s32 %v1099, %v1101
        %v1103 = vrot.slane %v1096, %v1102
        %v1105 = vmul.f32 %v1080, %v1103
        %v1106 = vadd.f32 %v1077, %v1105
        %1107 = vrot.lane.b32.xlu0 %v253, 112
        %v1108 = vpop.permute.xlu0 %1107
        %1109 = vrot.lane.b32.xlu0 %v260, 112
        %v1110 = vpop.permute.xlu0 %1109
        %vm1111 = vcmask 916480
        %v1112 = vsel %vm1111, %v1108, %v1110
        %v1114 = vsel %vm1111, %v1110, 0.0
        %s1115 = sld [smem:[#allocation9 + $0x1c]]
        %v1116 = vstv %s1115
        %v1117 = vmul.f32 %v1116, %v277
        %1119 = vrot.lane.b32.xlu0 %v1112, 3
        %v1120 = vpop.permute.xlu0 %1119
        %1121 = vrot.lane.b32.xlu0 %v1114, 3
        %v1122 = vpop.permute.xlu0 %1121
        %v1123 = vsel %vm310, %v1120, %v1122
        %v1125 = vsel %vm310, 0.0, %v1120
        %v1127 = vcombine.low %v1125, %v1123
        %v1129 = vunpack.c.l.s4 1966171168
        %v1130 = vunpack.c.0.s8 %v1129
        %v1131 = vlaneseq
        %v1132 = vshrl.u32 %v1131, 7
        %v1133 = vsub.s32 %v1130, %v1132
        %v1134 = vrot.slane %v1127, %v1133
        %v1136 = vunpack.c.l.s4 1966171168
        %v1137 = vunpack.c.0.s8 %v1136
        %v1138 = vlaneseq
        %v1139 = vshrl.u32 %v1138, 7
        %v1140 = vsub.s32 %v1137, %v1139
        %v1141 = vrot.slane %v1134, %v1140
        %v1143 = vmul.f32 %v1117, %v1141
        %v1144 = vadd.f32 %v1106, %v1143
        %s1145 = sld [smem:[#allocation9 + $0x1d]]
        %v1146 = vstv %s1145
        %v1147 = vmul.f32 %v1146, %v279
        %1148 = vrot.lane.b32.xlu0 %v1112, 2
        %v1149 = vpop.permute.xlu0 %1148
        %1150 = vrot.lane.b32.xlu0 %v1114, 2
        %v1151 = vpop.permute.xlu0 %1150
        %v1152 = vsel %vm340, %v1149, %v1151
        %v1154 = vsel %vm340, 0.0, %v1149
        %v1156 = vcombine.low %v1154, %v1152
        %v1158 = vunpack.c.l.s4 1966171168
        %v1159 = vunpack.c.0.s8 %v1158
        %v1160 = vlaneseq
        %v1161 = vshrl.u32 %v1160, 7
        %v1162 = vsub.s32 %v1159, %v1161
        %v1163 = vrot.slane %v1156, %v1162
        %v1165 = vunpack.c.l.s4 1966171168
        %v1166 = vunpack.c.0.s8 %v1165
        %v1167 = vlaneseq
        %v1168 = vshrl.u32 %v1167, 7
        %v1169 = vsub.s32 %v1166, %v1168
        %v1170 = vrot.slane %v1163, %v1169
        %v1172 = vmul.f32 %v1147, %v1170
        %v1173 = vadd.f32 %v1144, %v1172
        %s1174 = sld [smem:[#allocation9 + $0x1e]]
        %v1175 = vstv %s1174
        %v1176 = vmul.f32 %v1175, %v281
        %1177 = vrot.lane.b32.xlu0 %v1112, 1
        %v1178 = vpop.permute.xlu0 %1177
        %1179 = vrot.lane.b32.xlu0 %v1114, 1
        %v1180 = vpop.permute.xlu0 %1179
        %v1181 = vsel %vm370, %v1178, %v1180
        %v1183 = vsel %vm370, 0.0, %v1178
        %v1185 = vcombine.low %v1183, %v1181
        %v1187 = vunpack.c.l.s4 1966171168
        %v1188 = vunpack.c.0.s8 %v1187
        %v1189 = vlaneseq
        %v1190 = vshrl.u32 %v1189, 7
        %v1191 = vsub.s32 %v1188, %v1190
        %v1192 = vrot.slane %v1185, %v1191
        %v1194 = vunpack.c.l.s4 1966171168
        %v1195 = vunpack.c.0.s8 %v1194
        %v1196 = vlaneseq
        %v1197 = vshrl.u32 %v1196, 7
        %v1198 = vsub.s32 %v1195, %v1197
        %v1199 = vrot.slane %v1192, %v1198
        %v1201 = vmul.f32 %v1176, %v1199
        %v1202 = vadd.f32 %v1173, %v1201
        %s1203 = sld [smem:[#allocation9 + $0x1f]]
        %v1204 = vstv %s1203
        %v1205 = vmul.f32 %v1204, %v283
        %v1206 = vcombine.low %v1112, %v1114
        %v1208 = vunpack.c.l.s4 1966171168
        %v1209 = vunpack.c.0.s8 %v1208
        %v1210 = vlaneseq
        %v1211 = vshrl.u32 %v1210, 7
        %v1212 = vsub.s32 %v1209, %v1211
        %v1213 = vrot.slane %v1206, %v1212
        %v1215 = vunpack.c.l.s4 1966171168
        %v1216 = vunpack.c.0.s8 %v1215
        %v1217 = vlaneseq
        %v1218 = vshrl.u32 %v1217, 7
        %v1219 = vsub.s32 %v1216, %v1218
        %v1220 = vrot.slane %v1213, %v1219
        %v1222 = vmul.f32 %v1205, %v1220
        %v1223 = vadd.f32 %v1202, %v1222
        %s1224 = sld [smem:[#allocation9 + $0x20]]
        %v1225 = vstv %s1224
        %v1226 = vmul.f32 %v1225, %v285
        %1227 = vrot.lane.b32.xlu0 %v1112, 127
        %v1228 = vpop.permute.xlu0 %1227
        %1229 = vrot.lane.b32.xlu0 %v1114, 127
        %v1230 = vpop.permute.xlu0 %1229
        %v1231 = vsel %vm421, %v1228, %v1230
        %v1233 = vsel %vm421, %v1230, 0.0
        %v1235 = vcombine.low %v1231, %v1233
        %v1237 = vunpack.c.l.s4 1966171168
        %v1238 = vunpack.c.0.s8 %v1237
        %v1239 = vlaneseq
        %v1240 = vshrl.u32 %v1239, 7
        %v1241 = vsub.s32 %v1238, %v1240
        %v1242 = vrot.slane %v1235, %v1241
        %v1244 = vunpack.c.l.s4 1966171168
        %v1245 = vunpack.c.0.s8 %v1244
        %v1246 = vlaneseq
        %v1247 = vshrl.u32 %v1246, 7
        %v1248 = vsub.s32 %v1245, %v1247
        %v1249 = vrot.slane %v1242, %v1248
        %v1251 = vmul.f32 %v1226, %v1249
        %v1252 = vadd.f32 %v1223, %v1251
        %s1253 = sld [smem:[#allocation9 + $0x21]]
        %v1254 = vstv %s1253
        %v1255 = vmul.f32 %v1254, %v287
        %1256 = vrot.lane.b32.xlu0 %v1112, 126
        %v1257 = vpop.permute.xlu0 %1256
        %1258 = vrot.lane.b32.xlu0 %v1114, 126
        %v1259 = vpop.permute.xlu0 %1258
        %v1260 = vsel %vm451, %v1257, %v1259
        %v1262 = vsel %vm451, %v1259, 0.0
        %v1264 = vcombine.low %v1260, %v1262
        %v1266 = vunpack.c.l.s4 1966171168
        %v1267 = vunpack.c.0.s8 %v1266
        %v1268 = vlaneseq
        %v1269 = vshrl.u32 %v1268, 7
        %v1270 = vsub.s32 %v1267, %v1269
        %v1271 = vrot.slane %v1264, %v1270
        %v1273 = vunpack.c.l.s4 1966171168
        %v1274 = vunpack.c.0.s8 %v1273
        %v1275 = vlaneseq
        %v1276 = vshrl.u32 %v1275, 7
        %v1277 = vsub.s32 %v1274, %v1276
        %v1278 = vrot.slane %v1271, %v1277
        %v1280 = vmul.f32 %v1255, %v1278
        %v1281 = vadd.f32 %v1252, %v1280
        %s1282 = sld [smem:[#allocation9 + $0x22]]
        %v1283 = vstv %s1282
        %v1284 = vmul.f32 %v1283, %v289
        %1285 = vrot.lane.b32.xlu0 %v1112, 125
        %v1286 = vpop.permute.xlu0 %1285
        %1287 = vrot.lane.b32.xlu0 %v1114, 125
        %v1288 = vpop.permute.xlu0 %1287
        %v1289 = vsel %vm481, %v1286, %v1288
        %v1291 = vsel %vm481, %v1288, 0.0
        %v1293 = vcombine.low %v1289, %v1291
        %v1295 = vunpack.c.l.s4 1966171168
        %v1296 = vunpack.c.0.s8 %v1295
        %v1297 = vlaneseq
        %v1298 = vshrl.u32 %v1297, 7
        %v1299 = vsub.s32 %v1296, %v1298
        %v1300 = vrot.slane %v1293, %v1299
        %v1302 = vunpack.c.l.s4 1966171168
        %v1303 = vunpack.c.0.s8 %v1302
        %v1304 = vlaneseq
        %v1305 = vshrl.u32 %v1304, 7
        %v1306 = vsub.s32 %v1303, %v1305
        %v1307 = vrot.slane %v1300, %v1306
        %v1309 = vmul.f32 %v1284, %v1307
        %v1310 = vadd.f32 %v1281, %v1309
        %1311 = vrot.lane.b32.xlu0 %v253, 96
        %v1312 = vpop.permute.xlu0 %1311
        %1313 = vrot.lane.b32.xlu0 %v260, 96
        %v1314 = vpop.permute.xlu0 %1313
        %vm1315 = vcmask 785408
        %v1316 = vsel %vm1315, %v1312, %v1314
        %v1318 = vsel %vm1315, %v1314, 0.0
        %s1319 = sld [smem:[#allocation9 + $0x23]]
        %v1320 = vstv %s1319
        %v1321 = vmul.f32 %v1320, %v277
        %1323 = vrot.lane.b32.xlu0 %v1316, 3
        %v1324 = vpop.permute.xlu0 %1323
        %1325 = vrot.lane.b32.xlu0 %v1318, 3
        %v1326 = vpop.permute.xlu0 %1325
        %v1327 = vsel %vm310, %v1324, %v1326
        %v1329 = vsel %vm310, 0.0, %v1324
        %v1331 = vcombine.low %v1329, %v1327
        %v1333 = vunpack.c.l.s4 1966171168
        %v1334 = vunpack.c.0.s8 %v1333
        %v1335 = vlaneseq
        %v1336 = vshrl.u32 %v1335, 7
        %v1337 = vsub.s32 %v1334, %v1336
        %v1338 = vrot.slane %v1331, %v1337
        %v1340 = vunpack.c.l.s4 1966171168
        %v1341 = vunpack.c.0.s8 %v1340
        %v1342 = vlaneseq
        %v1343 = vshrl.u32 %v1342, 7
        %v1344 = vsub.s32 %v1341, %v1343
        %v1345 = vrot.slane %v1338, %v1344
        %v1347 = vmul.f32 %v1321, %v1345
        %v1348 = vadd.f32 %v1310, %v1347
        %s1349 = sld [smem:[#allocation9 + $0x24]]
        %v1350 = vstv %s1349
        %v1351 = vmul.f32 %v1350, %v279
        %1352 = vrot.lane.b32.xlu0 %v1316, 2
        %v1353 = vpop.permute.xlu0 %1352
        %1354 = vrot.lane.b32.xlu0 %v1318, 2
        %v1355 = vpop.permute.xlu0 %1354
        %v1356 = vsel %vm340, %v1353, %v1355
        %v1358 = vsel %vm340, 0.0, %v1353
        %v1360 = vcombine.low %v1358, %v1356
        %v1362 = vunpack.c.l.s4 1966171168
        %v1363 = vunpack.c.0.s8 %v1362
        %v1364 = vlaneseq
        %v1365 = vshrl.u32 %v1364, 7
        %v1366 = vsub.s32 %v1363, %v1365
        %v1367 = vrot.slane %v1360, %v1366
        %v1369 = vunpack.c.l.s4 1966171168
        %v1370 = vunpack.c.0.s8 %v1369
        %v1371 = vlaneseq
        %v1372 = vshrl.u32 %v1371, 7
        %v1373 = vsub.s32 %v1370, %v1372
        %v1374 = vrot.slane %v1367, %v1373
        %v1376 = vmul.f32 %v1351, %v1374
        %v1377 = vadd.f32 %v1348, %v1376
        %s1378 = sld [smem:[#allocation9 + $0x25]]
        %v1379 = vstv %s1378
        %v1380 = vmul.f32 %v1379, %v281
        %1381 = vrot.lane.b32.xlu0 %v1316, 1
        %v1382 = vpop.permute.xlu0 %1381
        %1383 = vrot.lane.b32.xlu0 %v1318, 1
        %v1384 = vpop.permute.xlu0 %1383
        %v1385 = vsel %vm370, %v1382, %v1384
        %v1387 = vsel %vm370, 0.0, %v1382
        %v1389 = vcombine.low %v1387, %v1385
        %v1391 = vunpack.c.l.s4 1966171168
        %v1392 = vunpack.c.0.s8 %v1391
        %v1393 = vlaneseq
        %v1394 = vshrl.u32 %v1393, 7
        %v1395 = vsub.s32 %v1392, %v1394
        %v1396 = vrot.slane %v1389, %v1395
        %v1398 = vunpack.c.l.s4 1966171168
        %v1399 = vunpack.c.0.s8 %v1398
        %v1400 = vlaneseq
        %v1401 = vshrl.u32 %v1400, 7
        %v1402 = vsub.s32 %v1399, %v1401
        %v1403 = vrot.slane %v1396, %v1402
        %v1405 = vmul.f32 %v1380, %v1403
        %v1406 = vadd.f32 %v1377, %v1405
        %s1407 = sld [smem:[#allocation9 + $0x26]]
        %v1408 = vstv %s1407
        %v1409 = vmul.f32 %v1408, %v283
        %v1410 = vcombine.low %v1316, %v1318
        %v1412 = vunpack.c.l.s4 1966171168
        %v1413 = vunpack.c.0.s8 %v1412
        %v1414 = vlaneseq
        %v1415 = vshrl.u32 %v1414, 7
        %v1416 = vsub.s32 %v1413, %v1415
        %v1417 = vrot.slane %v1410, %v1416
        %v1419 = vunpack.c.l.s4 1966171168
        %v1420 = vunpack.c.0.s8 %v1419
        %v1421 = vlaneseq
        %v1422 = vshrl.u32 %v1421, 7
        %v1423 = vsub.s32 %v1420, %v1422
        %v1424 = vrot.slane %v1417, %v1423
        %v1426 = vmul.f32 %v1409, %v1424
        %v1427 = vadd.f32 %v1406, %v1426
        %s1428 = sld [smem:[#allocation9 + $0x27]]
        %v1429 = vstv %s1428
        %v1430 = vmul.f32 %v1429, %v285
        %1431 = vrot.lane.b32.xlu0 %v1316, 127
        %v1432 = vpop.permute.xlu0 %1431
        %1433 = vrot.lane.b32.xlu0 %v1318, 127
        %v1434 = vpop.permute.xlu0 %1433
        %v1435 = vsel %vm421, %v1432, %v1434
        %v1437 = vsel %vm421, %v1434, 0.0
        %v1439 = vcombine.low %v1435, %v1437
        %v1441 = vunpack.c.l.s4 1966171168
        %v1442 = vunpack.c.0.s8 %v1441
        %v1443 = vlaneseq
        %v1444 = vshrl.u32 %v1443, 7
        %v1445 = vsub.s32 %v1442, %v1444
        %v1446 = vrot.slane %v1439, %v1445
        %v1448 = vunpack.c.l.s4 1966171168
        %v1449 = vunpack.c.0.s8 %v1448
        %v1450 = vlaneseq
        %v1451 = vshrl.u32 %v1450, 7
        %v1452 = vsub.s32 %v1449, %v1451
        %v1453 = vrot.slane %v1446, %v1452
        %v1455 = vmul.f32 %v1430, %v1453
        %v1456 = vadd.f32 %v1427, %v1455
        %s1457 = sld [smem:[#allocation9 + $0x28]]
        %v1458 = vstv %s1457
        %v1459 = vmul.f32 %v1458, %v287
        %1460 = vrot.lane.b32.xlu0 %v1316, 126
        %v1461 = vpop.permute.xlu0 %1460
        %1462 = vrot.lane.b32.xlu0 %v1318, 126
        %v1463 = vpop.permute.xlu0 %1462
        %v1464 = vsel %vm451, %v1461, %v1463
        %v1466 = vsel %vm451, %v1463, 0.0
        %v1468 = vcombine.low %v1464, %v1466
        %v1470 = vunpack.c.l.s4 1966171168
        %v1471 = vunpack.c.0.s8 %v1470
        %v1472 = vlaneseq
        %v1473 = vshrl.u32 %v1472, 7
        %v1474 = vsub.s32 %v1471, %v1473
        %v1475 = vrot.slane %v1468, %v1474
        %v1477 = vunpack.c.l.s4 1966171168
        %v1478 = vunpack.c.0.s8 %v1477
        %v1479 = vlaneseq
        %v1480 = vshrl.u32 %v1479, 7
        %v1481 = vsub.s32 %v1478, %v1480
        %v1482 = vrot.slane %v1475, %v1481
        %v1484 = vmul.f32 %v1459, %v1482
        %v1485 = vadd.f32 %v1456, %v1484
        %s1486 = sld [smem:[#allocation9 + $0x29]]
        %v1487 = vstv %s1486
        %v1488 = vmul.f32 %v1487, %v289
        %1489 = vrot.lane.b32.xlu0 %v1316, 125
        %v1490 = vpop.permute.xlu0 %1489
        %1491 = vrot.lane.b32.xlu0 %v1318, 125
        %v1492 = vpop.permute.xlu0 %1491
        %v1493 = vsel %vm481, %v1490, %v1492
        %v1495 = vsel %vm481, %v1492, 0.0
        %v1497 = vcombine.low %v1493, %v1495
        %v1499 = vunpack.c.l.s4 1966171168
        %v1500 = vunpack.c.0.s8 %v1499
        %v1501 = vlaneseq
        %v1502 = vshrl.u32 %v1501, 7
        %v1503 = vsub.s32 %v1500, %v1502
        %v1504 = vrot.slane %v1497, %v1503
        %v1506 = vunpack.c.l.s4 1966171168
        %v1507 = vunpack.c.0.s8 %v1506
        %v1508 = vlaneseq
        %v1509 = vshrl.u32 %v1508, 7
        %v1510 = vsub.s32 %v1507, %v1509
        %v1511 = vrot.slane %v1504, %v1510
        %v1513 = vmul.f32 %v1488, %v1511
        %v1514 = vadd.f32 %v1485, %v1513
        %1515 = vrot.lane.b32.xlu0 %v253, 80
        %v1516 = vpop.permute.xlu0 %1515
        %1517 = vrot.lane.b32.xlu0 %v260, 80
        %v1518 = vpop.permute.xlu0 %1517
        %vm1519 = vcmask 654336
        %v1520 = vsel %vm1519, %v1516, %v1518
        %v1522 = vsel %vm1519, %v1518, 0.0
        %s1523 = sld [smem:[#allocation9 + $0x2a]]
        %v1524 = vstv %s1523
        %v1525 = vmul.f32 %v1524, %v277
        %1527 = vrot.lane.b32.xlu0 %v1520, 3
        %v1528 = vpop.permute.xlu0 %1527
        %1529 = vrot.lane.b32.xlu0 %v1522, 3
        %v1530 = vpop.permute.xlu0 %1529
        %v1531 = vsel %vm310, %v1528, %v1530
        %v1533 = vsel %vm310, 0.0, %v1528
        %v1535 = vcombine.low %v1533, %v1531
        %v1537 = vunpack.c.l.s4 1966171168
        %v1538 = vunpack.c.0.s8 %v1537
        %v1539 = vlaneseq
        %v1540 = vshrl.u32 %v1539, 7
        %v1541 = vsub.s32 %v1538, %v1540
        %v1542 = vrot.slane %v1535, %v1541
        %v1544 = vunpack.c.l.s4 1966171168
        %v1545 = vunpack.c.0.s8 %v1544
        %v1546 = vlaneseq
        %v1547 = vshrl.u32 %v1546, 7
        %v1548 = vsub.s32 %v1545, %v1547
        %v1549 = vrot.slane %v1542, %v1548
        %v1551 = vmul.f32 %v1525, %v1549
        %v1552 = vadd.f32 %v1514, %v1551
        %s1553 = sld [smem:[#allocation9 + $0x2b]]
        %v1554 = vstv %s1553
        %v1555 = vmul.f32 %v1554, %v279
        %1556 = vrot.lane.b32.xlu0 %v1520, 2
        %v1557 = vpop.permute.xlu0 %1556
        %1558 = vrot.lane.b32.xlu0 %v1522, 2
        %v1559 = vpop.permute.xlu0 %1558
        %v1560 = vsel %vm340, %v1557, %v1559
        %v1562 = vsel %vm340, 0.0, %v1557
        %v1564 = vcombine.low %v1562, %v1560
        %v1566 = vunpack.c.l.s4 1966171168
        %v1567 = vunpack.c.0.s8 %v1566
        %v1568 = vlaneseq
        %v1569 = vshrl.u32 %v1568, 7
        %v1570 = vsub.s32 %v1567, %v1569
        %v1571 = vrot.slane %v1564, %v1570
        %v1573 = vunpack.c.l.s4 1966171168
        %v1574 = vunpack.c.0.s8 %v1573
        %v1575 = vlaneseq
        %v1576 = vshrl.u32 %v1575, 7
        %v1577 = vsub.s32 %v1574, %v1576
        %v1578 = vrot.slane %v1571, %v1577
        %v1580 = vmul.f32 %v1555, %v1578
        %v1581 = vadd.f32 %v1552, %v1580
        %s1582 = sld [smem:[#allocation9 + $0x2c]]
        %v1583 = vstv %s1582
        %v1584 = vmul.f32 %v1583, %v281
        %1585 = vrot.lane.b32.xlu0 %v1520, 1
        %v1586 = vpop.permute.xlu0 %1585
        %1587 = vrot.lane.b32.xlu0 %v1522, 1
        %v1588 = vpop.permute.xlu0 %1587
        %v1589 = vsel %vm370, %v1586, %v1588
        %v1591 = vsel %vm370, 0.0, %v1586
        %v1593 = vcombine.low %v1591, %v1589
        %v1595 = vunpack.c.l.s4 1966171168
        %v1596 = vunpack.c.0.s8 %v1595
        %v1597 = vlaneseq
        %v1598 = vshrl.u32 %v1597, 7
        %v1599 = vsub.s32 %v1596, %v1598
        %v1600 = vrot.slane %v1593, %v1599
        %v1602 = vunpack.c.l.s4 1966171168
        %v1603 = vunpack.c.0.s8 %v1602
        %v1604 = vlaneseq
        %v1605 = vshrl.u32 %v1604, 7
        %v1606 = vsub.s32 %v1603, %v1605
        %v1607 = vrot.slane %v1600, %v1606
        %v1609 = vmul.f32 %v1584, %v1607
        %v1610 = vadd.f32 %v1581, %v1609
        %s1611 = sld [smem:[#allocation9 + $0x2d]]
        %v1612 = vstv %s1611
        %v1613 = vmul.f32 %v1612, %v283
        %v1614 = vcombine.low %v1520, %v1522
        %v1616 = vunpack.c.l.s4 1966171168
        %v1617 = vunpack.c.0.s8 %v1616
        %v1618 = vlaneseq
        %v1619 = vshrl.u32 %v1618, 7
        %v1620 = vsub.s32 %v1617, %v1619
        %v1621 = vrot.slane %v1614, %v1620
        %v1623 = vunpack.c.l.s4 1966171168
        %v1624 = vunpack.c.0.s8 %v1623
        %v1625 = vlaneseq
        %v1626 = vshrl.u32 %v1625, 7
        %v1627 = vsub.s32 %v1624, %v1626
        %v1628 = vrot.slane %v1621, %v1627
        %v1630 = vmul.f32 %v1613, %v1628
        %v1631 = vadd.f32 %v1610, %v1630
        %s1632 = sld [smem:[#allocation9 + $0x2e]]
        %v1633 = vstv %s1632
        %v1634 = vmul.f32 %v1633, %v285
        %1635 = vrot.lane.b32.xlu0 %v1520, 127
        %v1636 = vpop.permute.xlu0 %1635
        %1637 = vrot.lane.b32.xlu0 %v1522, 127
        %v1638 = vpop.permute.xlu0 %1637
        %v1639 = vsel %vm421, %v1636, %v1638
        %v1641 = vsel %vm421, %v1638, 0.0
        %v1643 = vcombine.low %v1639, %v1641
        %v1645 = vunpack.c.l.s4 1966171168
        %v1646 = vunpack.c.0.s8 %v1645
        %v1647 = vlaneseq
        %v1648 = vshrl.u32 %v1647, 7
        %v1649 = vsub.s32 %v1646, %v1648
        %v1650 = vrot.slane %v1643, %v1649
        %v1652 = vunpack.c.l.s4 1966171168
        %v1653 = vunpack.c.0.s8 %v1652
        %v1654 = vlaneseq
        %v1655 = vshrl.u32 %v1654, 7
        %v1656 = vsub.s32 %v1653, %v1655
        %v1657 = vrot.slane %v1650, %v1656
        %v1659 = vmul.f32 %v1634, %v1657
        %v1660 = vadd.f32 %v1631, %v1659
        %s1661 = sld [smem:[#allocation9 + $0x2f]]
        %v1662 = vstv %s1661
        %v1663 = vmul.f32 %v1662, %v287
        %1664 = vrot.lane.b32.xlu0 %v1520, 126
        %v1665 = vpop.permute.xlu0 %1664
        %1666 = vrot.lane.b32.xlu0 %v1522, 126
        %v1667 = vpop.permute.xlu0 %1666
        %v1668 = vsel %vm451, %v1665, %v1667
        %v1670 = vsel %vm451, %v1667, 0.0
        %v1672 = vcombine.low %v1668, %v1670
        %v1674 = vunpack.c.l.s4 1966171168
        %v1675 = vunpack.c.0.s8 %v1674
        %v1676 = vlaneseq
        %v1677 = vshrl.u32 %v1676, 7
        %v1678 = vsub.s32 %v1675, %v1677
        %v1679 = vrot.slane %v1672, %v1678
        %v1681 = vunpack.c.l.s4 1966171168
        %v1682 = vunpack.c.0.s8 %v1681
        %v1683 = vlaneseq
        %v1684 = vshrl.u32 %v1683, 7
        %v1685 = vsub.s32 %v1682, %v1684
        %v1686 = vrot.slane %v1679, %v1685
        %v1688 = vmul.f32 %v1663, %v1686
        %v1689 = vadd.f32 %v1660, %v1688
        %s1690 = sld [smem:[#allocation9 + $0x30]]
        %v1691 = vstv %s1690
        %v1692 = vmul.f32 %v1691, %v289
        %1693 = vrot.lane.b32.xlu0 %v1520, 125
        %v1694 = vpop.permute.xlu0 %1693
        %1695 = vrot.lane.b32.xlu0 %v1522, 125
        %v1696 = vpop.permute.xlu0 %1695
        %v1697 = vsel %vm481, %v1694, %v1696
        %v1699 = vsel %vm481, %v1696, 0.0
        %v1701 = vcombine.low %v1697, %v1699
        %v1703 = vunpack.c.l.s4 1966171168
        %v1704 = vunpack.c.0.s8 %v1703
        %v1705 = vlaneseq
        %v1706 = vshrl.u32 %v1705, 7
        %v1707 = vsub.s32 %v1704, %v1706
        %v1708 = vrot.slane %v1701, %v1707
        %v1710 = vunpack.c.l.s4 1966171168
        %v1711 = vunpack.c.0.s8 %v1710
        %v1712 = vlaneseq
        %v1713 = vshrl.u32 %v1712, 7
        %v1714 = vsub.s32 %v1711, %v1713
        %v1715 = vrot.slane %v1708, %v1714
        %v1717 = vmul.f32 %v1692, %v1715
        %v1718 = vadd.f32 %v1689, %v1717
        %1721 = vrot.lane.b32.xlu0 %v275, 48
        %v1722 = vpop.permute.xlu0 %1721
        %1723 = vrot.lane.b32.xlu0 %v276, 48
        %v1724 = vpop.permute.xlu0 %1723
        %v1725 = vsel %vm298, %v1722, %v1724
        %v1727 = vsel %vm298, 0.0, %v1722
        %s1728 = sld [smem:[#allocation9 + $0x80]]
        %v1729 = vstv %s1728
        %v1730 = vmul.f32 %v1729, %v277
        %1732 = vrot.lane.b32.xlu0 %v1727, 3
        %v1733 = vpop.permute.xlu0 %1732
        %1734 = vrot.lane.b32.xlu0 %v1725, 3
        %v1735 = vpop.permute.xlu0 %1734
        %v1736 = vsel %vm310, %v1733, %v1735
        %v1738 = vsel %vm310, 0.0, %v1733
        %v1740 = vcombine.low %v1738, %v1736
        %v1742 = vunpack.c.l.s4 1966171168
        %v1743 = vunpack.c.0.s8 %v1742
        %v1744 = vlaneseq
        %v1745 = vshrl.u32 %v1744, 7
        %v1746 = vsub.s32 %v1743, %v1745
        %v1747 = vrot.slane %v1740, %v1746
        %v1749 = vunpack.c.l.s4 1966171168
        %v1750 = vunpack.c.0.s8 %v1749
        %v1751 = vlaneseq
        %v1752 = vshrl.u32 %v1751, 7
        %v1753 = vsub.s32 %v1750, %v1752
        %v1754 = vrot.slane %v1747, %v1753
        %v1756 = vmul.f32 %v1730, %v1754
        %v1757 = vadd.f32 %v1718, %v1756
        %s1758 = sld [smem:[#allocation9 + $0x81]]
        %v1759 = vstv %s1758
        %v1760 = vmul.f32 %v1759, %v279
        %1761 = vrot.lane.b32.xlu0 %v1727, 2
        %v1762 = vpop.permute.xlu0 %1761
        %1763 = vrot.lane.b32.xlu0 %v1725, 2
        %v1764 = vpop.permute.xlu0 %1763
        %v1765 = vsel %vm340, %v1762, %v1764
        %v1767 = vsel %vm340, 0.0, %v1762
        %v1769 = vcombine.low %v1767, %v1765
        %v1771 = vunpack.c.l.s4 1966171168
        %v1772 = vunpack.c.0.s8 %v1771
        %v1773 = vlaneseq
        %v1774 = vshrl.u32 %v1773, 7
        %v1775 = vsub.s32 %v1772, %v1774
        %v1776 = vrot.slane %v1769, %v1775
        %v1778 = vunpack.c.l.s4 1966171168
        %v1779 = vunpack.c.0.s8 %v1778
        %v1780 = vlaneseq
        %v1781 = vshrl.u32 %v1780, 7
        %v1782 = vsub.s32 %v1779, %v1781
        %v1783 = vrot.slane %v1776, %v1782
        %v1785 = vmul.f32 %v1760, %v1783
        %v1786 = vadd.f32 %v1757, %v1785
        %s1787 = sld [smem:[#allocation9 + $0x82]]
        %v1788 = vstv %s1787
        %v1789 = vmul.f32 %v1788, %v281
        %1790 = vrot.lane.b32.xlu0 %v1727, 1
        %v1791 = vpop.permute.xlu0 %1790
        %1792 = vrot.lane.b32.xlu0 %v1725, 1
        %v1793 = vpop.permute.xlu0 %1792
        %v1794 = vsel %vm370, %v1791, %v1793
        %v1796 = vsel %vm370, 0.0, %v1791
        %v1798 = vcombine.low %v1796, %v1794
        %v1800 = vunpack.c.l.s4 1966171168
        %v1801 = vunpack.c.0.s8 %v1800
        %v1802 = vlaneseq
        %v1803 = vshrl.u32 %v1802, 7
        %v1804 = vsub.s32 %v1801, %v1803
        %v1805 = vrot.slane %v1798, %v1804
        %v1807 = vunpack.c.l.s4 1966171168
        %v1808 = vunpack.c.0.s8 %v1807
        %v1809 = vlaneseq
        %v1810 = vshrl.u32 %v1809, 7
        %v1811 = vsub.s32 %v1808, %v1810
        %v1812 = vrot.slane %v1805, %v1811
        %v1814 = vmul.f32 %v1789, %v1812
        %v1815 = vadd.f32 %v1786, %v1814
        %s1816 = sld [smem:[#allocation9 + $0x83]]
        %v1817 = vstv %s1816
        %v1818 = vmul.f32 %v1817, %v283
        %v1819 = vcombine.low %v1727, %v1725
        %v1821 = vunpack.c.l.s4 1966171168
        %v1822 = vunpack.c.0.s8 %v1821
        %v1823 = vlaneseq
        %v1824 = vshrl.u32 %v1823, 7
        %v1825 = vsub.s32 %v1822, %v1824
        %v1826 = vrot.slane %v1819, %v1825
        %v1828 = vunpack.c.l.s4 1966171168
        %v1829 = vunpack.c.0.s8 %v1828
        %v1830 = vlaneseq
        %v1831 = vshrl.u32 %v1830, 7
        %v1832 = vsub.s32 %v1829, %v1831
        %v1833 = vrot.slane %v1826, %v1832
        %v1835 = vmul.f32 %v1818, %v1833
        %v1836 = vadd.f32 %v1815, %v1835
        %s1837 = sld [smem:[#allocation9 + $0x84]]
        %v1838 = vstv %s1837
        %v1839 = vmul.f32 %v1838, %v285
        %1840 = vrot.lane.b32.xlu0 %v1727, 127
        %v1841 = vpop.permute.xlu0 %1840
        %1842 = vrot.lane.b32.xlu0 %v1725, 127
        %v1843 = vpop.permute.xlu0 %1842
        %v1844 = vsel %vm421, %v1841, %v1843
        %v1846 = vsel %vm421, %v1843, 0.0
        %v1848 = vcombine.low %v1844, %v1846
        %v1850 = vunpack.c.l.s4 1966171168
        %v1851 = vunpack.c.0.s8 %v1850
        %v1852 = vlaneseq
        %v1853 = vshrl.u32 %v1852, 7
        %v1854 = vsub.s32 %v1851, %v1853
        %v1855 = vrot.slane %v1848, %v1854
        %v1857 = vunpack.c.l.s4 1966171168
        %v1858 = vunpack.c.0.s8 %v1857
        %v1859 = vlaneseq
        %v1860 = vshrl.u32 %v1859, 7
        %v1861 = vsub.s32 %v1858, %v1860
        %v1862 = vrot.slane %v1855, %v1861
        %v1864 = vmul.f32 %v1839, %v1862
        %v1865 = vadd.f32 %v1836, %v1864
        %s1866 = sld [smem:[#allocation9 + $0x85]]
        %v1867 = vstv %s1866
        %v1868 = vmul.f32 %v1867, %v287
        %1869 = vrot.lane.b32.xlu0 %v1727, 126
        %v1870 = vpop.permute.xlu0 %1869
        %1871 = vrot.lane.b32.xlu0 %v1725, 126
        %v1872 = vpop.permute.xlu0 %1871
        %v1873 = vsel %vm451, %v1870, %v1872
        %v1875 = vsel %vm451, %v1872, 0.0
        %v1877 = vcombine.low %v1873, %v1875
        %v1879 = vunpack.c.l.s4 1966171168
        %v1880 = vunpack.c.0.s8 %v1879
        %v1881 = vlaneseq
        %v1882 = vshrl.u32 %v1881, 7
        %v1883 = vsub.s32 %v1880, %v1882
        %v1884 = vrot.slane %v1877, %v1883
        %v1886 = vunpack.c.l.s4 1966171168
        %v1887 = vunpack.c.0.s8 %v1886
        %v1888 = vlaneseq
        %v1889 = vshrl.u32 %v1888, 7
        %v1890 = vsub.s32 %v1887, %v1889
        %v1891 = vrot.slane %v1884, %v1890
        %v1893 = vmul.f32 %v1868, %v1891
        %v1894 = vadd.f32 %v1865, %v1893
        %s1895 = sld [smem:[#allocation9 + $0x86]]
        %v1896 = vstv %s1895
        %v1897 = vmul.f32 %v1896, %v289
        %1898 = vrot.lane.b32.xlu0 %v1727, 125
        %v1899 = vpop.permute.xlu0 %1898
        %1900 = vrot.lane.b32.xlu0 %v1725, 125
        %v1901 = vpop.permute.xlu0 %1900
        %v1902 = vsel %vm481, %v1899, %v1901
        %v1904 = vsel %vm481, %v1901, 0.0
        %v1906 = vcombine.low %v1902, %v1904
        %v1908 = vunpack.c.l.s4 1966171168
        %v1909 = vunpack.c.0.s8 %v1908
        %v1910 = vlaneseq
        %v1911 = vshrl.u32 %v1910, 7
        %v1912 = vsub.s32 %v1909, %v1911
        %v1913 = vrot.slane %v1906, %v1912
        %v1915 = vunpack.c.l.s4 1966171168
        %v1916 = vunpack.c.0.s8 %v1915
        %v1917 = vlaneseq
        %v1918 = vshrl.u32 %v1917, 7
        %v1919 = vsub.s32 %v1916, %v1918
        %v1920 = vrot.slane %v1913, %v1919
        %v1922 = vmul.f32 %v1897, %v1920
        %v1923 = vadd.f32 %v1894, %v1922
        %1924 = vrot.lane.b32.xlu0 %v275, 32
        %v1925 = vpop.permute.xlu0 %1924
        %1926 = vrot.lane.b32.xlu0 %v276, 32
        %v1927 = vpop.permute.xlu0 %1926
        %v1928 = vsel %vm508, %v1925, %v1927
        %v1930 = vsel %vm508, 0.0, %v1925
        %s1931 = sld [smem:[#allocation9 + $0x87]]
        %v1932 = vstv %s1931
        %v1933 = vmul.f32 %v1932, %v277
        %1935 = vrot.lane.b32.xlu0 %v1930, 3
        %v1936 = vpop.permute.xlu0 %1935
        %1937 = vrot.lane.b32.xlu0 %v1928, 3
        %v1938 = vpop.permute.xlu0 %1937
        %v1939 = vsel %vm310, %v1936, %v1938
        %v1941 = vsel %vm310, 0.0, %v1936
        %v1943 = vcombine.low %v1941, %v1939
        %v1945 = vunpack.c.l.s4 1966171168
        %v1946 = vunpack.c.0.s8 %v1945
        %v1947 = vlaneseq
        %v1948 = vshrl.u32 %v1947, 7
        %v1949 = vsub.s32 %v1946, %v1948
        %v1950 = vrot.slane %v1943, %v1949
        %v1952 = vunpack.c.l.s4 1966171168
        %v1953 = vunpack.c.0.s8 %v1952
        %v1954 = vlaneseq
        %v1955 = vshrl.u32 %v1954, 7
        %v1956 = vsub.s32 %v1953, %v1955
        %v1957 = vrot.slane %v1950, %v1956
        %v1959 = vmul.f32 %v1933, %v1957
        %v1960 = vadd.f32 %v1923, %v1959
        %s1961 = sld [smem:[#allocation9 + $0x88]]
        %v1962 = vstv %s1961
        %v1963 = vmul.f32 %v1962, %v279
        %1964 = vrot.lane.b32.xlu0 %v1930, 2
        %v1965 = vpop.permute.xlu0 %1964
        %1966 = vrot.lane.b32.xlu0 %v1928, 2
        %v1967 = vpop.permute.xlu0 %1966
        %v1968 = vsel %vm340, %v1965, %v1967
        %v1970 = vsel %vm340, 0.0, %v1965
        %v1972 = vcombine.low %v1970, %v1968
        %v1974 = vunpack.c.l.s4 1966171168
        %v1975 = vunpack.c.0.s8 %v1974
        %v1976 = vlaneseq
        %v1977 = vshrl.u32 %v1976, 7
        %v1978 = vsub.s32 %v1975, %v1977
        %v1979 = vrot.slane %v1972, %v1978
        %v1981 = vunpack.c.l.s4 1966171168
        %v1982 = vunpack.c.0.s8 %v1981
        %v1983 = vlaneseq
        %v1984 = vshrl.u32 %v1983, 7
        %v1985 = vsub.s32 %v1982, %v1984
        %v1986 = vrot.slane %v1979, %v1985
        %v1988 = vmul.f32 %v1963, %v1986
        %v1989 = vadd.f32 %v1960, %v1988
        %s1990 = sld [smem:[#allocation9 + $0x89]]
        %v1991 = vstv %s1990
        %v1992 = vmul.f32 %v1991, %v281
        %1993 = vrot.lane.b32.xlu0 %v1930, 1
        %v1994 = vpop.permute.xlu0 %1993
        %1995 = vrot.lane.b32.xlu0 %v1928, 1
        %v1996 = vpop.permute.xlu0 %1995
        %v1997 = vsel %vm370, %v1994, %v1996
        %v1999 = vsel %vm370, 0.0, %v1994
        %v2001 = vcombine.low %v1999, %v1997
        %v2003 = vunpack.c.l.s4 1966171168
        %v2004 = vunpack.c.0.s8 %v2003
        %v2005 = vlaneseq
        %v2006 = vshrl.u32 %v2005, 7
        %v2007 = vsub.s32 %v2004, %v2006
        %v2008 = vrot.slane %v2001, %v2007
        %v2010 = vunpack.c.l.s4 1966171168
        %v2011 = vunpack.c.0.s8 %v2010
        %v2012 = vlaneseq
        %v2013 = vshrl.u32 %v2012, 7
        %v2014 = vsub.s32 %v2011, %v2013
        %v2015 = vrot.slane %v2008, %v2014
        %v2017 = vmul.f32 %v1992, %v2015
        %v2018 = vadd.f32 %v1989, %v2017
        %s2019 = sld [smem:[#allocation9 + $0x8a]]
        %v2020 = vstv %s2019
        %v2021 = vmul.f32 %v2020, %v283
        %v2022 = vcombine.low %v1930, %v1928
        %v2024 = vunpack.c.l.s4 1966171168
        %v2025 = vunpack.c.0.s8 %v2024
        %v2026 = vlaneseq
        %v2027 = vshrl.u32 %v2026, 7
        %v2028 = vsub.s32 %v2025, %v2027
        %v2029 = vrot.slane %v2022, %v2028
        %v2031 = vunpack.c.l.s4 1966171168
        %v2032 = vunpack.c.0.s8 %v2031
        %v2033 = vlaneseq
        %v2034 = vshrl.u32 %v2033, 7
        %v2035 = vsub.s32 %v2032, %v2034
        %v2036 = vrot.slane %v2029, %v2035
        %v2038 = vmul.f32 %v2021, %v2036
        %v2039 = vadd.f32 %v2018, %v2038
        %s2040 = sld [smem:[#allocation9 + $0x8b]]
        %v2041 = vstv %s2040
        %v2042 = vmul.f32 %v2041, %v285
        %2043 = vrot.lane.b32.xlu0 %v1930, 127
        %v2044 = vpop.permute.xlu0 %2043
        %2045 = vrot.lane.b32.xlu0 %v1928, 127
        %v2046 = vpop.permute.xlu0 %2045
        %v2047 = vsel %vm421, %v2044, %v2046
        %v2049 = vsel %vm421, %v2046, 0.0
        %v2051 = vcombine.low %v2047, %v2049
        %v2053 = vunpack.c.l.s4 1966171168
        %v2054 = vunpack.c.0.s8 %v2053
        %v2055 = vlaneseq
        %v2056 = vshrl.u32 %v2055, 7
        %v2057 = vsub.s32 %v2054, %v2056
        %v2058 = vrot.slane %v2051, %v2057
        %v2060 = vunpack.c.l.s4 1966171168
        %v2061 = vunpack.c.0.s8 %v2060
        %v2062 = vlaneseq
        %v2063 = vshrl.u32 %v2062, 7
        %v2064 = vsub.s32 %v2061, %v2063
        %v2065 = vrot.slane %v2058, %v2064
        %v2067 = vmul.f32 %v2042, %v2065
        %v2068 = vadd.f32 %v2039, %v2067
        %s2069 = sld [smem:[#allocation9 + $0x8c]]
        %v2070 = vstv %s2069
        %v2071 = vmul.f32 %v2070, %v287
        %2072 = vrot.lane.b32.xlu0 %v1930, 126
        %v2073 = vpop.permute.xlu0 %2072
        %2074 = vrot.lane.b32.xlu0 %v1928, 126
        %v2075 = vpop.permute.xlu0 %2074
        %v2076 = vsel %vm451, %v2073, %v2075
        %v2078 = vsel %vm451, %v2075, 0.0
        %v2080 = vcombine.low %v2076, %v2078
        %v2082 = vunpack.c.l.s4 1966171168
        %v2083 = vunpack.c.0.s8 %v2082
        %v2084 = vlaneseq
        %v2085 = vshrl.u32 %v2084, 7
        %v2086 = vsub.s32 %v2083, %v2085
        %v2087 = vrot.slane %v2080, %v2086
        %v2089 = vunpack.c.l.s4 1966171168
        %v2090 = vunpack.c.0.s8 %v2089
        %v2091 = vlaneseq
        %v2092 = vshrl.u32 %v2091, 7
        %v2093 = vsub.s32 %v2090, %v2092
        %v2094 = vrot.slane %v2087, %v2093
        %v2096 = vmul.f32 %v2071, %v2094
        %v2097 = vadd.f32 %v2068, %v2096
        %s2098 = sld [smem:[#allocation9 + $0x8d]]
        %v2099 = vstv %s2098
        %v2100 = vmul.f32 %v2099, %v289
        %2101 = vrot.lane.b32.xlu0 %v1930, 125
        %v2102 = vpop.permute.xlu0 %2101
        %2103 = vrot.lane.b32.xlu0 %v1928, 125
        %v2104 = vpop.permute.xlu0 %2103
        %v2105 = vsel %vm481, %v2102, %v2104
        %v2107 = vsel %vm481, %v2104, 0.0
        %v2109 = vcombine.low %v2105, %v2107
        %v2111 = vunpack.c.l.s4 1966171168
        %v2112 = vunpack.c.0.s8 %v2111
        %v2113 = vlaneseq
        %v2114 = vshrl.u32 %v2113, 7
        %v2115 = vsub.s32 %v2112, %v2114
        %v2116 = vrot.slane %v2109, %v2115
        %v2118 = vunpack.c.l.s4 1966171168
        %v2119 = vunpack.c.0.s8 %v2118
        %v2120 = vlaneseq
        %v2121 = vshrl.u32 %v2120, 7
        %v2122 = vsub.s32 %v2119, %v2121
        %v2123 = vrot.slane %v2116, %v2122
        %v2125 = vmul.f32 %v2100, %v2123
        %v2126 = vadd.f32 %v2097, %v2125
        %2127 = vrot.lane.b32.xlu0 %v275, 16
        %v2128 = vpop.permute.xlu0 %2127
        %2129 = vrot.lane.b32.xlu0 %v276, 16
        %v2130 = vpop.permute.xlu0 %2129
        %v2131 = vsel %vm712, %v2128, %v2130
        %v2133 = vsel %vm712, 0.0, %v2128
        %s2134 = sld [smem:[#allocation9 + $0x8e]]
        %v2135 = vstv %s2134
        %v2136 = vmul.f32 %v2135, %v277
        %2138 = vrot.lane.b32.xlu0 %v2133, 3
        %v2139 = vpop.permute.xlu0 %2138
        %2140 = vrot.lane.b32.xlu0 %v2131, 3
        %v2141 = vpop.permute.xlu0 %2140
        %v2142 = vsel %vm310, %v2139, %v2141
        %v2144 = vsel %vm310, 0.0, %v2139
        %v2146 = vcombine.low %v2144, %v2142
        %v2148 = vunpack.c.l.s4 1966171168
        %v2149 = vunpack.c.0.s8 %v2148
        %v2150 = vlaneseq
        %v2151 = vshrl.u32 %v2150, 7
        %v2152 = vsub.s32 %v2149, %v2151
        %v2153 = vrot.slane %v2146, %v2152
        %v2155 = vunpack.c.l.s4 1966171168
        %v2156 = vunpack.c.0.s8 %v2155
        %v2157 = vlaneseq
        %v2158 = vshrl.u32 %v2157, 7
        %v2159 = vsub.s32 %v2156, %v2158
        %v2160 = vrot.slane %v2153, %v2159
        %v2162 = vmul.f32 %v2136, %v2160
        %v2163 = vadd.f32 %v2126, %v2162
        %s2164 = sld [smem:[#allocation9 + $0x8f]]
        %v2165 = vstv %s2164
        %v2166 = vmul.f32 %v2165, %v279
        %2167 = vrot.lane.b32.xlu0 %v2133, 2
        %v2168 = vpop.permute.xlu0 %2167
        %2169 = vrot.lane.b32.xlu0 %v2131, 2
        %v2170 = vpop.permute.xlu0 %2169
        %v2171 = vsel %vm340, %v2168, %v2170
        %v2173 = vsel %vm340, 0.0, %v2168
        %v2175 = vcombine.low %v2173, %v2171
        %v2177 = vunpack.c.l.s4 1966171168
        %v2178 = vunpack.c.0.s8 %v2177
        %v2179 = vlaneseq
        %v2180 = vshrl.u32 %v2179, 7
        %v2181 = vsub.s32 %v2178, %v2180
        %v2182 = vrot.slane %v2175, %v2181
        %v2184 = vunpack.c.l.s4 1966171168
        %v2185 = vunpack.c.0.s8 %v2184
        %v2186 = vlaneseq
        %v2187 = vshrl.u32 %v2186, 7
        %v2188 = vsub.s32 %v2185, %v2187
        %v2189 = vrot.slane %v2182, %v2188
        %v2191 = vmul.f32 %v2166, %v2189
        %v2192 = vadd.f32 %v2163, %v2191
        %s2193 = sld [smem:[#allocation9 + $0x90]]
        %v2194 = vstv %s2193
        %v2195 = vmul.f32 %v2194, %v281
        %2196 = vrot.lane.b32.xlu0 %v2133, 1
        %v2197 = vpop.permute.xlu0 %2196
        %2198 = vrot.lane.b32.xlu0 %v2131, 1
        %v2199 = vpop.permute.xlu0 %2198
        %v2200 = vsel %vm370, %v2197, %v2199
        %v2202 = vsel %vm370, 0.0, %v2197
        %v2204 = vcombine.low %v2202, %v2200
        %v2206 = vunpack.c.l.s4 1966171168
        %v2207 = vunpack.c.0.s8 %v2206
        %v2208 = vlaneseq
        %v2209 = vshrl.u32 %v2208, 7
        %v2210 = vsub.s32 %v2207, %v2209
        %v2211 = vrot.slane %v2204, %v2210
        %v2213 = vunpack.c.l.s4 1966171168
        %v2214 = vunpack.c.0.s8 %v2213
        %v2215 = vlaneseq
        %v2216 = vshrl.u32 %v2215, 7
        %v2217 = vsub.s32 %v2214, %v2216
        %v2218 = vrot.slane %v2211, %v2217
        %v2220 = vmul.f32 %v2195, %v2218
        %v2221 = vadd.f32 %v2192, %v2220
        %s2222 = sld [smem:[#allocation9 + $0x91]]
        %v2223 = vstv %s2222
        %v2224 = vmul.f32 %v2223, %v283
        %v2225 = vcombine.low %v2133, %v2131
        %v2227 = vunpack.c.l.s4 1966171168
        %v2228 = vunpack.c.0.s8 %v2227
        %v2229 = vlaneseq
        %v2230 = vshrl.u32 %v2229, 7
        %v2231 = vsub.s32 %v2228, %v2230
        %v2232 = vrot.slane %v2225, %v2231
        %v2234 = vunpack.c.l.s4 1966171168
        %v2235 = vunpack.c.0.s8 %v2234
        %v2236 = vlaneseq
        %v2237 = vshrl.u32 %v2236, 7
        %v2238 = vsub.s32 %v2235, %v2237
        %v2239 = vrot.slane %v2232, %v2238
        %v2241 = vmul.f32 %v2224, %v2239
        %v2242 = vadd.f32 %v2221, %v2241
        %s2243 = sld [smem:[#allocation9 + $0x92]]
        %v2244 = vstv %s2243
        %v2245 = vmul.f32 %v2244, %v285
        %2246 = vrot.lane.b32.xlu0 %v2133, 127
        %v2247 = vpop.permute.xlu0 %2246
        %2248 = vrot.lane.b32.xlu0 %v2131, 127
        %v2249 = vpop.permute.xlu0 %2248
        %v2250 = vsel %vm421, %v2247, %v2249
        %v2252 = vsel %vm421, %v2249, 0.0
        %v2254 = vcombine.low %v2250, %v2252
        %v2256 = vunpack.c.l.s4 1966171168
        %v2257 = vunpack.c.0.s8 %v2256
        %v2258 = vlaneseq
        %v2259 = vshrl.u32 %v2258, 7
        %v2260 = vsub.s32 %v2257, %v2259
        %v2261 = vrot.slane %v2254, %v2260
        %v2263 = vunpack.c.l.s4 1966171168
        %v2264 = vunpack.c.0.s8 %v2263
        %v2265 = vlaneseq
        %v2266 = vshrl.u32 %v2265, 7
        %v2267 = vsub.s32 %v2264, %v2266
        %v2268 = vrot.slane %v2261, %v2267
        %v2270 = vmul.f32 %v2245, %v2268
        %v2271 = vadd.f32 %v2242, %v2270
        %s2272 = sld [smem:[#allocation9 + $0x93]]
        %v2273 = vstv %s2272
        %v2274 = vmul.f32 %v2273, %v287
        %2275 = vrot.lane.b32.xlu0 %v2133, 126
        %v2276 = vpop.permute.xlu0 %2275
        %2277 = vrot.lane.b32.xlu0 %v2131, 126
        %v2278 = vpop.permute.xlu0 %2277
        %v2279 = vsel %vm451, %v2276, %v2278
        %v2281 = vsel %vm451, %v2278, 0.0
        %v2283 = vcombine.low %v2279, %v2281
        %v2285 = vunpack.c.l.s4 1966171168
        %v2286 = vunpack.c.0.s8 %v2285
        %v2287 = vlaneseq
        %v2288 = vshrl.u32 %v2287, 7
        %v2289 = vsub.s32 %v2286, %v2288
        %v2290 = vrot.slane %v2283, %v2289
        %v2292 = vunpack.c.l.s4 1966171168
        %v2293 = vunpack.c.0.s8 %v2292
        %v2294 = vlaneseq
        %v2295 = vshrl.u32 %v2294, 7
        %v2296 = vsub.s32 %v2293, %v2295
        %v2297 = vrot.slane %v2290, %v2296
        %v2299 = vmul.f32 %v2274, %v2297
        %v2300 = vadd.f32 %v2271, %v2299
        %s2301 = sld [smem:[#allocation9 + $0x94]]
        %v2302 = vstv %s2301
        %v2303 = vmul.f32 %v2302, %v289
        %2304 = vrot.lane.b32.xlu0 %v2133, 125
        %v2305 = vpop.permute.xlu0 %2304
        %2306 = vrot.lane.b32.xlu0 %v2131, 125
        %v2307 = vpop.permute.xlu0 %2306
        %v2308 = vsel %vm481, %v2305, %v2307
        %v2310 = vsel %vm481, %v2307, 0.0
        %v2312 = vcombine.low %v2308, %v2310
        %v2314 = vunpack.c.l.s4 1966171168
        %v2315 = vunpack.c.0.s8 %v2314
        %v2316 = vlaneseq
        %v2317 = vshrl.u32 %v2316, 7
        %v2318 = vsub.s32 %v2315, %v2317
        %v2319 = vrot.slane %v2312, %v2318
        %v2321 = vunpack.c.l.s4 1966171168
        %v2322 = vunpack.c.0.s8 %v2321
        %v2323 = vlaneseq
        %v2324 = vshrl.u32 %v2323, 7
        %v2325 = vsub.s32 %v2322, %v2324
        %v2326 = vrot.slane %v2319, %v2325
        %v2328 = vmul.f32 %v2303, %v2326
        %v2329 = vadd.f32 %v2300, %v2328
        %s2330 = sld [smem:[#allocation9 + $0x95]]
        %v2331 = vstv %s2330
        %v2332 = vmul.f32 %v2331, %v277
        %2333 = vrot.lane.b32.xlu0 %v275, 3
        %v2334 = vpop.permute.xlu0 %2333
        %2335 = vrot.lane.b32.xlu0 %v276, 3
        %v2336 = vpop.permute.xlu0 %2335
        %v2337 = vsel %vm310, %v2334, %v2336
        %v2339 = vsel %vm310, 0.0, %v2334
        %v2341 = vcombine.low %v2339, %v2337
        %v2343 = vunpack.c.l.s4 1966171168
        %v2344 = vunpack.c.0.s8 %v2343
        %v2345 = vlaneseq
        %v2346 = vshrl.u32 %v2345, 7
        %v2347 = vsub.s32 %v2344, %v2346
        %v2348 = vrot.slane %v2341, %v2347
        %v2350 = vunpack.c.l.s4 1966171168
        %v2351 = vunpack.c.0.s8 %v2350
        %v2352 = vlaneseq
        %v2353 = vshrl.u32 %v2352, 7
        %v2354 = vsub.s32 %v2351, %v2353
        %v2355 = vrot.slane %v2348, %v2354
        %v2357 = vmul.f32 %v2332, %v2355
        %v2358 = vadd.f32 %v2329, %v2357
        %s2359 = sld [smem:[#allocation9 + $0x96]]
        %v2360 = vstv %s2359
        %v2361 = vmul.f32 %v2360, %v279
        %2362 = vrot.lane.b32.xlu0 %v275, 2
        %v2363 = vpop.permute.xlu0 %2362
        %2364 = vrot.lane.b32.xlu0 %v276, 2
        %v2365 = vpop.permute.xlu0 %2364
        %v2366 = vsel %vm340, %v2363, %v2365
        %v2368 = vsel %vm340, 0.0, %v2363
        %v2370 = vcombine.low %v2368, %v2366
        %v2372 = vunpack.c.l.s4 1966171168
        %v2373 = vunpack.c.0.s8 %v2372
        %v2374 = vlaneseq
        %v2375 = vshrl.u32 %v2374, 7
        %v2376 = vsub.s32 %v2373, %v2375
        %v2377 = vrot.slane %v2370, %v2376
        %v2379 = vunpack.c.l.s4 1966171168
        %v2380 = vunpack.c.0.s8 %v2379
        %v2381 = vlaneseq
        %v2382 = vshrl.u32 %v2381, 7
        %v2383 = vsub.s32 %v2380, %v2382
        %v2384 = vrot.slane %v2377, %v2383
        %v2386 = vmul.f32 %v2361, %v2384
        %v2387 = vadd.f32 %v2358, %v2386
        %s2388 = sld [smem:[#allocation9 + $0x97]]
        %v2389 = vstv %s2388
        %v2390 = vmul.f32 %v2389, %v281
        %2391 = vrot.lane.b32.xlu0 %v275, 1
        %v2392 = vpop.permute.xlu0 %2391
        %2393 = vrot.lane.b32.xlu0 %v276, 1
        %v2394 = vpop.permute.xlu0 %2393
        %v2395 = vsel %vm370, %v2392, %v2394
        %v2397 = vsel %vm370, 0.0, %v2392
        %v2399 = vcombine.low %v2397, %v2395
        %v2401 = vunpack.c.l.s4 1966171168
        %v2402 = vunpack.c.0.s8 %v2401
        %v2403 = vlaneseq
        %v2404 = vshrl.u32 %v2403, 7
        %v2405 = vsub.s32 %v2402, %v2404
        %v2406 = vrot.slane %v2399, %v2405
        %v2408 = vunpack.c.l.s4 1966171168
        %v2409 = vunpack.c.0.s8 %v2408
        %v2410 = vlaneseq
        %v2411 = vshrl.u32 %v2410, 7
        %v2412 = vsub.s32 %v2409, %v2411
        %v2413 = vrot.slane %v2406, %v2412
        %v2415 = vmul.f32 %v2390, %v2413
        %v2416 = vadd.f32 %v2387, %v2415
        %s2417 = sld [smem:[#allocation9 + $0x98]]
        %v2418 = vstv %s2417
        %v2419 = vmul.f32 %v2418, %v283
        %v2420 = vcombine.low %v275, %v276
        %v2422 = vunpack.c.l.s4 1966171168
        %v2423 = vunpack.c.0.s8 %v2422
        %v2424 = vlaneseq
        %v2425 = vshrl.u32 %v2424, 7
        %v2426 = vsub.s32 %v2423, %v2425
        %v2427 = vrot.slane %v2420, %v2426
        %v2429 = vunpack.c.l.s4 1966171168
        %v2430 = vunpack.c.0.s8 %v2429
        %v2431 = vlaneseq
        %v2432 = vshrl.u32 %v2431, 7
        %v2433 = vsub.s32 %v2430, %v2432
        %v2434 = vrot.slane %v2427, %v2433
        %v2436 = vmul.f32 %v2419, %v2434
        %v2437 = vadd.f32 %v2416, %v2436
        %s2438 = sld [smem:[#allocation9 + $0x99]]
        %v2439 = vstv %s2438
        %v2440 = vmul.f32 %v2439, %v285
        %2441 = vrot.lane.b32.xlu0 %v275, 127
        %v2442 = vpop.permute.xlu0 %2441
        %2443 = vrot.lane.b32.xlu0 %v276, 127
        %v2444 = vpop.permute.xlu0 %2443
        %v2445 = vsel %vm421, %v2442, %v2444
        %v2447 = vsel %vm421, %v2444, 0.0
        %v2449 = vcombine.low %v2445, %v2447
        %v2451 = vunpack.c.l.s4 1966171168
        %v2452 = vunpack.c.0.s8 %v2451
        %v2453 = vlaneseq
        %v2454 = vshrl.u32 %v2453, 7
        %v2455 = vsub.s32 %v2452, %v2454
        %v2456 = vrot.slane %v2449, %v2455
        %v2458 = vunpack.c.l.s4 1966171168
        %v2459 = vunpack.c.0.s8 %v2458
        %v2460 = vlaneseq
        %v2461 = vshrl.u32 %v2460, 7
        %v2462 = vsub.s32 %v2459, %v2461
        %v2463 = vrot.slane %v2456, %v2462
        %v2465 = vmul.f32 %v2440, %v2463
        %v2466 = vadd.f32 %v2437, %v2465
        %s2467 = sld [smem:[#allocation9 + $0x9a]]
        %v2468 = vstv %s2467
        %v2469 = vmul.f32 %v2468, %v287
        %2470 = vrot.lane.b32.xlu0 %v275, 126
        %v2471 = vpop.permute.xlu0 %2470
        %2472 = vrot.lane.b32.xlu0 %v276, 126
        %v2473 = vpop.permute.xlu0 %2472
        %v2474 = vsel %vm451, %v2471, %v2473
        %v2476 = vsel %vm451, %v2473, 0.0
        %v2478 = vcombine.low %v2474, %v2476
        %v2480 = vunpack.c.l.s4 1966171168
        %v2481 = vunpack.c.0.s8 %v2480
        %v2482 = vlaneseq
        %v2483 = vshrl.u32 %v2482, 7
        %v2484 = vsub.s32 %v2481, %v2483
        %v2485 = vrot.slane %v2478, %v2484
        %v2487 = vunpack.c.l.s4 1966171168
        %v2488 = vunpack.c.0.s8 %v2487
        %v2489 = vlaneseq
        %v2490 = vshrl.u32 %v2489, 7
        %v2491 = vsub.s32 %v2488, %v2490
        %v2492 = vrot.slane %v2485, %v2491
        %v2494 = vmul.f32 %v2469, %v2492
        %v2495 = vadd.f32 %v2466, %v2494
        %s2496 = sld [smem:[#allocation9 + $0x9b]]
        %v2497 = vstv %s2496
        %v2498 = vmul.f32 %v2497, %v289
        %2499 = vrot.lane.b32.xlu0 %v275, 125
        %v2500 = vpop.permute.xlu0 %2499
        %2501 = vrot.lane.b32.xlu0 %v276, 125
        %v2502 = vpop.permute.xlu0 %2501
        %v2503 = vsel %vm481, %v2500, %v2502
        %v2505 = vsel %vm481, %v2502, 0.0
        %v2507 = vcombine.low %v2503, %v2505
        %v2509 = vunpack.c.l.s4 1966171168
        %v2510 = vunpack.c.0.s8 %v2509
        %v2511 = vlaneseq
        %v2512 = vshrl.u32 %v2511, 7
        %v2513 = vsub.s32 %v2510, %v2512
        %v2514 = vrot.slane %v2507, %v2513
        %v2516 = vunpack.c.l.s4 1966171168
        %v2517 = vunpack.c.0.s8 %v2516
        %v2518 = vlaneseq
        %v2519 = vshrl.u32 %v2518, 7
        %v2520 = vsub.s32 %v2517, %v2519
        %v2521 = vrot.slane %v2514, %v2520
        %v2523 = vmul.f32 %v2498, %v2521
        %v2524 = vadd.f32 %v2495, %v2523
        %2525 = vrot.lane.b32.xlu0 %v275, 112
        %v2526 = vpop.permute.xlu0 %2525
        %2527 = vrot.lane.b32.xlu0 %v276, 112
        %v2528 = vpop.permute.xlu0 %2527
        %v2529 = vsel %vm1111, %v2526, %v2528
        %v2531 = vsel %vm1111, %v2528, 0.0
        %s2532 = sld [smem:[#allocation9 + $0x9c]]
        %v2533 = vstv %s2532
        %v2534 = vmul.f32 %v2533, %v277
        %2536 = vrot.lane.b32.xlu0 %v2529, 3
        %v2537 = vpop.permute.xlu0 %2536
        %2538 = vrot.lane.b32.xlu0 %v2531, 3
        %v2539 = vpop.permute.xlu0 %2538
        %v2540 = vsel %vm310, %v2537, %v2539
        %v2542 = vsel %vm310, 0.0, %v2537
        %v2544 = vcombine.low %v2542, %v2540
        %v2546 = vunpack.c.l.s4 1966171168
        %v2547 = vunpack.c.0.s8 %v2546
        %v2548 = vlaneseq
        %v2549 = vshrl.u32 %v2548, 7
        %v2550 = vsub.s32 %v2547, %v2549
        %v2551 = vrot.slane %v2544, %v2550
        %v2553 = vunpack.c.l.s4 1966171168
        %v2554 = vunpack.c.0.s8 %v2553
        %v2555 = vlaneseq
        %v2556 = vshrl.u32 %v2555, 7
        %v2557 = vsub.s32 %v2554, %v2556
        %v2558 = vrot.slane %v2551, %v2557
        %v2560 = vmul.f32 %v2534, %v2558
        %v2561 = vadd.f32 %v2524, %v2560
        %s2562 = sld [smem:[#allocation9 + $0x9d]]
        %v2563 = vstv %s2562
        %v2564 = vmul.f32 %v2563, %v279
        %2565 = vrot.lane.b32.xlu0 %v2529, 2
        %v2566 = vpop.permute.xlu0 %2565
        %2567 = vrot.lane.b32.xlu0 %v2531, 2
        %v2568 = vpop.permute.xlu0 %2567
        %v2569 = vsel %vm340, %v2566, %v2568
        %v2571 = vsel %vm340, 0.0, %v2566
        %v2573 = vcombine.low %v2571, %v2569
        %v2575 = vunpack.c.l.s4 1966171168
        %v2576 = vunpack.c.0.s8 %v2575
        %v2577 = vlaneseq
        %v2578 = vshrl.u32 %v2577, 7
        %v2579 = vsub.s32 %v2576, %v2578
        %v2580 = vrot.slane %v2573, %v2579
        %v2582 = vunpack.c.l.s4 1966171168
        %v2583 = vunpack.c.0.s8 %v2582
        %v2584 = vlaneseq
        %v2585 = vshrl.u32 %v2584, 7
        %v2586 = vsub.s32 %v2583, %v2585
        %v2587 = vrot.slane %v2580, %v2586
        %v2589 = vmul.f32 %v2564, %v2587
        %v2590 = vadd.f32 %v2561, %v2589
        %s2591 = sld [smem:[#allocation9 + $0x9e]]
        %v2592 = vstv %s2591
        %v2593 = vmul.f32 %v2592, %v281
        %2594 = vrot.lane.b32.xlu0 %v2529, 1
        %v2595 = vpop.permute.xlu0 %2594
        %2596 = vrot.lane.b32.xlu0 %v2531, 1
        %v2597 = vpop.permute.xlu0 %2596
        %v2598 = vsel %vm370, %v2595, %v2597
        %v2600 = vsel %vm370, 0.0, %v2595
        %v2602 = vcombine.low %v2600, %v2598
        %v2604 = vunpack.c.l.s4 1966171168
        %v2605 = vunpack.c.0.s8 %v2604
        %v2606 = vlaneseq
        %v2607 = vshrl.u32 %v2606, 7
        %v2608 = vsub.s32 %v2605, %v2607
        %v2609 = vrot.slane %v2602, %v2608
        %v2611 = vunpack.c.l.s4 1966171168
        %v2612 = vunpack.c.0.s8 %v2611
        %v2613 = vlaneseq
        %v2614 = vshrl.u32 %v2613, 7
        %v2615 = vsub.s32 %v2612, %v2614
        %v2616 = vrot.slane %v2609, %v2615
        %v2618 = vmul.f32 %v2593, %v2616
        %v2619 = vadd.f32 %v2590, %v2618
        %s2620 = sld [smem:[#allocation9 + $0x9f]]
        %v2621 = vstv %s2620
        %v2622 = vmul.f32 %v2621, %v283
        %v2623 = vcombine.low %v2529, %v2531
        %v2625 = vunpack.c.l.s4 1966171168
        %v2626 = vunpack.c.0.s8 %v2625
        %v2627 = vlaneseq
        %v2628 = vshrl.u32 %v2627, 7
        %v2629 = vsub.s32 %v2626, %v2628
        %v2630 = vrot.slane %v2623, %v2629
        %v2632 = vunpack.c.l.s4 1966171168
        %v2633 = vunpack.c.0.s8 %v2632
        %v2634 = vlaneseq
        %v2635 = vshrl.u32 %v2634, 7
        %v2636 = vsub.s32 %v2633, %v2635
        %v2637 = vrot.slane %v2630, %v2636
        %v2639 = vmul.f32 %v2622, %v2637
        %v2640 = vadd.f32 %v2619, %v2639
        %s2641 = sld [smem:[#allocation9 + $0xa0]]
        %v2642 = vstv %s2641
        %v2643 = vmul.f32 %v2642, %v285
        %2644 = vrot.lane.b32.xlu0 %v2529, 127
        %v2645 = vpop.permute.xlu0 %2644
        %2646 = vrot.lane.b32.xlu0 %v2531, 127
        %v2647 = vpop.permute.xlu0 %2646
        %v2648 = vsel %vm421, %v2645, %v2647
        %v2650 = vsel %vm421, %v2647, 0.0
        %v2652 = vcombine.low %v2648, %v2650
        %v2654 = vunpack.c.l.s4 1966171168
        %v2655 = vunpack.c.0.s8 %v2654
        %v2656 = vlaneseq
        %v2657 = vshrl.u32 %v2656, 7
        %v2658 = vsub.s32 %v2655, %v2657
        %v2659 = vrot.slane %v2652, %v2658
        %v2661 = vunpack.c.l.s4 1966171168
        %v2662 = vunpack.c.0.s8 %v2661
        %v2663 = vlaneseq
        %v2664 = vshrl.u32 %v2663, 7
        %v2665 = vsub.s32 %v2662, %v2664
        %v2666 = vrot.slane %v2659, %v2665
        %v2668 = vmul.f32 %v2643, %v2666
        %v2669 = vadd.f32 %v2640, %v2668
        %s2670 = sld [smem:[#allocation9 + $0xa1]]
        %v2671 = vstv %s2670
        %v2672 = vmul.f32 %v2671, %v287
        %2673 = vrot.lane.b32.xlu0 %v2529, 126
        %v2674 = vpop.permute.xlu0 %2673
        %2675 = vrot.lane.b32.xlu0 %v2531, 126
        %v2676 = vpop.permute.xlu0 %2675
        %v2677 = vsel %vm451, %v2674, %v2676
        %v2679 = vsel %vm451, %v2676, 0.0
        %v2681 = vcombine.low %v2677, %v2679
        %v2683 = vunpack.c.l.s4 1966171168
        %v2684 = vunpack.c.0.s8 %v2683
        %v2685 = vlaneseq
        %v2686 = vshrl.u32 %v2685, 7
        %v2687 = vsub.s32 %v2684, %v2686
        %v2688 = vrot.slane %v2681, %v2687
        %v2690 = vunpack.c.l.s4 1966171168
        %v2691 = vunpack.c.0.s8 %v2690
        %v2692 = vlaneseq
        %v2693 = vshrl.u32 %v2692, 7
        %v2694 = vsub.s32 %v2691, %v2693
        %v2695 = vrot.slane %v2688, %v2694
        %v2697 = vmul.f32 %v2672, %v2695
        %v2698 = vadd.f32 %v2669, %v2697
        %s2699 = sld [smem:[#allocation9 + $0xa2]]
        %v2700 = vstv %s2699
        %v2701 = vmul.f32 %v2700, %v289
        %2702 = vrot.lane.b32.xlu0 %v2529, 125
        %v2703 = vpop.permute.xlu0 %2702
        %2704 = vrot.lane.b32.xlu0 %v2531, 125
        %v2705 = vpop.permute.xlu0 %2704
        %v2706 = vsel %vm481, %v2703, %v2705
        %v2708 = vsel %vm481, %v2705, 0.0
        %v2710 = vcombine.low %v2706, %v2708
        %v2712 = vunpack.c.l.s4 1966171168
        %v2713 = vunpack.c.0.s8 %v2712
        %v2714 = vlaneseq
        %v2715 = vshrl.u32 %v2714, 7
        %v2716 = vsub.s32 %v2713, %v2715
        %v2717 = vrot.slane %v2710, %v2716
        %v2719 = vunpack.c.l.s4 1966171168
        %v2720 = vunpack.c.0.s8 %v2719
        %v2721 = vlaneseq
        %v2722 = vshrl.u32 %v2721, 7
        %v2723 = vsub.s32 %v2720, %v2722
        %v2724 = vrot.slane %v2717, %v2723
        %v2726 = vmul.f32 %v2701, %v2724
        %v2727 = vadd.f32 %v2698, %v2726
        %2728 = vrot.lane.b32.xlu0 %v275, 96
        %v2729 = vpop.permute.xlu0 %2728
        %2730 = vrot.lane.b32.xlu0 %v276, 96
        %v2731 = vpop.permute.xlu0 %2730
        %v2732 = vsel %vm1315, %v2729, %v2731
        %v2734 = vsel %vm1315, %v2731, 0.0
        %s2735 = sld [smem:[#allocation9 + $0xa3]]
        %v2736 = vstv %s2735
        %v2737 = vmul.f32 %v2736, %v277
        %2739 = vrot.lane.b32.xlu0 %v2732, 3
        %v2740 = vpop.permute.xlu0 %2739
        %2741 = vrot.lane.b32.xlu0 %v2734, 3
        %v2742 = vpop.permute.xlu0 %2741
        %v2743 = vsel %vm310, %v2740, %v2742
        %v2745 = vsel %vm310, 0.0, %v2740
        %v2747 = vcombine.low %v2745, %v2743
        %v2749 = vunpack.c.l.s4 1966171168
        %v2750 = vunpack.c.0.s8 %v2749
        %v2751 = vlaneseq
        %v2752 = vshrl.u32 %v2751, 7
        %v2753 = vsub.s32 %v2750, %v2752
        %v2754 = vrot.slane %v2747, %v2753
        %v2756 = vunpack.c.l.s4 1966171168
        %v2757 = vunpack.c.0.s8 %v2756
        %v2758 = vlaneseq
        %v2759 = vshrl.u32 %v2758, 7
        %v2760 = vsub.s32 %v2757, %v2759
        %v2761 = vrot.slane %v2754, %v2760
        %v2763 = vmul.f32 %v2737, %v2761
        %v2764 = vadd.f32 %v2727, %v2763
        %s2765 = sld [smem:[#allocation9 + $0xa4]]
        %v2766 = vstv %s2765
        %v2767 = vmul.f32 %v2766, %v279
        %2768 = vrot.lane.b32.xlu0 %v2732, 2
        %v2769 = vpop.permute.xlu0 %2768
        %2770 = vrot.lane.b32.xlu0 %v2734, 2
        %v2771 = vpop.permute.xlu0 %2770
        %v2772 = vsel %vm340, %v2769, %v2771
        %v2774 = vsel %vm340, 0.0, %v2769
        %v2776 = vcombine.low %v2774, %v2772
        %v2778 = vunpack.c.l.s4 1966171168
        %v2779 = vunpack.c.0.s8 %v2778
        %v2780 = vlaneseq
        %v2781 = vshrl.u32 %v2780, 7
        %v2782 = vsub.s32 %v2779, %v2781
        %v2783 = vrot.slane %v2776, %v2782
        %v2785 = vunpack.c.l.s4 1966171168
        %v2786 = vunpack.c.0.s8 %v2785
        %v2787 = vlaneseq
        %v2788 = vshrl.u32 %v2787, 7
        %v2789 = vsub.s32 %v2786, %v2788
        %v2790 = vrot.slane %v2783, %v2789
        %v2792 = vmul.f32 %v2767, %v2790
        %v2793 = vadd.f32 %v2764, %v2792
        %s2794 = sld [smem:[#allocation9 + $0xa5]]
        %v2795 = vstv %s2794
        %v2796 = vmul.f32 %v2795, %v281
        %2797 = vrot.lane.b32.xlu0 %v2732, 1
        %v2798 = vpop.permute.xlu0 %2797
        %2799 = vrot.lane.b32.xlu0 %v2734, 1
        %v2800 = vpop.permute.xlu0 %2799
        %v2801 = vsel %vm370, %v2798, %v2800
        %v2803 = vsel %vm370, 0.0, %v2798
        %v2805 = vcombine.low %v2803, %v2801
        %v2807 = vunpack.c.l.s4 1966171168
        %v2808 = vunpack.c.0.s8 %v2807
        %v2809 = vlaneseq
        %v2810 = vshrl.u32 %v2809, 7
        %v2811 = vsub.s32 %v2808, %v2810
        %v2812 = vrot.slane %v2805, %v2811
        %v2814 = vunpack.c.l.s4 1966171168
        %v2815 = vunpack.c.0.s8 %v2814
        %v2816 = vlaneseq
        %v2817 = vshrl.u32 %v2816, 7
        %v2818 = vsub.s32 %v2815, %v2817
        %v2819 = vrot.slane %v2812, %v2818
        %v2821 = vmul.f32 %v2796, %v2819
        %v2822 = vadd.f32 %v2793, %v2821
        %s2823 = sld [smem:[#allocation9 + $0xa6]]
        %v2824 = vstv %s2823
        %v2825 = vmul.f32 %v2824, %v283
        %v2826 = vcombine.low %v2732, %v2734
        %v2828 = vunpack.c.l.s4 1966171168
        %v2829 = vunpack.c.0.s8 %v2828
        %v2830 = vlaneseq
        %v2831 = vshrl.u32 %v2830, 7
        %v2832 = vsub.s32 %v2829, %v2831
        %v2833 = vrot.slane %v2826, %v2832
        %v2835 = vunpack.c.l.s4 1966171168
        %v2836 = vunpack.c.0.s8 %v2835
        %v2837 = vlaneseq
        %v2838 = vshrl.u32 %v2837, 7
        %v2839 = vsub.s32 %v2836, %v2838
        %v2840 = vrot.slane %v2833, %v2839
        %v2842 = vmul.f32 %v2825, %v2840
        %v2843 = vadd.f32 %v2822, %v2842
        %s2844 = sld [smem:[#allocation9 + $0xa7]]
        %v2845 = vstv %s2844
        %v2846 = vmul.f32 %v2845, %v285
        %2847 = vrot.lane.b32.xlu0 %v2732, 127
        %v2848 = vpop.permute.xlu0 %2847
        %2849 = vrot.lane.b32.xlu0 %v2734, 127
        %v2850 = vpop.permute.xlu0 %2849
        %v2851 = vsel %vm421, %v2848, %v2850
        %v2853 = vsel %vm421, %v2850, 0.0
        %v2855 = vcombine.low %v2851, %v2853
        %v2857 = vunpack.c.l.s4 1966171168
        %v2858 = vunpack.c.0.s8 %v2857
        %v2859 = vlaneseq
        %v2860 = vshrl.u32 %v2859, 7
        %v2861 = vsub.s32 %v2858, %v2860
        %v2862 = vrot.slane %v2855, %v2861
        %v2864 = vunpack.c.l.s4 1966171168
        %v2865 = vunpack.c.0.s8 %v2864
        %v2866 = vlaneseq
        %v2867 = vshrl.u32 %v2866, 7
        %v2868 = vsub.s32 %v2865, %v2867
        %v2869 = vrot.slane %v2862, %v2868
        %v2871 = vmul.f32 %v2846, %v2869
        %v2872 = vadd.f32 %v2843, %v2871
        %s2873 = sld [smem:[#allocation9 + $0xa8]]
        %v2874 = vstv %s2873
        %v2875 = vmul.f32 %v2874, %v287
        %2876 = vrot.lane.b32.xlu0 %v2732, 126
        %v2877 = vpop.permute.xlu0 %2876
        %2878 = vrot.lane.b32.xlu0 %v2734, 126
        %v2879 = vpop.permute.xlu0 %2878
        %v2880 = vsel %vm451, %v2877, %v2879
        %v2882 = vsel %vm451, %v2879, 0.0
        %v2884 = vcombine.low %v2880, %v2882
        %v2886 = vunpack.c.l.s4 1966171168
        %v2887 = vunpack.c.0.s8 %v2886
        %v2888 = vlaneseq
        %v2889 = vshrl.u32 %v2888, 7
        %v2890 = vsub.s32 %v2887, %v2889
        %v2891 = vrot.slane %v2884, %v2890
        %v2893 = vunpack.c.l.s4 1966171168
        %v2894 = vunpack.c.0.s8 %v2893
        %v2895 = vlaneseq
        %v2896 = vshrl.u32 %v2895, 7
        %v2897 = vsub.s32 %v2894, %v2896
        %v2898 = vrot.slane %v2891, %v2897
        %v2900 = vmul.f32 %v2875, %v2898
        %v2901 = vadd.f32 %v2872, %v2900
        %s2902 = sld [smem:[#allocation9 + $0xa9]]
        %v2903 = vstv %s2902
        %v2904 = vmul.f32 %v2903, %v289
        %2905 = vrot.lane.b32.xlu0 %v2732, 125
        %v2906 = vpop.permute.xlu0 %2905
        %2907 = vrot.lane.b32.xlu0 %v2734, 125
        %v2908 = vpop.permute.xlu0 %2907
        %v2909 = vsel %vm481, %v2906, %v2908
        %v2911 = vsel %vm481, %v2908, 0.0
        %v2913 = vcombine.low %v2909, %v2911
        %v2915 = vunpack.c.l.s4 1966171168
        %v2916 = vunpack.c.0.s8 %v2915
        %v2917 = vlaneseq
        %v2918 = vshrl.u32 %v2917, 7
        %v2919 = vsub.s32 %v2916, %v2918
        %v2920 = vrot.slane %v2913, %v2919
        %v2922 = vunpack.c.l.s4 1966171168
        %v2923 = vunpack.c.0.s8 %v2922
        %v2924 = vlaneseq
        %v2925 = vshrl.u32 %v2924, 7
        %v2926 = vsub.s32 %v2923, %v2925
        %v2927 = vrot.slane %v2920, %v2926
        %v2929 = vmul.f32 %v2904, %v2927
        %v2930 = vadd.f32 %v2901, %v2929
        %2931 = vrot.lane.b32.xlu0 %v275, 80
        %v2932 = vpop.permute.xlu0 %2931
        %2933 = vrot.lane.b32.xlu0 %v276, 80
        %v2934 = vpop.permute.xlu0 %2933
        %v2935 = vsel %vm1519, %v2932, %v2934
        %v2937 = vsel %vm1519, %v2934, 0.0
        %s2938 = sld [smem:[#allocation9 + $0xaa]]
        %v2939 = vstv %s2938
        %v2940 = vmul.f32 %v2939, %v277
        %2942 = vrot.lane.b32.xlu0 %v2935, 3
        %v2943 = vpop.permute.xlu0 %2942
        %2944 = vrot.lane.b32.xlu0 %v2937, 3
        %v2945 = vpop.permute.xlu0 %2944
        %v2946 = vsel %vm310, %v2943, %v2945
        %v2948 = vsel %vm310, 0.0, %v2943
        %v2950 = vcombine.low %v2948, %v2946
        %v2952 = vunpack.c.l.s4 1966171168
        %v2953 = vunpack.c.0.s8 %v2952
        %v2954 = vlaneseq
        %v2955 = vshrl.u32 %v2954, 7
        %v2956 = vsub.s32 %v2953, %v2955
        %v2957 = vrot.slane %v2950, %v2956
        %v2959 = vunpack.c.l.s4 1966171168
        %v2960 = vunpack.c.0.s8 %v2959
        %v2961 = vlaneseq
        %v2962 = vshrl.u32 %v2961, 7
        %v2963 = vsub.s32 %v2960, %v2962
        %v2964 = vrot.slane %v2957, %v2963
        %v2966 = vmul.f32 %v2940, %v2964
        %v2967 = vadd.f32 %v2930, %v2966
        %s2968 = sld [smem:[#allocation9 + $0xab]]
        %v2969 = vstv %s2968
        %v2970 = vmul.f32 %v2969, %v279
        %2971 = vrot.lane.b32.xlu0 %v2935, 2
        %v2972 = vpop.permute.xlu0 %2971
        %2973 = vrot.lane.b32.xlu0 %v2937, 2
        %v2974 = vpop.permute.xlu0 %2973
        %v2975 = vsel %vm340, %v2972, %v2974
        %v2977 = vsel %vm340, 0.0, %v2972
        %v2979 = vcombine.low %v2977, %v2975
        %v2981 = vunpack.c.l.s4 1966171168
        %v2982 = vunpack.c.0.s8 %v2981
        %v2983 = vlaneseq
        %v2984 = vshrl.u32 %v2983, 7
        %v2985 = vsub.s32 %v2982, %v2984
        %v2986 = vrot.slane %v2979, %v2985
        %v2988 = vunpack.c.l.s4 1966171168
        %v2989 = vunpack.c.0.s8 %v2988
        %v2990 = vlaneseq
        %v2991 = vshrl.u32 %v2990, 7
        %v2992 = vsub.s32 %v2989, %v2991
        %v2993 = vrot.slane %v2986, %v2992
        %v2995 = vmul.f32 %v2970, %v2993
        %v2996 = vadd.f32 %v2967, %v2995
        %s2997 = sld [smem:[#allocation9 + $0xac]]
        %v2998 = vstv %s2997
        %v2999 = vmul.f32 %v2998, %v281
        %3000 = vrot.lane.b32.xlu0 %v2935, 1
        %v3001 = vpop.permute.xlu0 %3000
        %3002 = vrot.lane.b32.xlu0 %v2937, 1
        %v3003 = vpop.permute.xlu0 %3002
        %v3004 = vsel %vm370, %v3001, %v3003
        %v3006 = vsel %vm370, 0.0, %v3001
        %v3008 = vcombine.low %v3006, %v3004
        %v3010 = vunpack.c.l.s4 1966171168
        %v3011 = vunpack.c.0.s8 %v3010
        %v3012 = vlaneseq
        %v3013 = vshrl.u32 %v3012, 7
        %v3014 = vsub.s32 %v3011, %v3013
        %v3015 = vrot.slane %v3008, %v3014
        %v3017 = vunpack.c.l.s4 1966171168
        %v3018 = vunpack.c.0.s8 %v3017
        %v3019 = vlaneseq
        %v3020 = vshrl.u32 %v3019, 7
        %v3021 = vsub.s32 %v3018, %v3020
        %v3022 = vrot.slane %v3015, %v3021
        %v3024 = vmul.f32 %v2999, %v3022
        %v3025 = vadd.f32 %v2996, %v3024
        %s3026 = sld [smem:[#allocation9 + $0xad]]
        %v3027 = vstv %s3026
        %v3028 = vmul.f32 %v3027, %v283
        %v3029 = vcombine.low %v2935, %v2937
        %v3031 = vunpack.c.l.s4 1966171168
        %v3032 = vunpack.c.0.s8 %v3031
        %v3033 = vlaneseq
        %v3034 = vshrl.u32 %v3033, 7
        %v3035 = vsub.s32 %v3032, %v3034
        %v3036 = vrot.slane %v3029, %v3035
        %v3038 = vunpack.c.l.s4 1966171168
        %v3039 = vunpack.c.0.s8 %v3038
        %v3040 = vlaneseq
        %v3041 = vshrl.u32 %v3040, 7
        %v3042 = vsub.s32 %v3039, %v3041
        %v3043 = vrot.slane %v3036, %v3042
        %v3045 = vmul.f32 %v3028, %v3043
        %v3046 = vadd.f32 %v3025, %v3045
        %s3047 = sld [smem:[#allocation9 + $0xae]]
        %v3048 = vstv %s3047
        %v3049 = vmul.f32 %v3048, %v285
        %3050 = vrot.lane.b32.xlu0 %v2935, 127
        %v3051 = vpop.permute.xlu0 %3050
        %3052 = vrot.lane.b32.xlu0 %v2937, 127
        %v3053 = vpop.permute.xlu0 %3052
        %v3054 = vsel %vm421, %v3051, %v3053
        %v3056 = vsel %vm421, %v3053, 0.0
        %v3058 = vcombine.low %v3054, %v3056
        %v3060 = vunpack.c.l.s4 1966171168
        %v3061 = vunpack.c.0.s8 %v3060
        %v3062 = vlaneseq
        %v3063 = vshrl.u32 %v3062, 7
        %v3064 = vsub.s32 %v3061, %v3063
        %v3065 = vrot.slane %v3058, %v3064
        %v3067 = vunpack.c.l.s4 1966171168
        %v3068 = vunpack.c.0.s8 %v3067
        %v3069 = vlaneseq
        %v3070 = vshrl.u32 %v3069, 7
        %v3071 = vsub.s32 %v3068, %v3070
        %v3072 = vrot.slane %v3065, %v3071
        %v3074 = vmul.f32 %v3049, %v3072
        %v3075 = vadd.f32 %v3046, %v3074
        %s3076 = sld [smem:[#allocation9 + $0xaf]]
        %v3077 = vstv %s3076
        %v3078 = vmul.f32 %v3077, %v287
        %3079 = vrot.lane.b32.xlu0 %v2935, 126
        %v3080 = vpop.permute.xlu0 %3079
        %3081 = vrot.lane.b32.xlu0 %v2937, 126
        %v3082 = vpop.permute.xlu0 %3081
        %v3083 = vsel %vm451, %v3080, %v3082
        %v3085 = vsel %vm451, %v3082, 0.0
        %v3087 = vcombine.low %v3083, %v3085
        %v3089 = vunpack.c.l.s4 1966171168
        %v3090 = vunpack.c.0.s8 %v3089
        %v3091 = vlaneseq
        %v3092 = vshrl.u32 %v3091, 7
        %v3093 = vsub.s32 %v3090, %v3092
        %v3094 = vrot.slane %v3087, %v3093
        %v3096 = vunpack.c.l.s4 1966171168
        %v3097 = vunpack.c.0.s8 %v3096
        %v3098 = vlaneseq
        %v3099 = vshrl.u32 %v3098, 7
        %v3100 = vsub.s32 %v3097, %v3099
        %v3101 = vrot.slane %v3094, %v3100
        %v3103 = vmul.f32 %v3078, %v3101
        %v3104 = vadd.f32 %v3075, %v3103
        %s3105 = sld [smem:[#allocation9 + $0xb0]]
        %v3106 = vstv %s3105
        %v3107 = vmul.f32 %v3106, %v289
        %3108 = vrot.lane.b32.xlu0 %v2935, 125
        %v3109 = vpop.permute.xlu0 %3108
        %3110 = vrot.lane.b32.xlu0 %v2937, 125
        %v3111 = vpop.permute.xlu0 %3110
        %v3112 = vsel %vm481, %v3109, %v3111
        %v3114 = vsel %vm481, %v3111, 0.0
        %v3116 = vcombine.low %v3112, %v3114
        %v3118 = vunpack.c.l.s4 1966171168
        %v3119 = vunpack.c.0.s8 %v3118
        %v3120 = vlaneseq
        %v3121 = vshrl.u32 %v3120, 7
        %v3122 = vsub.s32 %v3119, %v3121
        %v3123 = vrot.slane %v3116, %v3122
        %v3125 = vunpack.c.l.s4 1966171168
        %v3126 = vunpack.c.0.s8 %v3125
        %v3127 = vlaneseq
        %v3128 = vshrl.u32 %v3127, 7
        %v3129 = vsub.s32 %v3126, %v3128
        %v3130 = vrot.slane %v3123, %v3129
        %v3132 = vmul.f32 %v3107, %v3130
        %v3133 = vadd.f32 %v3104, %v3132
        %v3134 = vxor.u32 %v3133, 2147483648
        %v3135 = vmul.f32 %v3134, 1.442695
        %v3136 = vpow.pop %v3135
        %v3137 = vadd.f32 %v3136, 1.0
        %v3138 = vrcp.pop %v3137
        %v3139 = vmul.f32 1.0, %v3138
        %v3141 = vlaneseq
        %v3142 = vshrl.u32 %v3141, 7
        %v3143 = vsub.s32 0, %v3142
        %v3144 = vrot.slane %v3139, %v3143
        %v3145 = vlaneseq
        %v3146 = vshrl.u32 %v3145, 7
        %v3147 = vsub.s32 1, %v3146
        %v3148 = vrot.slane %v3139, %v3147
        %v3149 = vcombine.low %v3144, %v3148
        %v3151 = vmul.f32 %v242, %v3149
        %3152 = vst [vmem:[%s241] sm:$0xff] %v3151
        %s3153 = sand.u32 %s121, 1
        %s3154 = scalar_lea.sflag [#allocation5], %s3153
        %s3155 = sand.u32 %s121, 1
        %s3156 = smul.addr %s3155, 8
        %s3157 = scalar_lea.vmem [#allocation10], %s3156
        // Predicated region
        $region49: #{tpu_custom_call.1} parent=35 // pred_check
          %p3158 = pneg %p131
        $region50: #{tpu_custom_call.1} parent=35 // pred_check_branch
          %3160 = sbr.rel (%p3158) target = $region52
        $region51: #{tpu_custom_call.1} parent=35 // pred_region
          %s3162 = ssub.s32 128, 128
          %3163 = vsyncadd %s3154, %s3162
          %s3164 = smul.addr %s24, 2
          %s3165 = smul.addr %s3164, 64
          %s3166 = scalar_lea.hbm %s4, %s3165
          %s3168 = sshll.u32 %s3157, 4
          %s3169 = int_to_ptr.vmem [resolvable:$true] %s3168
          %3171 = dma.vmem_to_hbm [thread:$0]  %s3169, 128, %s3166, %s3154
        $region52: #{tpu_custom_call.1} parent=35 // pred_fallthru
          _
      $region36: #{tpu_custom_call.1} parent=5 // pred_fallthru
        _
      %p3172 = scmp.le.s32.totalorder 2, %s19
      // Predicated region
      $region53: #{tpu_custom_call.1} parent=5 // pred_check
        %p3173 = pneg %p3172
      $region54: #{tpu_custom_call.1} parent=5 // pred_check_branch
        %3175 = sbr.rel (%p3173) target = $region56
      $region55: #{tpu_custom_call.1} parent=5 // pred_region
        %s3176 = ssub.s32 %s19, 2
        // Predicated region
        $region57: #{tpu_custom_call.1} parent=55 // pred_check
          %p3177 = pneg %p137
        $region58: #{tpu_custom_call.1} parent=55 // pred_check_branch
          %3179 = sbr.rel (%p3177) target = $region60
        $region59: #{tpu_custom_call.1} parent=55 // pred_region
          %s3180 = sand.u32 %s122, 1
          %s3181 = scalar_lea.sflag [#allocation5], %s3180
          %s3182 = sand.u32 %s122, 1
          %s3183 = smul.addr %s3182, 8
          %s3184 = scalar_lea.vmem [#allocation10], %s3183
          %3185 = dma.done %s3181, 128
        $region60: #{tpu_custom_call.1} parent=55 // pred_fallthru
          _
      $region56: #{tpu_custom_call.1} parent=5 // pred_fallthru
        _
    $region6: #{tpu_custom_call.1} parent=1 // loop_footer
      %s23 = sadd.s32 1, %s19
    $region7: #{tpu_custom_call.1} parent=1 // loop_footer_branch
      %18 = sbr.rel target = $region3
    $region8: #{tpu_custom_call.1} parent=1 // loop_exit
      _
    %3186 = vsyncpa [#allocation4], 1
    %s3187 = scalar_lea.sflag [#allocation4], 1
    %3188 = vsyncpa %s3187, 1
    %3189 = vsyncpa [#allocation8], 1
    %3190 = vsyncpa [#allocation5], 1
    %s3191 = scalar_lea.sflag [#allocation5], 1
    %3192 = vsyncpa %s3191, 1
    %3193 = vsyncpa [#allocation6], 1
    %s3194 = scalar_lea.sflag [#allocation6], 1
    %3195 = vsyncpa %s3194, 1

</llo_original>
